<compile_context>
chip_gen: v6e
topology: v6e:2x2x1
jax: 0.10.0
libtpu: 0.0.40
codegen_flags: <defaults>
</compile_context>

<pallas_src>
import functools

import numpy as np
import jax
import jax.numpy as jnp
from jax import lax
from jax.experimental import pallas as pl
from jax.experimental.pallas import tpu as pltpu


# ----------------------------------------------------------------------------- filters


def _bilinear_1d(kernel_size):
    """1-D bilinear kernel f; the module's 2-D filter is outer(f, f)."""
    factor = (kernel_size + 1) // 2
    if kernel_size % 2 == 1:
        center = factor - 1
    else:
        center = factor - 0.5
    k = np.arange(kernel_size, dtype=np.float64)
    return (1.0 - np.abs(k - center) / factor).astype(np.float32)


def make_bilinear_weight(in_channels, out_channels, kernel_size, groups):
    """Deterministic bilinear-upsampling filter, same as the PyTorch module."""
    f = _bilinear_1d(kernel_size).astype(np.float32)
    filt = np.outer(f, f).astype(np.float32)
    # torch `filter.repeat(in_channels, out_channels // groups, 1, 1)`
    w = np.tile(filt[None, None], (in_channels, out_channels // groups, 1, 1))
    return jnp.asarray(w)


def _make_band_operands(H, W, OH, OW, K, stride, padding, toh, cin_g):
    """Dense BW plus per-OH-tile BH band strips and their input-row window starts."""
    f = _bilinear_1d(K)

    oh = np.arange(OH)[:, None]
    ih = np.arange(H)[None, :]
    kh = oh + padding - ih * stride                       # tap index for (oh, ih)
    bh = np.where((kh >= 0) & (kh < K),
                  f[np.clip(kh, 0, K - 1)], 0.0).astype(np.float32)   # (OH, H)

    iw = np.arange(W)[:, None]
    ow = np.arange(OW)[None, :]
    kw = ow + padding - iw * stride
    bw = np.where((kw >= 0) & (kw < K),
                  f[np.clip(kw, 0, K - 1)], 0.0).astype(np.float32)   # (W, OW)

    nt = OH // toh
    lo = np.zeros(nt, np.int64)
    hi = np.zeros(nt, np.int64)
    for j in range(nt):
        nz = np.nonzero(bh[j * toh:(j + 1) * toh].any(axis=0))[0]
        lo[j], hi[j] = (int(nz[0]), int(nz[-1])) if nz.size else (0, 0)

    alo = (lo // 8) * 8                                   # sublane-aligned window starts
    width = int((hi - alo).max()) + 1                     # band-support width (+ alignment)
    hin = int(min(H, ((width + 7) // 8) * 8))             # sublane-aligned window length
    h_start = np.minimum(alo, H - hin).astype(np.int32)   # clamp so window stays in [0, H)

    strips = np.zeros((nt, toh, cin_g * hin), np.float32)
    for j in range(nt):
        s = bh[j * toh:(j + 1) * toh, h_start[j]:h_start[j] + hin]
        # ci-major tiling matches the (ci, h)-ordered rows of the W-pass result.
        strips[j] = np.tile(s, (1, cin_g))
        # Sanity: the window must cover every nonzero tap of this tile's BH rows.
        assert 0 <= h_start[j] and h_start[j] + hin <= H
        assert h_start[j] <= lo[j] and hi[j] < h_start[j] + hin

    aligned = bool(np.all(h_start % 8 == 0))
    return jnp.asarray(strips), jnp.asarray(bw), jnp.asarray(h_start), hin, aligned


# ------------------------------------------------------------------------------ kernel


def _deconv_kernel(hs_ref, x_ref, bhs_ref, bw_ref, o_ref, *,
                   cin_g, cout_g, group_block, hin, aligned, precision):
    # hs_ref : (num_oh_tiles,) int32   SMEM   band-window start row per OH tile
    # x_ref  : (1, gb*cin_g, H, W)     VMEM   original input (j-invariant -> one fetch)
    # bhs_ref: (1, TOH, cin_g*HIN)     VMEM   per-tile BH band strip (cin_g-tiled)
    # bw_ref : (W, OW)                 VMEM   constant W-pass band matrix (resident)
    # o_ref  : (1, gb*cout_g, TOH, OW) VMEM   output tile
    j = pl.program_id(2)
    h0 = hs_ref[j]
    if aligned:
        h0 = pl.multiple_of(h0, 8)

    C = group_block * cin_g
    W = bw_ref.shape[0]

    # Band-support slab of the ORIGINAL input: (C, HIN, W) -> (C*HIN, W).
    xs = x_ref[0, :, pl.ds(h0, hin), :].astype(jnp.float32).reshape(C * hin, W)

    # W-pass: ONE lane-dense (lane = OW) matmul for the whole channel slab.
    t = jnp.dot(xs, bw_ref[...], preferred_element_type=jnp.float32,
                precision=precision)                                     # (C*HIN, OW)

    bh = bhs_ref[0]                                                      # (TOH, cin_g*HIN)
    for gi in range(group_block):                                        # small unroll (<=8)
        # H-pass: the cin_g channel sum is folded into the (cin_g*HIN) contraction.
        tg = t[gi * cin_g * hin:(gi + 1) * cin_g * hin]                  # (cin_g*HIN, OW)
        plane = jnp.dot(bh, tg, preferred_element_type=jnp.float32,
                        precision=precision).astype(o_ref.dtype)         # (TOH, OW)
        # Every (ci, co) pair shares the same fixed filter -> one plane per group, stored
        # for each co (full output must be materialized; OW-wide rows keep stores dense).
        for co in range(cout_g):
            o_ref[0, gi * cout_g + co] = plane


# ----------------------------------------------------------------------------- wrapper


def _vmem_usable_bytes():
    """Usable VMEM for this generation (leaves a 16 MiB margin); v7x-safe fallback."""
    try:
        cap = int(pltpu.get_tpu_info().vmem_capacity_bytes)
    except Exception:
        cap = 64 << 20          # assume the smallest part (v7x: 64 MiB physical)
    return max(32 << 20, cap - (16 << 20))


def _pick_tiling(N, groups, cin_g, cout_g, H, W, OH, OW, budget,
                 max_unroll=8, oh_tile=None):
    """Pick (groups-per-block, OH tile) targeting ~`budget` bytes of live block data."""
    # Group fold: largest divisor of `groups` within the unroll cap whose input slab
    # leaves at least half the budget for the output tile.  (The W-pass batches all gb
    # groups into one matmul; the cap only bounds the unrolled H-pass / store loop.)
    gb = 1
    for d in range(1, min(groups, max_unroll) + 1):
        if groups % d == 0 and 4 * d * cin_g * H * W <= budget // 2:
            gb = d
    # NOTE: prime / non-divisible group counts fall back to gb == 1 (correct, just slower).

    if oh_tile is not None:
        toh = int(oh_tile)
        if OH % toh != 0 or (toh % 8 != 0 and toh != OH):
            raise ValueError("oh_tile must divide OH and be a multiple of 8 (or equal OH)")
        return gb, toh

    def step_bytes(t):
        return 4 * (gb * cin_g * H * W + gb * cout_g * t * OW)

    toh = OH
    # Tile OH when the step is too big for the budget OR there are not even 2 grid steps
    # to shard across TensorCores.
    if step_bytes(OH) > budget or N * (groups // gb) < 2:
        cands = [d for d in range(8, OH, 8) if OH % d == 0]
        fitting = [d for d in cands if step_bytes(d) <= budget]
        if fitting:
            toh = max(fitting)
        elif cands:
            toh = min(cands)     # best effort; stays correct
    return gb, toh


def bilinear_deconvolution(x, *, out_channels, kernel_size, stride, padding, groups,
                           oh_tile=None, precision=lax.Precision.DEFAULT):
    N, Cin, H, W = x.shape
    if Cin % groups or out_channels % groups:
        raise ValueError("in/out channels must be divisible by groups")
    cin_g = Cin // groups
    cout_g = out_channels // groups
    K = kernel_size
    OH = (H - 1) * stride - 2 * padding + K
    OW = (W - 1) * stride - 2 * padding + K
    assert OH > 0 and OW > 0, "output size must be positive"
    # TODO(synk): output_padding (unused by the PyTorch module) is not supported.

    cap = _vmem_usable_bytes()
    budget = min(32 << 20, int(0.35 * cap))     # ~16-32 MiB live block data per step

    gb, toh = _pick_tiling(N, groups, cin_g, cout_g, H, W, OH, OW, budget,
                           oh_tile=oh_tile)
    strips, bw, h_start, hin, aligned = _make_band_operands(
        H, W, OH, OW, K, stride, padding, toh, cin_g)
    num_tiles = OH // toh

    # Generation-aware VMEM limit from the actual footprint (double-buffered blocks +
    # resident BW + W-pass intermediate), clamped to the chip's usable capacity.
    in_b = 4 * gb * cin_g * H * W
    out_b = 4 * gb * cout_g * toh * OW
    bw_b = 4 * W * OW
    st_b = 4 * toh * cin_g * hin
    t_b = 4 * gb * cin_g * hin * OW
    vmem_limit = int(min(cap, max(16 << 20,
                                  2 * (in_b + out_b + bw_b + st_b) + t_b + (4 << 20))))

    kern = functools.partial(_deconv_kernel, cin_g=cin_g, cout_g=cout_g,
                             group_block=gb, hin=hin, aligned=aligned,
                             precision=precision)

    grid_spec = pltpu.PrefetchScalarGridSpec(
        num_scalar_prefetch=1,                       # h_start table -> SMEM
        grid=(N, groups // gb, num_tiles),
        in_specs=[
            # Full input plane(s); index map ignores j -> fetched once per (n, g).
            pl.BlockSpec((1, gb * cin_g, H, W), lambda n, g, j, hs: (n, g, 0, 0)),
            # Per-OH-tile BH strip.  This is the only per-step-varying input and it is
            # tiny, so default double buffering already hides its DMA; pl.Buffered(3)
            # is the knob if per-step compute ever drops to the microsecond range.
            pl.BlockSpec((1, toh, cin_g * hin), lambda n, g, j, hs: (j, 0, 0)),
            # Constant W-pass band matrix -> resident.
            pl.BlockSpec((W, OW), lambda n, g, j, hs: (0, 0)),
        ],
        out_specs=pl.BlockSpec((1, gb * cout_g, toh, OW),
                               lambda n, g, j, hs: (n, g, j, 0)),
    )

    return pl.pallas_call(
        kern,
        out_shape=jax.ShapeDtypeStruct((N, out_channels, OH, OW), x.dtype),
        grid_spec=grid_spec,
        compiler_params=pltpu.CompilerParams(
            dimension_semantics=("parallel", "parallel", "parallel"),
            vmem_limit_bytes=vmem_limit),
    )(h_start, x, strips, bw)


class BiLinearDeconvolution:
    """Thin JAX/Pallas counterpart of the PyTorch module (fixed bilinear filter)."""

    def __init__(self, in_channels, out_channels, kernel_size, stride, padding, groups):
        del in_channels  # the fixed filter only depends on kernel_size
        self.out_channels = out_channels
        self.kernel_size = kernel_size
        self.stride = stride
        self.padding = padding
        self.groups = groups

    def __call__(self, x, *, oh_tile=None, precision=lax.Precision.DEFAULT):
        return bilinear_deconvolution(
            x, out_channels=self.out_channels, kernel_size=self.kernel_size,
            stride=self.stride, padding=self.padding, groups=self.groups,
            oh_tile=oh_tile, precision=precision)


# --------------------------------------------------------------------------- reference


def ref_conv_transpose2d(x, w, stride, padding, groups):
    """Direct numpy scatter-add implementation of PyTorch conv_transpose2d semantics."""
    x = np.asarray(x)
    w = np.asarray(w)
    N, Cin, H, W = x.shape
    Cout_g, K = w.shape[1], w.shape[2]
    Cin_g = Cin // groups
    Cout = Cout_g * groups
    OH = (H - 1) * stride - 2 * padding + K
    OW = (W - 1) * stride - 2 * padding + K
    full = np.zeros((N, Cout, (H - 1) * stride + K, (W - 1) * stride + K), np.float32)
    for g in range(groups):
        for ci in range(Cin_g):
            for co in range(Cout_g):
                ww = w[g * Cin_g + ci, co]
                for ih in range(H):
                    for iw in range(W):
                        full[:, g * Cout_g + co,
                             ih * stride:ih * stride + K,
                             iw * stride:iw * stride + K] += (
                            x[:, g * Cin_g + ci, ih, iw][:, None, None] * ww)
    return full[:, :, padding:padding + OH, padding:padding + OW]


# -------------------------------------------------------------------------------- main


if __name__ == "__main__":

    def _check(x, out_channels, K, stride, padding, groups, oh_tile=None):
        w = make_bilinear_weight(x.shape[1], out_channels, K, groups)
        ref = ref_conv_transpose2d(x, w, stride, padding, groups)
        mod = BiLinearDeconvolution(x.shape[1], out_channels, K, stride, padding, groups)
        # Exact-semantics check: HIGHEST = full f32 MXU emulation.
        hi = jax.block_until_ready(mod(x, oh_tile=oh_tile,
                                       precision=lax.Precision.HIGHEST))
        np.testing.assert_allclose(np.asarray(hi), ref, rtol=1e-5, atol=1e-5)
        # Fast default path (bf16 MXU passes; the bilinear taps are exact in bf16, so only
        # input rounding contributes) -> looser tolerance.
        lo = jax.block_until_ready(mod(x, oh_tile=oh_tile))
        np.testing.assert_allclose(np.asarray(lo), ref, rtol=5e-2, atol=5e-2)

    # Config 1: typical depthwise bilinear 2x upsampling.
    x1 = jax.random.normal(jax.random.PRNGKey(0), (2, 4, 16, 16), dtype=jnp.float32)
    _check(x1, out_channels=4, K=4, stride=2, padding=1, groups=4)

    # Config 2: grouped (cin_g=2, cout_g=3) -> exercises the MXU channel-sum fold and the
    # per-group plane broadcast over cout_g.
    x2 = jax.random.normal(jax.random.PRNGKey(1), (2, 4, 16, 16), dtype=jnp.float32)
    _check(x2, out_channels=6, K=4, stride=2, padding=1, groups=2)

    # Config 3: larger plane with explicit OH tiling -> exercises the band-window path,
    # scalar-prefetched window starts, and border clamping (4 tiles).
    x3 = jax.random.normal(jax.random.PRNGKey(2), (1, 4, 32, 32), dtype=jnp.float32)
    _check(x3, out_channels=4, K=4, stride=2, padding=1, groups=4, oh_tile=16)

    print("KERNEL_OK")
</pallas_src>

<mosaic_0001>
module attributes {stable_mosaic.version = 11 : i64} {
  func.func @_deconv_kernel(%arg0: i32, %arg1: i32, %arg2: i32, %arg3: memref<1xi32, #tpu.memory_space<smem>>, %arg4: memref<1x4x16x16xf32, #tpu.memory_space<vmem>>, %arg5: memref<1x32x16xf32, #tpu.memory_space<vmem>>, %arg6: memref<16x32xf32, #tpu.memory_space<vmem>>, %arg7: memref<1x4x32x32xf32, #tpu.memory_space<vmem>>) attributes {dimension_semantics = [#tpu.dimension_semantics<parallel>, #tpu.dimension_semantics<parallel>, #tpu.dimension_semantics<parallel>], iteration_bounds = array<i64: 2, 1, 1>, scalar_prefetch = 1 : i64, scratch_operands = 0 : i64, tpu.core_type = #tpu.core_type<tc>, window_params = [{transform_indices = @transform_0, window_bounds = array<i64: 1, 4, 16, 16>}, {transform_indices = @transform_1, window_bounds = array<i64: 1, 32, 16>}, {pipeline_mode = #tpu.pipeline_mode<synchronous>, transform_indices = @transform_2, window_bounds = array<i64: 16, 32>}, {transform_indices = @transform_3, window_bounds = array<i64: 1, 4, 32, 32>}]} {
    %0 = arith.index_cast %arg2 : i32 to index
    %1 = memref.load %arg3[%0] : memref<1xi32, #tpu.memory_space<smem>>
    %2 = tpu.assume_multiple %1, 8 : i32
    %c0 = arith.constant 0 : index
    %c0_0 = arith.constant 0 : index
    %3 = arith.index_cast %2 : i32 to index
    %c0_1 = arith.constant 0 : index
    %4 = vector.load %arg4[%c0, %c0_0, %3, %c0_1] : memref<1x4x16x16xf32, #tpu.memory_space<vmem>>, vector<1x4x16x16xf32>
    %5 = vector.shape_cast %4 : vector<1x4x16x16xf32> to vector<4x16x16xf32>
    %6 = vector.shape_cast %5 : vector<4x16x16xf32> to vector<64x16xf32>
    %c0_2 = arith.constant 0 : index
    %c0_3 = arith.constant 0 : index
    %7 = vector.load %arg6[%c0_2, %c0_3] : memref<16x32xf32, #tpu.memory_space<vmem>>, vector<16x32xf32>
    %cst = arith.constant dense<0.000000e+00> : vector<64x32xf32>
    %8 = tpu.matmul %6, %7, %cst {dimension_numbers = #tpu.dot_dimension_numbers<[1], [0], [0], [1], [0, 0, 1, 1], [], []>, precision = #tpu.contract_precision<fp32>} : vector<64x16xf32>, vector<16x32xf32>, vector<64x32xf32> -> vector<64x32xf32>
    %c0_4 = arith.constant 0 : index
    %c0_5 = arith.constant 0 : index
    %c0_6 = arith.constant 0 : index
    %9 = vector.load %arg5[%c0_4, %c0_5, %c0_6] : memref<1x32x16xf32, #tpu.memory_space<vmem>>, vector<1x32x16xf32>
    %10 = vector.shape_cast %9 : vector<1x32x16xf32> to vector<32x16xf32>
    %11 = vector.extract_strided_slice %8 {offsets = [0, 0], sizes = [16, 32], strides = [1, 1]} : vector<64x32xf32> to vector<16x32xf32>
    %cst_7 = arith.constant dense<0.000000e+00> : vector<32x32xf32>
    %12 = tpu.matmul %10, %11, %cst_7 {dimension_numbers = #tpu.dot_dimension_numbers<[1], [0], [0], [1], [0, 0, 1, 1], [], []>, precision = #tpu.contract_precision<fp32>} : vector<32x16xf32>, vector<16x32xf32>, vector<32x32xf32> -> vector<32x32xf32>
    %c0_8 = arith.constant 0 : index
    %c0_9 = arith.constant 0 : index
    %c0_10 = arith.constant 0 : index
    %c0_11 = arith.constant 0 : index
    %13 = vector.load %arg7[%c0_8, %c0_9, %c0_10, %c0_11] : memref<1x4x32x32xf32, #tpu.memory_space<vmem>>, vector<1x1x32x32xf32>
    %14 = vector.shape_cast %13 : vector<1x1x32x32xf32> to vector<32x32xf32>
    %15 = vector.shape_cast %12 : vector<32x32xf32> to vector<1x1x32x32xf32>
    tpu.vector_store %arg7[%c0_8, %c0_9, %c0_10, %c0_11], %15 {strides = array<i32>} : memref<1x4x32x32xf32, #tpu.memory_space<vmem>>, vector<1x1x32x32xf32>,
    %16 = vector.extract_strided_slice %8 {offsets = [16, 0], sizes = [16, 32], strides = [1, 1]} : vector<64x32xf32> to vector<16x32xf32>
    %cst_12 = arith.constant dense<0.000000e+00> : vector<32x32xf32>
    %17 = tpu.matmul %10, %16, %cst_12 {dimension_numbers = #tpu.dot_dimension_numbers<[1], [0], [0], [1], [0, 0, 1, 1], [], []>, precision = #tpu.contract_precision<fp32>} : vector<32x16xf32>, vector<16x32xf32>, vector<32x32xf32> -> vector<32x32xf32>
    %c0_13 = arith.constant 0 : index
    %c1 = arith.constant 1 : index
    %c0_14 = arith.constant 0 : index
    %c0_15 = arith.constant 0 : index
    %18 = vector.load %arg7[%c0_13, %c1, %c0_14, %c0_15] : memref<1x4x32x32xf32, #tpu.memory_space<vmem>>, vector<1x1x32x32xf32>
    %19 = vector.shape_cast %18 : vector<1x1x32x32xf32> to vector<32x32xf32>
    %20 = vector.shape_cast %17 : vector<32x32xf32> to vector<1x1x32x32xf32>
    tpu.vector_store %arg7[%c0_13, %c1, %c0_14, %c0_15], %20 {strides = array<i32>} : memref<1x4x32x32xf32, #tpu.memory_space<vmem>>, vector<1x1x32x32xf32>,
    %21 = vector.extract_strided_slice %8 {offsets = [32, 0], sizes = [16, 32], strides = [1, 1]} : vector<64x32xf32> to vector<16x32xf32>
    %cst_16 = arith.constant dense<0.000000e+00> : vector<32x32xf32>
    %22 = tpu.matmul %10, %21, %cst_16 {dimension_numbers = #tpu.dot_dimension_numbers<[1], [0], [0], [1], [0, 0, 1, 1], [], []>, precision = #tpu.contract_precision<fp32>} : vector<32x16xf32>, vector<16x32xf32>, vector<32x32xf32> -> vector<32x32xf32>
    %c0_17 = arith.constant 0 : index
    %c2 = arith.constant 2 : index
    %c0_18 = arith.constant 0 : index
    %c0_19 = arith.constant 0 : index
    %23 = vector.load %arg7[%c0_17, %c2, %c0_18, %c0_19] : memref<1x4x32x32xf32, #tpu.memory_space<vmem>>, vector<1x1x32x32xf32>
    %24 = vector.shape_cast %23 : vector<1x1x32x32xf32> to vector<32x32xf32>
    %25 = vector.shape_cast %22 : vector<32x32xf32> to vector<1x1x32x32xf32>
    tpu.vector_store %arg7[%c0_17, %c2, %c0_18, %c0_19], %25 {strides = array<i32>} : memref<1x4x32x32xf32, #tpu.memory_space<vmem>>, vector<1x1x32x32xf32>,
    %26 = vector.extract_strided_slice %8 {offsets = [48, 0], sizes = [16, 32], strides = [1, 1]} : vector<64x32xf32> to vector<16x32xf32>
    %cst_20 = arith.constant dense<0.000000e+00> : vector<32x32xf32>
    %27 = tpu.matmul %10, %26, %cst_20 {dimension_numbers = #tpu.dot_dimension_numbers<[1], [0], [0], [1], [0, 0, 1, 1], [], []>, precision = #tpu.contract_precision<fp32>} : vector<32x16xf32>, vector<16x32xf32>, vector<32x32xf32> -> vector<32x32xf32>
    %c0_21 = arith.constant 0 : index
    %c3 = arith.constant 3 : index
    %c0_22 = arith.constant 0 : index
    %c0_23 = arith.constant 0 : index
    %28 = vector.load %arg7[%c0_21, %c3, %c0_22, %c0_23] : memref<1x4x32x32xf32, #tpu.memory_space<vmem>>, vector<1x1x32x32xf32>
    %29 = vector.shape_cast %28 : vector<1x1x32x32xf32> to vector<32x32xf32>
    %30 = vector.shape_cast %27 : vector<32x32xf32> to vector<1x1x32x32xf32>
    tpu.vector_store %arg7[%c0_21, %c3, %c0_22, %c0_23], %30 {strides = array<i32>} : memref<1x4x32x32xf32, #tpu.memory_space<vmem>>, vector<1x1x32x32xf32>,
    return
  }
  func.func @transform_0(%arg0: i32, %arg1: i32, %arg2: i32, %arg3: memref<1xi32, #tpu.memory_space<smem>>) -> (i32, i32, i32, i32) {
    %c0_i32 = arith.constant 0 : i32
    %c0_i32_0 = arith.constant 0 : i32
    %c0_i32_1 = arith.constant 0 : i32
    return %arg0, %arg1, %c0_i32, %c0_i32_0 : i32, i32, i32, i32
  }
  func.func @transform_1(%arg0: i32, %arg1: i32, %arg2: i32, %arg3: memref<1xi32, #tpu.memory_space<smem>>) -> (i32, i32, i32) {
    %c0_i32 = arith.constant 0 : i32
    %c0_i32_0 = arith.constant 0 : i32
    %c0_i32_1 = arith.constant 0 : i32
    return %arg2, %c0_i32, %c0_i32_0 : i32, i32, i32
  }
  func.func @transform_2(%arg0: i32, %arg1: i32, %arg2: i32, %arg3: memref<1xi32, #tpu.memory_space<smem>>) -> (i32, i32) {
    %c0_i32 = arith.constant 0 : i32
    %c0_i32_0 = arith.constant 0 : i32
    %c0_i32_1 = arith.constant 0 : i32
    return %c0_i32, %c0_i32_0 : i32, i32
  }
  func.func @transform_3(%arg0: i32, %arg1: i32, %arg2: i32, %arg3: memref<1xi32, #tpu.memory_space<smem>>) -> (i32, i32, i32, i32) {
    %c0_i32 = arith.constant 0 : i32
    %c0_i32_0 = arith.constant 0 : i32
    return %arg0, %arg1, %arg2, %c0_i32 : i32, i32, i32, i32
  }
}

</mosaic_0001>

<llo_original>
// kernel: tpu_custom_call.1
$region0: #{tpu_custom_call.1}
  #allocation0 [shape = 'u32[]', space=smem, size = 0x4, offset = 0x4, fixed_abs, tag = 'smem constant byte address 0x4 - core index']
  #allocation1 [shape = 'u32[144,128]{1,0:T(1,128)}', space=vmem, size = 0x12000, scoped, tag = 'internal scratch']
  #allocation2 [shape = 's32[1]{0}', space=sflag, size = 0x4, scoped, tag = 'scoped memory for tpu_custom_call.1']
  #allocation3 [shape = 's32[1]{0:T(128)S(6)}', space=smem, size = 0x200, scoped, tag = 'prefetched SMEM operand 0']
  %s0 = inlined_call_operand.<no memory space> [shape: s32[1], index: 0, kind: input, shape index: {}]
  %s1 = inlined_call_operand.hbm [shape: f32[2,4,16,16], index: 1, kind: input, shape index: {}]
  %s2 = inlined_call_operand.vmem [shape: f32[1,32,16], index: 2, kind: input, shape index: {}]
  %s3 = inlined_call_operand.vmem [shape: f32[16,32], index: 3, kind: input, shape index: {}]
  %s4 = inlined_call_operand.hbm [shape: f32[2,4,32,32], index: 4, kind: output, shape index: {}]
  %s5 = sld [smem:[#allocation0]]
  $region49: #{tpu_custom_call.1} parent=0
    _
  %s7 = ssub.s32 1, %s5
  %s8 = scalar_select 0, %s7, %s5
  %9 = sst [smem:[#allocation3]] %s0
  $region1: #{tpu_custom_call.1} parent=0
    #allocation4 [shape = 'u8[65536]{0}', space=vmem, size = 0x10000, scoped, tag = 'input window, operand 1']
    #allocation5 [shape = 's32[2]{0}', space=sflag, size = 0x8, scoped, tag = 'scoped memory for tpu_custom_call.1']
    #allocation6 [shape = 's32[2]{0}', space=sflag, size = 0x8, scoped, tag = 'scoped memory for tpu_custom_call.1']
    #allocation7 [shape = 'u8[131072]{0}', space=vmem, size = 0x20000, scoped, tag = 'output window, operand 0']
    %10 = vsyncpa [#allocation5], 0
    %s11 = scalar_lea.sflag [#allocation5], 1
    %12 = vsyncpa %s11, 0
    %13 = vsyncpa [#allocation6], 0
    %s14 = scalar_lea.sflag [#allocation6], 1
    %15 = vsyncpa %s14, 0
    loop: start=0, step=1, limit=4
    $region2: #{tpu_custom_call.1} parent=1 // loop_pre_header
      _
    $region3: #{tpu_custom_call.1} parent=1 // loop_header
      %s17 = sphi 0, %s21
      %p18 = scmp.ge.s32.totalorder %s17, 4
      %s24 = sphi 0, %s43
      %s25 = sphi 0, %s39
      %s26 = sphi 0, %s35
      %s27 = sphi 0, %s24
      %s28 = sphi 0, %s25
      %s29 = sphi 0, %s26
      %s30 = sphi 0, %s27
      %s31 = sphi 0, %s28
      %s32 = sphi 0, %s29
      %s48 = sphi 0, %s50
      %s51 = sphi 0, %s48
      %s52 = sphi 0, %s51
      %s68 = sphi 0, %s52
      %s74 = sphi 0, %s76
      %s77 = sphi 0, %s74
      %s78 = sphi 0, %s77
      %s94 = sphi 0, %s78
      %s98 = sphi 0, %s98
      %s100 = sphi 0, %s98
      %s101 = sphi 0, %s100
      %s115 = sphi 0, %s101
      %s125 = sphi 0, %s127
      %s128 = sphi 0, %s125
      %s129 = sphi 0, %s128
      %s145 = sphi 0, %s129
    $region4: #{tpu_custom_call.1} parent=1 // loop_header_branch
      %20 = sbr.rel (%p18) target = $region8
    $region5: #{tpu_custom_call.1} parent=1 // loop_body
      %s22 = ssub.s32 %s17, 1
      %s23 = ssub.s32 %s17, 2
      %s33 = sadd.s32 1, %s26
      %p34 = scmp.ge.s32.totalorder %s33, 1
      %s35 = scalar_select %p34, 0, %s33
      %s36 = sadd.s32 1, %s25
      %s37 = scalar_select %p34, %s36, %s25
      %p38 = scmp.ge.s32.totalorder %s37, 1
      %s39 = scalar_select %p38, 0, %s37
      %s40 = sadd.s32 1, %s24
      %s41 = scalar_select %p38, %s40, %s24
      %p42 = scmp.ge.s32.totalorder %s41, 2
      %s43 = scalar_select %p42, 0, %s41
      %s44 = ssub.s32 %s24, %s43
      %s45 = ssub.s32 %s25, %s39
      %s46 = sor.u32 %s44, %s45
      %p47 = scmp.eq.s32.totalorder %s46, 0
      %s49 = sadd.s32 %s48, 1
      %s50 = scalar_select %p47, %s48, %s49
      %p53 = pneg %p47
      %p54 = scmp.eq.s32.totalorder %s17, 1
      %p55 = por %p53, %p54
      %p56 = scmp.ne.s32.totalorder %s48, %s51
      %p57 = scmp.eq.s32.totalorder %s17, 0
      %p58 = por %p56, %p57
      %p59 = scmp.ne.s32.totalorder %s48, %s51
      %p60 = scmp.eq.s32.totalorder %s22, 1
      %p61 = por %p59, %p60
      %p62 = scmp.ne.s32.totalorder %s51, %s52
      %p63 = scmp.eq.s32.totalorder %s22, 0
      %p64 = por %p62, %p63
      %p65 = scmp.ne.s32.totalorder %s51, %s52
      %p66 = scmp.eq.s32.totalorder %s23, 1
      %p67 = por %p65, %p66
      %p69 = scmp.ne.s32.totalorder %s52, %s68
      %p70 = scmp.eq.s32.totalorder %s23, 0
      %p71 = por %p69, %p70
      %s72 = ssub.s32 %s26, %s35
      %p73 = scmp.eq.s32.totalorder %s72, 0
      %s75 = sadd.s32 %s74, 1
      %s76 = scalar_select %p73, %s74, %s75
      %p79 = pneg %p73
      %p80 = scmp.eq.s32.totalorder %s17, 1
      %p81 = por %p79, %p80
      %p82 = scmp.ne.s32.totalorder %s74, %s77
      %p83 = scmp.eq.s32.totalorder %s17, 0
      %p84 = por %p82, %p83
      %p85 = scmp.ne.s32.totalorder %s74, %s77
      %p86 = scmp.eq.s32.totalorder %s22, 1
      %p87 = por %p85, %p86
      %p88 = scmp.ne.s32.totalorder %s77, %s78
      %p89 = scmp.eq.s32.totalorder %s22, 0
      %p90 = por %p88, %p89
      %p91 = scmp.ne.s32.totalorder %s77, %s78
      %p92 = scmp.eq.s32.totalorder %s23, 1
      %p93 = por %p91, %p92
      %p95 = scmp.ne.s32.totalorder %s78, %s94
      %p96 = scmp.eq.s32.totalorder %s23, 0
      %p97 = por %p95, %p96
      %s99 = sadd.s32 %s98, 1
      %p102 = scmp.eq.s32.totalorder %s17, 1
      %p103 = scmp.ne.s32.totalorder %s98, %s100
      %p104 = scmp.eq.s32.totalorder %s17, 0
      %p105 = por %p103, %p104
      %p106 = scmp.ne.s32.totalorder %s98, %s100
      %p107 = scmp.eq.s32.totalorder %s22, 1
      %p108 = por %p106, %p107
      %p109 = scmp.ne.s32.totalorder %s100, %s101
      %p110 = scmp.eq.s32.totalorder %s22, 0
      %p111 = por %p109, %p110
      %p112 = scmp.ne.s32.totalorder %s100, %s101
      %p113 = scmp.eq.s32.totalorder %s23, 1
      %p114 = por %p112, %p113
      %p116 = scmp.ne.s32.totalorder %s101, %s115
      %p117 = scmp.eq.s32.totalorder %s23, 0
      %p118 = por %p116, %p117
      %s119 = ssub.s32 %s24, %s43
      %s120 = ssub.s32 %s25, %s39
      %s121 = sor.u32 %s119, %s120
      %s122 = ssub.s32 %s26, %s35
      %s123 = sor.u32 %s121, %s122
      %p124 = scmp.eq.s32.totalorder %s123, 0
      %s126 = sadd.s32 %s125, 1
      %s127 = scalar_select %p124, %s125, %s126
      %p130 = pneg %p124
      %p131 = scmp.eq.s32.totalorder %s17, 1
      %p132 = por %p130, %p131
      %p133 = scmp.ne.s32.totalorder %s125, %s128
      %p134 = scmp.eq.s32.totalorder %s17, 0
      %p135 = por %p133, %p134
      %p136 = scmp.ne.s32.totalorder %s125, %s128
      %p137 = scmp.eq.s32.totalorder %s22, 1
      %p138 = por %p136, %p137
      %p139 = scmp.ne.s32.totalorder %s128, %s129
      %p140 = scmp.eq.s32.totalorder %s22, 0
      %p141 = por %p139, %p140
      %p142 = scmp.ne.s32.totalorder %s128, %s129
      %p143 = scmp.eq.s32.totalorder %s23, 1
      %p144 = por %p142, %p143
      %p146 = scmp.ne.s32.totalorder %s129, %s145
      %p147 = scmp.eq.s32.totalorder %s23, 0
      %p148 = por %p146, %p147
      %p149 = scmp.le.s32.totalorder 1, %s17
      %p150 = scmp.lt.s32.totalorder %s17, 3
      %p151 = pnand %p149, %p150
      %p152 = pneg %p151
      // Predicated region
      $region9: #{tpu_custom_call.1} parent=5 // pred_check
        _
      $region10: #{tpu_custom_call.1} parent=5 // pred_check_branch
        %154 = sbr.rel (%p151) target = $region12
      $region11: #{tpu_custom_call.1} parent=5 // pred_region
        %s155 = ssub.s32 %s17, 1
        // Predicated region
        $region13: #{tpu_custom_call.1} parent=11 // pred_check
          %p156 = pneg %p90
        $region14: #{tpu_custom_call.1} parent=11 // pred_check_branch
          %158 = sbr.rel (%p156) target = $region16
        $region15: #{tpu_custom_call.1} parent=11 // pred_region
          %p159 = scmp.lt.s32.totalorder %s29, 0
          %s160 = scalar_select %p159, %s29, 0
          %s161 = smul.addr %s160, 4
          %s162 = smul.addr %s161, 8
          %s163 = scalar_lea.vmem %s2, %s162
        $region16: #{tpu_custom_call.1} parent=11 // pred_fallthru
          _
        // Predicated region
        $region17: #{tpu_custom_call.1} parent=11 // pred_check
          %p164 = pneg %p111
        $region18: #{tpu_custom_call.1} parent=11 // pred_check_branch
          %166 = sbr.rel (%p164) target = $region20
        $region19: #{tpu_custom_call.1} parent=11 // pred_region
          _
        $region20: #{tpu_custom_call.1} parent=11 // pred_fallthru
          _
      $region12: #{tpu_custom_call.1} parent=5 // pred_fallthru
        _
      %p167 = scmp.lt.s32.totalorder %s17, 2
      // Predicated region
      $region21: #{tpu_custom_call.1} parent=5 // pred_check
        %p168 = pneg %p167
      $region22: #{tpu_custom_call.1} parent=5 // pred_check_branch
        %170 = sbr.rel (%p168) target = $region24
      $region23: #{tpu_custom_call.1} parent=5 // pred_region
        // Predicated region
        $region25: #{tpu_custom_call.1} parent=23 // pred_check
          %p171 = pneg %p58
        $region26: #{tpu_custom_call.1} parent=23 // pred_check_branch
          %173 = sbr.rel (%p171) target = $region28
        $region27: #{tpu_custom_call.1} parent=23 // pred_region
          %s174 = sand.u32 %s48, 1
          %s175 = scalar_lea.sflag [#allocation5], %s174
          %s176 = sand.u32 %s48, 1
          %s177 = smul.addr %s176, 64
          %s178 = scalar_lea.vmem [#allocation4], %s177
          %s179 = smul.u32 4, %s25
          %s181 = ssub.s32 1024, 1024
          %182 = vsyncadd %s175, %s181
          %s183 = smul.addr %s179, 2
          %s184 = smul.addr %s24, 8
          %s185 = sadd.s32 %s183, %s184
          %s186 = smul.addr %s185, 128
          %s187 = scalar_lea.hbm %s1, %s186
          %s188 = sshll.u32 %s178, 4
          %s189 = int_to_ptr.vmem [resolvable:$true] %s188
          %194 = dma.hbm_to_vmem [thread:$0]  %s187, 1024, %s189, %s175, 128, 128, 8
        $region28: #{tpu_custom_call.1} parent=23 // pred_fallthru
          _
      $region24: #{tpu_custom_call.1} parent=5 // pred_fallthru
        _
      %p195 = scmp.le.s32.totalorder 1, %s17
      %p196 = scmp.lt.s32.totalorder %s17, 3
      %p197 = pnand %p195, %p196
      %p198 = pneg %p197
      // Predicated region
      $region29: #{tpu_custom_call.1} parent=5 // pred_check
        _
      $region30: #{tpu_custom_call.1} parent=5 // pred_check_branch
        %200 = sbr.rel (%p197) target = $region32
      $region31: #{tpu_custom_call.1} parent=5 // pred_region
        %s201 = ssub.s32 %s17, 1
        %s202 = sand.u32 %s51, 1
        %s203 = scalar_lea.sflag [#allocation5], %s202
        %s204 = sand.u32 %s51, 1
        %s205 = smul.addr %s204, 64
        %s206 = scalar_lea.vmem [#allocation4], %s205
        // Predicated region
        $region33: #{tpu_custom_call.1} parent=31 // pred_check
          %p207 = pneg %p64
        $region34: #{tpu_custom_call.1} parent=31 // pred_check_branch
          %209 = sbr.rel (%p207) target = $region36
        $region35: #{tpu_custom_call.1} parent=31 // pred_region
          %210 = dma.done %s203, 1024
        $region36: #{tpu_custom_call.1} parent=31 // pred_fallthru
          _
        %s211 = sand.u32 %s51, 1
        %s212 = scalar_lea.sflag [#allocation5], %s211
        %s213 = sand.u32 %s51, 1
        %s214 = smul.addr %s213, 64
        %s215 = scalar_lea.vmem [#allocation4], %s214
        %p216 = pneg %p64
        %p217 = pneg %p61
        %p218 = scmp.lt.s32.totalorder %s29, 0
        %s219 = scalar_select %p218, %s29, 0
        %s220 = smul.addr %s219, 4
        %s221 = smul.addr %s220, 8
        %s222 = scalar_lea.vmem %s2, %s221
        %p223 = pneg %p90
        %p224 = pneg %p87
        %p225 = pneg %p111
        %p226 = pneg %p108
        %p227 = pneg %p141
        %p228 = pneg %p138
        %s229 = sand.u32 %s128, 1
        %s230 = scalar_lea.sflag [#allocation6], %s229
        %s231 = sand.u32 %s128, 1
        %s232 = smul.addr %s231, 128
        %s233 = scalar_lea.vmem [#allocation7], %s232
        %s234 = smul.u32 4, %s28
        %p235 = scmp.lt.s32.totalorder %s29, 0
        %s236 = scalar_select %p235, %s29, 0
        %s237 = smul.addr %s236, 4
        %s238 = smul.addr %s237, 8
        %s239 = scalar_lea.vmem %s2, %s238
        %s240 = smul.u32 4, %s28
        %s241 = smul.u32 4, %s29
        %s242 = sld [smem:[#allocation3 + %s29]]
        %s243 = scalar_lea.vmem %s206, %s242 [#allocation4]
        %v244 = vld [vmem:[%s243] sm:$0xff]
        %v245 = vld [vmem:[%s243 + $0x8] sm:$0xff]
        %v246 = vld [vmem:[%s243 + $0x10] sm:$0xff]
        %v247 = vld [vmem:[%s243 + $0x18] sm:$0xff]
        %v248 = vld [vmem:[%s243 + $0x20] sm:$0xff]
        %v249 = vld [vmem:[%s243 + $0x28] sm:$0xff]
        %v250 = vld [vmem:[%s243 + $0x30] sm:$0xff]
        %v251 = vld [vmem:[%s243 + $0x38] sm:$0xff]
        %v252 = vld [vmem:[%s3] sm:$0xff]
        %v253 = vld [vmem:[%s3 + $0x8] sm:$0xff]
        %vm254 = vcmask 130048
        %v256 = vsel %vm254, %v244, 0
        %v259 = vsel %vm254, %v245, 0
        %v262 = vsel %vm254, %v246, 0
        %v265 = vsel %vm254, %v247, 0
        %v268 = vsel %vm254, %v248, 0
        %v271 = vsel %vm254, %v249, 0
        %v274 = vsel %vm254, %v250, 0
        %v277 = vsel %vm254, %v251, 0
        %279 = vmatprep.subr.mxu0 0.0
        %280 = vmatpush1.msra.mxu0 0.0
        %281 = vmatprep.subr.mxu0 0.0
        %282 = vmatpush1.msra.mxu0 0.0
        %283 = vmatprep.subr.mxu0 0.0
        %284 = vmatpush1.msra.mxu0 0.0
        %285 = vmatprep.subr.mxu0 0.0
        %286 = vmatpush1.msra.mxu0 0.0
        %287 = vmatprep.subr.mxu0 0.0
        %288 = vmatpush1.msra.mxu0 0.0
        %289 = vmatprep.subr.mxu0 0.0
        %290 = vmatpush1.msra.mxu0 0.0
        %291 = vmatprep.subr.mxu0 0.0
        %292 = vmatpush1.msra.mxu0 0.0
        %293 = vmatprep.subr.mxu0 0.0
        %294 = vmatpush1.msra.mxu0 0.0
        %295 = vmatprep.subr.mxu0 0.0
        %296 = vmatpush1.msra.mxu0 0.0
        %297 = vmatprep.subr.mxu0 0.0
        %298 = vmatpush1.msra.mxu0 0.0
        %299 = vmatprep.subr.mxu0 0.0
        %300 = vmatpush1.msra.mxu0 0.0
        %301 = vmatprep.subr.mxu0 0.0
        %302 = vmatpush1.msra.mxu0 0.0
        %303 = vmatprep.subr.mxu0 0.0
        %304 = vmatpush1.msra.mxu0 0.0
        %305 = vmatprep.subr.mxu0 0.0
        %306 = vmatpush1.msra.mxu0 0.0
        %307 = vmatprep.subr.mxu0 0.0
        %v308 = vand.u32 %v253, 4294901760
        %309 = vmatpush1.msra.mxu0 %v308
        %310 = vmatprep.subr.mxu0 0.0
        %v311 = vand.u32 %v252, 4294901760
        %312 = vmatpush1.msra.mxu0 %v311
        %313 = vmatprep.subr.mxu0 0.0
        %314 = vmatpush2.msra.mxu0 0.0
        %315 = vmatprep.subr.mxu0 0.0
        %316 = vmatpush2.msra.mxu0 0.0
        %317 = vmatprep.subr.mxu0 0.0
        %318 = vmatpush2.msra.mxu0 0.0
        %319 = vmatprep.subr.mxu0 0.0
        %320 = vmatpush2.msra.mxu0 0.0
        %321 = vmatprep.subr.mxu0 0.0
        %322 = vmatpush2.msra.mxu0 0.0
        %323 = vmatprep.subr.mxu0 0.0
        %324 = vmatpush2.msra.mxu0 0.0
        %325 = vmatprep.subr.mxu0 0.0
        %326 = vmatpush2.msra.mxu0 0.0
        %327 = vmatprep.subr.mxu0 0.0
        %328 = vmatpush2.msra.mxu0 0.0
        %329 = vmatprep.subr.mxu0 0.0
        %330 = vmatpush2.msra.mxu0 0.0
        %331 = vmatprep.subr.mxu0 0.0
        %332 = vmatpush2.msra.mxu0 0.0
        %333 = vmatprep.subr.mxu0 0.0
        %334 = vmatpush2.msra.mxu0 0.0
        %335 = vmatprep.subr.mxu0 0.0
        %336 = vmatpush2.msra.mxu0 0.0
        %337 = vmatprep.subr.mxu0 0.0
        %338 = vmatpush2.msra.mxu0 0.0
        %339 = vmatprep.subr.mxu0 0.0
        %340 = vmatpush2.msra.mxu0 0.0
        %341 = vmatprep.subr.mxu0 0.0
        %342 = vmatpush2.msra.mxu0 0.0
        %343 = vmatprep.subr.mxu0 0.0
        %344 = vmatpush2.msra.mxu0 0.0
        %345 = vmatprep.mubr.f32.mxu0 0.0
        %v346 = vand.u32 %v256, 4294901760
        %v347 = vsub.f32 %v256, %v346
        %v348 = vand.u32 %v347, 4294901760
        %v349 = vsub.f32 %v347, %v348
        %v350 = vand.u32 %v349, 4294901760
        %351 = vmatmul.mubr.f32.gmra.mxu0 %v350
        %v352 = vpop.f32.mrf.mxu0
        %v353 = vadd.f32 0.0, %v352
        %v354 = vpop.f32.mrf.mxu0
        %355 = vmatprep.mubr.f32.mxu0 0.0
        %v356 = vand.u32 %v259, 4294901760
        %v357 = vsub.f32 %v259, %v356
        %v358 = vand.u32 %v357, 4294901760
        %v359 = vsub.f32 %v357, %v358
        %v360 = vand.u32 %v359, 4294901760
        %361 = vmatmul.mubr.f32.gmra.mxu0 %v360
        %v362 = vpop.f32.mrf.mxu0
        %v363 = vadd.f32 0.0, %v362
        %v364 = vpop.f32.mrf.mxu0
        %365 = vmatprep.mubr.f32.mxu0 0.0
        %v366 = vand.u32 %v262, 4294901760
        %v367 = vsub.f32 %v262, %v366
        %v368 = vand.u32 %v367, 4294901760
        %v369 = vsub.f32 %v367, %v368
        %v370 = vand.u32 %v369, 4294901760
        %371 = vmatmul.mubr.f32.gmra.mxu0 %v370
        %v372 = vpop.f32.mrf.mxu0
        %v373 = vadd.f32 0.0, %v372
        %v374 = vpop.f32.mrf.mxu0
        %375 = vmatprep.mubr.f32.mxu0 0.0
        %v376 = vand.u32 %v265, 4294901760
        %v377 = vsub.f32 %v265, %v376
        %v378 = vand.u32 %v377, 4294901760
        %v379 = vsub.f32 %v377, %v378
        %v380 = vand.u32 %v379, 4294901760
        %381 = vmatmul.mubr.f32.gmra.mxu0 %v380
        %v382 = vpop.f32.mrf.mxu0
        %v383 = vadd.f32 0.0, %v382
        %v384 = vpop.f32.mrf.mxu0
        %385 = vmatprep.mubr.f32.mxu0 0.0
        %v386 = vand.u32 %v268, 4294901760
        %v387 = vsub.f32 %v268, %v386
        %v388 = vand.u32 %v387, 4294901760
        %v389 = vsub.f32 %v387, %v388
        %v390 = vand.u32 %v389, 4294901760
        %391 = vmatmul.mubr.f32.gmra.mxu0 %v390
        %v392 = vpop.f32.mrf.mxu0
        %v393 = vadd.f32 0.0, %v392
        %v394 = vpop.f32.mrf.mxu0
        %395 = vmatprep.mubr.f32.mxu0 0.0
        %v396 = vand.u32 %v271, 4294901760
        %v397 = vsub.f32 %v271, %v396
        %v398 = vand.u32 %v397, 4294901760
        %v399 = vsub.f32 %v397, %v398
        %v400 = vand.u32 %v399, 4294901760
        %401 = vmatmul.mubr.f32.gmra.mxu0 %v400
        %v402 = vpop.f32.mrf.mxu0
        %v403 = vadd.f32 0.0, %v402
        %v404 = vpop.f32.mrf.mxu0
        %405 = vmatprep.mubr.f32.mxu0 0.0
        %v406 = vand.u32 %v274, 4294901760
        %v407 = vsub.f32 %v274, %v406
        %v408 = vand.u32 %v407, 4294901760
        %v409 = vsub.f32 %v407, %v408
        %v410 = vand.u32 %v409, 4294901760
        %411 = vmatmul.mubr.f32.gmra.mxu0 %v410
        %v412 = vpop.f32.mrf.mxu0
        %v413 = vadd.f32 0.0, %v412
        %v414 = vpop.f32.mrf.mxu0
        %415 = vmatprep.mubr.f32.mxu0 0.0
        %v416 = vand.u32 %v277, 4294901760
        %v417 = vsub.f32 %v277, %v416
        %v418 = vand.u32 %v417, 4294901760
        %v419 = vsub.f32 %v417, %v418
        %v420 = vand.u32 %v419, 4294901760
        %421 = vmatmul.mubr.f32.gmra.mxu0 %v420
        %v422 = vpop.f32.mrf.mxu0
        %v423 = vadd.f32 0.0, %v422
        %v424 = vpop.f32.mrf.mxu0
        %425 = vdwg.mxu0
        %426 = vmatprep.subr.mxu0 0.0
        %427 = vmatpush1.msra.mxu0 0.0
        %428 = vmatprep.subr.mxu0 0.0
        %429 = vmatpush1.msra.mxu0 0.0
        %430 = vmatprep.subr.mxu0 0.0
        %431 = vmatpush1.msra.mxu0 0.0
        %432 = vmatprep.subr.mxu0 0.0
        %433 = vmatpush1.msra.mxu0 0.0
        %434 = vmatprep.subr.mxu0 0.0
        %435 = vmatpush1.msra.mxu0 0.0
        %436 = vmatprep.subr.mxu0 0.0
        %437 = vmatpush1.msra.mxu0 0.0
        %438 = vmatprep.subr.mxu0 0.0
        %439 = vmatpush1.msra.mxu0 0.0
        %440 = vmatprep.subr.mxu0 0.0
        %441 = vmatpush1.msra.mxu0 0.0
        %442 = vmatprep.subr.mxu0 0.0
        %443 = vmatpush1.msra.mxu0 0.0
        %444 = vmatprep.subr.mxu0 0.0
        %445 = vmatpush1.msra.mxu0 0.0
        %446 = vmatprep.subr.mxu0 0.0
        %447 = vmatpush1.msra.mxu0 0.0
        %448 = vmatprep.subr.mxu0 0.0
        %449 = vmatpush1.msra.mxu0 0.0
        %450 = vmatprep.subr.mxu0 0.0
        %451 = vmatpush1.msra.mxu0 0.0
        %452 = vmatprep.subr.mxu0 0.0
        %453 = vmatpush1.msra.mxu0 0.0
        %454 = vmatprep.subr.mxu0 0.0
        %v455 = vand.u32 %v253, 4294901760
        %v456 = vsub.f32 %v253, %v455
        %v457 = vand.u32 %v456, 4294901760
        %v458 = vsub.f32 %v456, %v457
        %v459 = vand.u32 %v458, 4294901760
        %460 = vmatpush1.msra.mxu0 %v459
        %461 = vmatprep.subr.mxu0 0.0
        %v462 = vand.u32 %v252, 4294901760
        %v463 = vsub.f32 %v252, %v462
        %v464 = vand.u32 %v463, 4294901760
        %v465 = vsub.f32 %v463, %v464
        %v466 = vand.u32 %v465, 4294901760
        %467 = vmatpush1.msra.mxu0 %v466
        %468 = vmatprep.subr.mxu0 0.0
        %469 = vmatpush2.msra.mxu0 0.0
        %470 = vmatprep.subr.mxu0 0.0
        %471 = vmatpush2.msra.mxu0 0.0
        %472 = vmatprep.subr.mxu0 0.0
        %473 = vmatpush2.msra.mxu0 0.0
        %474 = vmatprep.subr.mxu0 0.0
        %475 = vmatpush2.msra.mxu0 0.0
        %476 = vmatprep.subr.mxu0 0.0
        %477 = vmatpush2.msra.mxu0 0.0
        %478 = vmatprep.subr.mxu0 0.0
        %479 = vmatpush2.msra.mxu0 0.0
        %480 = vmatprep.subr.mxu0 0.0
        %481 = vmatpush2.msra.mxu0 0.0
        %482 = vmatprep.subr.mxu0 0.0
        %483 = vmatpush2.msra.mxu0 0.0
        %484 = vmatprep.subr.mxu0 0.0
        %485 = vmatpush2.msra.mxu0 0.0
        %486 = vmatprep.subr.mxu0 0.0
        %487 = vmatpush2.msra.mxu0 0.0
        %488 = vmatprep.subr.mxu0 0.0
        %489 = vmatpush2.msra.mxu0 0.0
        %490 = vmatprep.subr.mxu0 0.0
        %491 = vmatpush2.msra.mxu0 0.0
        %492 = vmatprep.subr.mxu0 0.0
        %493 = vmatpush2.msra.mxu0 0.0
        %494 = vmatprep.subr.mxu0 0.0
        %495 = vmatpush2.msra.mxu0 0.0
        %496 = vmatprep.subr.mxu0 0.0
        %497 = vmatpush2.msra.mxu0 0.0
        %498 = vmatprep.subr.mxu0 0.0
        %499 = vmatpush2.msra.mxu0 0.0
        %500 = vmatprep.mubr.f32.mxu0 0.0
        %v501 = vand.u32 %v256, 4294901760
        %502 = vmatmul.mubr.f32.gmra.mxu0 %v501
        %v503 = vpop.f32.mrf.mxu0
        %v504 = vadd.f32 %v353, %v503
        %v505 = vpop.f32.mrf.mxu0
        %506 = vmatprep.mubr.f32.mxu0 0.0
        %v507 = vand.u32 %v259, 4294901760
        %508 = vmatmul.mubr.f32.gmra.mxu0 %v507
        %v509 = vpop.f32.mrf.mxu0
        %v510 = vadd.f32 %v363, %v509
        %v511 = vpop.f32.mrf.mxu0
        %512 = vmatprep.mubr.f32.mxu0 0.0
        %v513 = vand.u32 %v262, 4294901760
        %514 = vmatmul.mubr.f32.gmra.mxu0 %v513
        %v515 = vpop.f32.mrf.mxu0
        %v516 = vadd.f32 %v373, %v515
        %v517 = vpop.f32.mrf.mxu0
        %518 = vmatprep.mubr.f32.mxu0 0.0
        %v519 = vand.u32 %v265, 4294901760
        %520 = vmatmul.mubr.f32.gmra.mxu0 %v519
        %v521 = vpop.f32.mrf.mxu0
        %v522 = vadd.f32 %v383, %v521
        %v523 = vpop.f32.mrf.mxu0
        %524 = vmatprep.mubr.f32.mxu0 0.0
        %v525 = vand.u32 %v268, 4294901760
        %526 = vmatmul.mubr.f32.gmra.mxu0 %v525
        %v527 = vpop.f32.mrf.mxu0
        %v528 = vadd.f32 %v393, %v527
        %v529 = vpop.f32.mrf.mxu0
        %530 = vmatprep.mubr.f32.mxu0 0.0
        %v531 = vand.u32 %v271, 4294901760
        %532 = vmatmul.mubr.f32.gmra.mxu0 %v531
        %v533 = vpop.f32.mrf.mxu0
        %v534 = vadd.f32 %v403, %v533
        %v535 = vpop.f32.mrf.mxu0
        %536 = vmatprep.mubr.f32.mxu0 0.0
        %v537 = vand.u32 %v274, 4294901760
        %538 = vmatmul.mubr.f32.gmra.mxu0 %v537
        %v539 = vpop.f32.mrf.mxu0
        %v540 = vadd.f32 %v413, %v539
        %v541 = vpop.f32.mrf.mxu0
        %542 = vmatprep.mubr.f32.mxu0 0.0
        %v543 = vand.u32 %v277, 4294901760
        %544 = vmatmul.mubr.f32.gmra.mxu0 %v543
        %v545 = vpop.f32.mrf.mxu0
        %v546 = vadd.f32 %v423, %v545
        %v547 = vpop.f32.mrf.mxu0
        %548 = vdwg.mxu0
        %549 = vmatprep.subr.mxu0 0.0
        %550 = vmatpush1.msra.mxu0 0.0
        %551 = vmatprep.subr.mxu0 0.0
        %552 = vmatpush1.msra.mxu0 0.0
        %553 = vmatprep.subr.mxu0 0.0
        %554 = vmatpush1.msra.mxu0 0.0
        %555 = vmatprep.subr.mxu0 0.0
        %556 = vmatpush1.msra.mxu0 0.0
        %557 = vmatprep.subr.mxu0 0.0
        %558 = vmatpush1.msra.mxu0 0.0
        %559 = vmatprep.subr.mxu0 0.0
        %560 = vmatpush1.msra.mxu0 0.0
        %561 = vmatprep.subr.mxu0 0.0
        %562 = vmatpush1.msra.mxu0 0.0
        %563 = vmatprep.subr.mxu0 0.0
        %564 = vmatpush1.msra.mxu0 0.0
        %565 = vmatprep.subr.mxu0 0.0
        %566 = vmatpush1.msra.mxu0 0.0
        %567 = vmatprep.subr.mxu0 0.0
        %568 = vmatpush1.msra.mxu0 0.0
        %569 = vmatprep.subr.mxu0 0.0
        %570 = vmatpush1.msra.mxu0 0.0
        %571 = vmatprep.subr.mxu0 0.0
        %572 = vmatpush1.msra.mxu0 0.0
        %573 = vmatprep.subr.mxu0 0.0
        %574 = vmatpush1.msra.mxu0 0.0
        %575 = vmatprep.subr.mxu0 0.0
        %576 = vmatpush1.msra.mxu0 0.0
        %577 = vmatprep.subr.mxu0 0.0
        %v578 = vand.u32 %v253, 4294901760
        %v579 = vsub.f32 %v253, %v578
        %580 = vmatpush1.msra.mxu0 %v579
        %581 = vmatprep.subr.mxu0 0.0
        %v582 = vand.u32 %v252, 4294901760
        %v583 = vsub.f32 %v252, %v582
        %584 = vmatpush1.msra.mxu0 %v583
        %585 = vmatprep.subr.mxu0 0.0
        %586 = vmatpush2.msra.mxu0 0.0
        %587 = vmatprep.subr.mxu0 0.0
        %588 = vmatpush2.msra.mxu0 0.0
        %589 = vmatprep.subr.mxu0 0.0
        %590 = vmatpush2.msra.mxu0 0.0
        %591 = vmatprep.subr.mxu0 0.0
        %592 = vmatpush2.msra.mxu0 0.0
        %593 = vmatprep.subr.mxu0 0.0
        %594 = vmatpush2.msra.mxu0 0.0
        %595 = vmatprep.subr.mxu0 0.0
        %596 = vmatpush2.msra.mxu0 0.0
        %597 = vmatprep.subr.mxu0 0.0
        %598 = vmatpush2.msra.mxu0 0.0
        %599 = vmatprep.subr.mxu0 0.0
        %600 = vmatpush2.msra.mxu0 0.0
        %601 = vmatprep.subr.mxu0 0.0
        %602 = vmatpush2.msra.mxu0 0.0
        %603 = vmatprep.subr.mxu0 0.0
        %604 = vmatpush2.msra.mxu0 0.0
        %605 = vmatprep.subr.mxu0 0.0
        %606 = vmatpush2.msra.mxu0 0.0
        %607 = vmatprep.subr.mxu0 0.0
        %608 = vmatpush2.msra.mxu0 0.0
        %609 = vmatprep.subr.mxu0 0.0
        %610 = vmatpush2.msra.mxu0 0.0
        %611 = vmatprep.subr.mxu0 0.0
        %612 = vmatpush2.msra.mxu0 0.0
        %613 = vmatprep.subr.mxu0 0.0
        %614 = vmatpush2.msra.mxu0 0.0
        %615 = vmatprep.subr.mxu0 0.0
        %616 = vmatpush2.msra.mxu0 0.0
        %617 = vmatprep.mubr.f32.mxu0 0.0
        %v618 = vand.u32 %v256, 4294901760
        %v619 = vsub.f32 %v256, %v618
        %620 = vmatmul.mubr.f32.gmra.mxu0 %v619
        %v621 = vpop.f32.mrf.mxu0
        %v622 = vadd.f32 %v504, %v621
        %v623 = vpop.f32.mrf.mxu0
        %624 = vmatprep.mubr.f32.mxu0 0.0
        %v625 = vand.u32 %v259, 4294901760
        %v626 = vsub.f32 %v259, %v625
        %627 = vmatmul.mubr.f32.gmra.mxu0 %v626
        %v628 = vpop.f32.mrf.mxu0
        %v629 = vadd.f32 %v510, %v628
        %v630 = vpop.f32.mrf.mxu0
        %631 = vmatprep.mubr.f32.mxu0 0.0
        %v632 = vand.u32 %v262, 4294901760
        %v633 = vsub.f32 %v262, %v632
        %634 = vmatmul.mubr.f32.gmra.mxu0 %v633
        %v635 = vpop.f32.mrf.mxu0
        %v636 = vadd.f32 %v516, %v635
        %v637 = vpop.f32.mrf.mxu0
        %638 = vmatprep.mubr.f32.mxu0 0.0
        %v639 = vand.u32 %v265, 4294901760
        %v640 = vsub.f32 %v265, %v639
        %641 = vmatmul.mubr.f32.gmra.mxu0 %v640
        %v642 = vpop.f32.mrf.mxu0
        %v643 = vadd.f32 %v522, %v642
        %v644 = vpop.f32.mrf.mxu0
        %645 = vmatprep.mubr.f32.mxu0 0.0
        %v646 = vand.u32 %v268, 4294901760
        %v647 = vsub.f32 %v268, %v646
        %648 = vmatmul.mubr.f32.gmra.mxu0 %v647
        %v649 = vpop.f32.mrf.mxu0
        %v650 = vadd.f32 %v528, %v649
        %v651 = vpop.f32.mrf.mxu0
        %652 = vmatprep.mubr.f32.mxu0 0.0
        %v653 = vand.u32 %v271, 4294901760
        %v654 = vsub.f32 %v271, %v653
        %655 = vmatmul.mubr.f32.gmra.mxu0 %v654
        %v656 = vpop.f32.mrf.mxu0
        %v657 = vadd.f32 %v534, %v656
        %v658 = vpop.f32.mrf.mxu0
        %659 = vmatprep.mubr.f32.mxu0 0.0
        %v660 = vand.u32 %v274, 4294901760
        %v661 = vsub.f32 %v274, %v660
        %662 = vmatmul.mubr.f32.gmra.mxu0 %v661
        %v663 = vpop.f32.mrf.mxu0
        %v664 = vadd.f32 %v540, %v663
        %v665 = vpop.f32.mrf.mxu0
        %666 = vmatprep.mubr.f32.mxu0 0.0
        %v667 = vand.u32 %v277, 4294901760
        %v668 = vsub.f32 %v277, %v667
        %669 = vmatmul.mubr.f32.gmra.mxu0 %v668
        %v670 = vpop.f32.mrf.mxu0
        %v671 = vadd.f32 %v546, %v670
        %v672 = vpop.f32.mrf.mxu0
        %673 = vdwg.mxu0
        %674 = vmatprep.subr.mxu0 0.0
        %675 = vmatpush1.msra.mxu0 0.0
        %676 = vmatprep.subr.mxu0 0.0
        %677 = vmatpush1.msra.mxu0 0.0
        %678 = vmatprep.subr.mxu0 0.0
        %679 = vmatpush1.msra.mxu0 0.0
        %680 = vmatprep.subr.mxu0 0.0
        %681 = vmatpush1.msra.mxu0 0.0
        %682 = vmatprep.subr.mxu0 0.0
        %683 = vmatpush1.msra.mxu0 0.0
        %684 = vmatprep.subr.mxu0 0.0
        %685 = vmatpush1.msra.mxu0 0.0
        %686 = vmatprep.subr.mxu0 0.0
        %687 = vmatpush1.msra.mxu0 0.0
        %688 = vmatprep.subr.mxu0 0.0
        %689 = vmatpush1.msra.mxu0 0.0
        %690 = vmatprep.subr.mxu0 0.0
        %691 = vmatpush1.msra.mxu0 0.0
        %692 = vmatprep.subr.mxu0 0.0
        %693 = vmatpush1.msra.mxu0 0.0
        %694 = vmatprep.subr.mxu0 0.0
        %695 = vmatpush1.msra.mxu0 0.0
        %696 = vmatprep.subr.mxu0 0.0
        %697 = vmatpush1.msra.mxu0 0.0
        %698 = vmatprep.subr.mxu0 0.0
        %699 = vmatpush1.msra.mxu0 0.0
        %700 = vmatprep.subr.mxu0 0.0
        %701 = vmatpush1.msra.mxu0 0.0
        %702 = vmatprep.subr.mxu0 0.0
        %v703 = vand.u32 %v253, 4294901760
        %704 = vmatpush1.msra.mxu0 %v703
        %705 = vmatprep.subr.mxu0 0.0
        %v706 = vand.u32 %v252, 4294901760
        %707 = vmatpush1.msra.mxu0 %v706
        %708 = vmatprep.subr.mxu0 0.0
        %709 = vmatpush2.msra.mxu0 0.0
        %710 = vmatprep.subr.mxu0 0.0
        %711 = vmatpush2.msra.mxu0 0.0
        %712 = vmatprep.subr.mxu0 0.0
        %713 = vmatpush2.msra.mxu0 0.0
        %714 = vmatprep.subr.mxu0 0.0
        %715 = vmatpush2.msra.mxu0 0.0
        %716 = vmatprep.subr.mxu0 0.0
        %717 = vmatpush2.msra.mxu0 0.0
        %718 = vmatprep.subr.mxu0 0.0
        %719 = vmatpush2.msra.mxu0 0.0
        %720 = vmatprep.subr.mxu0 0.0
        %721 = vmatpush2.msra.mxu0 0.0
        %722 = vmatprep.subr.mxu0 0.0
        %723 = vmatpush2.msra.mxu0 0.0
        %724 = vmatprep.subr.mxu0 0.0
        %725 = vmatpush2.msra.mxu0 0.0
        %726 = vmatprep.subr.mxu0 0.0
        %727 = vmatpush2.msra.mxu0 0.0
        %728 = vmatprep.subr.mxu0 0.0
        %729 = vmatpush2.msra.mxu0 0.0
        %730 = vmatprep.subr.mxu0 0.0
        %731 = vmatpush2.msra.mxu0 0.0
        %732 = vmatprep.subr.mxu0 0.0
        %733 = vmatpush2.msra.mxu0 0.0
        %734 = vmatprep.subr.mxu0 0.0
        %735 = vmatpush2.msra.mxu0 0.0
        %736 = vmatprep.subr.mxu0 0.0
        %737 = vmatpush2.msra.mxu0 0.0
        %738 = vmatprep.subr.mxu0 0.0
        %739 = vmatpush2.msra.mxu0 0.0
        %740 = vmatprep.mubr.f32.mxu0 0.0
        %v741 = vand.u32 %v256, 4294901760
        %v742 = vsub.f32 %v256, %v741
        %v743 = vand.u32 %v742, 4294901760
        %744 = vmatmul.mubr.f32.gmra.mxu0 %v743
        %v745 = vpop.f32.mrf.mxu0
        %v746 = vadd.f32 %v622, %v745
        %v747 = vpop.f32.mrf.mxu0
        %748 = vmatprep.mubr.f32.mxu0 0.0
        %v749 = vand.u32 %v259, 4294901760
        %v750 = vsub.f32 %v259, %v749
        %v751 = vand.u32 %v750, 4294901760
        %752 = vmatmul.mubr.f32.gmra.mxu0 %v751
        %v753 = vpop.f32.mrf.mxu0
        %v754 = vadd.f32 %v629, %v753
        %v755 = vpop.f32.mrf.mxu0
        %756 = vmatprep.mubr.f32.mxu0 0.0
        %v757 = vand.u32 %v262, 4294901760
        %v758 = vsub.f32 %v262, %v757
        %v759 = vand.u32 %v758, 4294901760
        %760 = vmatmul.mubr.f32.gmra.mxu0 %v759
        %v761 = vpop.f32.mrf.mxu0
        %v762 = vadd.f32 %v636, %v761
        %v763 = vpop.f32.mrf.mxu0
        %764 = vmatprep.mubr.f32.mxu0 0.0
        %v765 = vand.u32 %v265, 4294901760
        %v766 = vsub.f32 %v265, %v765
        %v767 = vand.u32 %v766, 4294901760
        %768 = vmatmul.mubr.f32.gmra.mxu0 %v767
        %v769 = vpop.f32.mrf.mxu0
        %v770 = vadd.f32 %v643, %v769
        %v771 = vpop.f32.mrf.mxu0
        %772 = vmatprep.mubr.f32.mxu0 0.0
        %v773 = vand.u32 %v268, 4294901760
        %v774 = vsub.f32 %v268, %v773
        %v775 = vand.u32 %v774, 4294901760
        %776 = vmatmul.mubr.f32.gmra.mxu0 %v775
        %v777 = vpop.f32.mrf.mxu0
        %v778 = vadd.f32 %v650, %v777
        %v779 = vpop.f32.mrf.mxu0
        %780 = vmatprep.mubr.f32.mxu0 0.0
        %v781 = vand.u32 %v271, 4294901760
        %v782 = vsub.f32 %v271, %v781
        %v783 = vand.u32 %v782, 4294901760
        %784 = vmatmul.mubr.f32.gmra.mxu0 %v783
        %v785 = vpop.f32.mrf.mxu0
        %v786 = vadd.f32 %v657, %v785
        %v787 = vpop.f32.mrf.mxu0
        %788 = vmatprep.mubr.f32.mxu0 0.0
        %v789 = vand.u32 %v274, 4294901760
        %v790 = vsub.f32 %v274, %v789
        %v791 = vand.u32 %v790, 4294901760
        %792 = vmatmul.mubr.f32.gmra.mxu0 %v791
        %v793 = vpop.f32.mrf.mxu0
        %v794 = vadd.f32 %v664, %v793
        %v795 = vpop.f32.mrf.mxu0
        %796 = vmatprep.mubr.f32.mxu0 0.0
        %v797 = vand.u32 %v277, 4294901760
        %v798 = vsub.f32 %v277, %v797
        %v799 = vand.u32 %v798, 4294901760
        %800 = vmatmul.mubr.f32.gmra.mxu0 %v799
        %v801 = vpop.f32.mrf.mxu0
        %v802 = vadd.f32 %v671, %v801
        %v803 = vpop.f32.mrf.mxu0
        %804 = vdwg.mxu0
        %805 = vmatprep.subr.mxu0 0.0
        %806 = vmatpush1.msra.mxu0 0.0
        %807 = vmatprep.subr.mxu0 0.0
        %808 = vmatpush1.msra.mxu0 0.0
        %809 = vmatprep.subr.mxu0 0.0
        %810 = vmatpush1.msra.mxu0 0.0
        %811 = vmatprep.subr.mxu0 0.0
        %812 = vmatpush1.msra.mxu0 0.0
        %813 = vmatprep.subr.mxu0 0.0
        %814 = vmatpush1.msra.mxu0 0.0
        %815 = vmatprep.subr.mxu0 0.0
        %816 = vmatpush1.msra.mxu0 0.0
        %817 = vmatprep.subr.mxu0 0.0
        %818 = vmatpush1.msra.mxu0 0.0
        %819 = vmatprep.subr.mxu0 0.0
        %820 = vmatpush1.msra.mxu0 0.0
        %821 = vmatprep.subr.mxu0 0.0
        %822 = vmatpush1.msra.mxu0 0.0
        %823 = vmatprep.subr.mxu0 0.0
        %824 = vmatpush1.msra.mxu0 0.0
        %825 = vmatprep.subr.mxu0 0.0
        %826 = vmatpush1.msra.mxu0 0.0
        %827 = vmatprep.subr.mxu0 0.0
        %828 = vmatpush1.msra.mxu0 0.0
        %829 = vmatprep.subr.mxu0 0.0
        %830 = vmatpush1.msra.mxu0 0.0
        %831 = vmatprep.subr.mxu0 0.0
        %832 = vmatpush1.msra.mxu0 0.0
        %833 = vmatprep.subr.mxu0 0.0
        %v834 = vand.u32 %v253, 4294901760
        %v835 = vsub.f32 %v253, %v834
        %v836 = vand.u32 %v835, 4294901760
        %837 = vmatpush1.msra.mxu0 %v836
        %838 = vmatprep.subr.mxu0 0.0
        %v839 = vand.u32 %v252, 4294901760
        %v840 = vsub.f32 %v252, %v839
        %v841 = vand.u32 %v840, 4294901760
        %842 = vmatpush1.msra.mxu0 %v841
        %843 = vmatprep.subr.mxu0 0.0
        %844 = vmatpush2.msra.mxu0 0.0
        %845 = vmatprep.subr.mxu0 0.0
        %846 = vmatpush2.msra.mxu0 0.0
        %847 = vmatprep.subr.mxu0 0.0
        %848 = vmatpush2.msra.mxu0 0.0
        %849 = vmatprep.subr.mxu0 0.0
        %850 = vmatpush2.msra.mxu0 0.0
        %851 = vmatprep.subr.mxu0 0.0
        %852 = vmatpush2.msra.mxu0 0.0
        %853 = vmatprep.subr.mxu0 0.0
        %854 = vmatpush2.msra.mxu0 0.0
        %855 = vmatprep.subr.mxu0 0.0
        %856 = vmatpush2.msra.mxu0 0.0
        %857 = vmatprep.subr.mxu0 0.0
        %858 = vmatpush2.msra.mxu0 0.0
        %859 = vmatprep.subr.mxu0 0.0
        %860 = vmatpush2.msra.mxu0 0.0
        %861 = vmatprep.subr.mxu0 0.0
        %862 = vmatpush2.msra.mxu0 0.0
        %863 = vmatprep.subr.mxu0 0.0
        %864 = vmatpush2.msra.mxu0 0.0
        %865 = vmatprep.subr.mxu0 0.0
        %866 = vmatpush2.msra.mxu0 0.0
        %867 = vmatprep.subr.mxu0 0.0
        %868 = vmatpush2.msra.mxu0 0.0
        %869 = vmatprep.subr.mxu0 0.0
        %870 = vmatpush2.msra.mxu0 0.0
        %871 = vmatprep.subr.mxu0 0.0
        %872 = vmatpush2.msra.mxu0 0.0
        %873 = vmatprep.subr.mxu0 0.0
        %874 = vmatpush2.msra.mxu0 0.0
        %875 = vmatprep.mubr.f32.mxu0 0.0
        %v876 = vand.u32 %v256, 4294901760
        %877 = vmatmul.mubr.f32.gmra.mxu0 %v876
        %v878 = vpop.f32.mrf.mxu0
        %v879 = vadd.f32 %v746, %v878
        %v880 = vpop.f32.mrf.mxu0
        %881 = vmatprep.mubr.f32.mxu0 0.0
        %v882 = vand.u32 %v259, 4294901760
        %883 = vmatmul.mubr.f32.gmra.mxu0 %v882
        %v884 = vpop.f32.mrf.mxu0
        %v885 = vadd.f32 %v754, %v884
        %v886 = vpop.f32.mrf.mxu0
        %887 = vmatprep.mubr.f32.mxu0 0.0
        %v888 = vand.u32 %v262, 4294901760
        %889 = vmatmul.mubr.f32.gmra.mxu0 %v888
        %v890 = vpop.f32.mrf.mxu0
        %v891 = vadd.f32 %v762, %v890
        %v892 = vpop.f32.mrf.mxu0
        %893 = vmatprep.mubr.f32.mxu0 0.0
        %v894 = vand.u32 %v265, 4294901760
        %895 = vmatmul.mubr.f32.gmra.mxu0 %v894
        %v896 = vpop.f32.mrf.mxu0
        %v897 = vadd.f32 %v770, %v896
        %v898 = vpop.f32.mrf.mxu0
        %899 = vmatprep.mubr.f32.mxu0 0.0
        %v900 = vand.u32 %v268, 4294901760
        %901 = vmatmul.mubr.f32.gmra.mxu0 %v900
        %v902 = vpop.f32.mrf.mxu0
        %v903 = vadd.f32 %v778, %v902
        %v904 = vpop.f32.mrf.mxu0
        %905 = vmatprep.mubr.f32.mxu0 0.0
        %v906 = vand.u32 %v271, 4294901760
        %907 = vmatmul.mubr.f32.gmra.mxu0 %v906
        %v908 = vpop.f32.mrf.mxu0
        %v909 = vadd.f32 %v786, %v908
        %v910 = vpop.f32.mrf.mxu0
        %911 = vmatprep.mubr.f32.mxu0 0.0
        %v912 = vand.u32 %v274, 4294901760
        %913 = vmatmul.mubr.f32.gmra.mxu0 %v912
        %v914 = vpop.f32.mrf.mxu0
        %v915 = vadd.f32 %v794, %v914
        %v916 = vpop.f32.mrf.mxu0
        %917 = vmatprep.mubr.f32.mxu0 0.0
        %v918 = vand.u32 %v277, 4294901760
        %919 = vmatmul.mubr.f32.gmra.mxu0 %v918
        %v920 = vpop.f32.mrf.mxu0
        %v921 = vadd.f32 %v802, %v920
        %v922 = vpop.f32.mrf.mxu0
        %923 = vdwg.mxu0
        %924 = vmatprep.subr.mxu0 0.0
        %925 = vmatpush1.msra.mxu0 0.0
        %926 = vmatprep.subr.mxu0 0.0
        %927 = vmatpush1.msra.mxu0 0.0
        %928 = vmatprep.subr.mxu0 0.0
        %929 = vmatpush1.msra.mxu0 0.0
        %930 = vmatprep.subr.mxu0 0.0
        %931 = vmatpush1.msra.mxu0 0.0
        %932 = vmatprep.subr.mxu0 0.0
        %933 = vmatpush1.msra.mxu0 0.0
        %934 = vmatprep.subr.mxu0 0.0
        %935 = vmatpush1.msra.mxu0 0.0
        %936 = vmatprep.subr.mxu0 0.0
        %937 = vmatpush1.msra.mxu0 0.0
        %938 = vmatprep.subr.mxu0 0.0
        %939 = vmatpush1.msra.mxu0 0.0
        %940 = vmatprep.subr.mxu0 0.0
        %941 = vmatpush1.msra.mxu0 0.0
        %942 = vmatprep.subr.mxu0 0.0
        %943 = vmatpush1.msra.mxu0 0.0
        %944 = vmatprep.subr.mxu0 0.0
        %945 = vmatpush1.msra.mxu0 0.0
        %946 = vmatprep.subr.mxu0 0.0
        %947 = vmatpush1.msra.mxu0 0.0
        %948 = vmatprep.subr.mxu0 0.0
        %949 = vmatpush1.msra.mxu0 0.0
        %950 = vmatprep.subr.mxu0 0.0
        %951 = vmatpush1.msra.mxu0 0.0
        %952 = vmatprep.subr.mxu0 0.0
        %v953 = vand.u32 %v253, 4294901760
        %954 = vmatpush1.msra.mxu0 %v953
        %955 = vmatprep.subr.mxu0 0.0
        %v956 = vand.u32 %v252, 4294901760
        %957 = vmatpush1.msra.mxu0 %v956
        %958 = vmatprep.subr.mxu0 0.0
        %959 = vmatpush2.msra.mxu0 0.0
        %960 = vmatprep.subr.mxu0 0.0
        %961 = vmatpush2.msra.mxu0 0.0
        %962 = vmatprep.subr.mxu0 0.0
        %963 = vmatpush2.msra.mxu0 0.0
        %964 = vmatprep.subr.mxu0 0.0
        %965 = vmatpush2.msra.mxu0 0.0
        %966 = vmatprep.subr.mxu0 0.0
        %967 = vmatpush2.msra.mxu0 0.0
        %968 = vmatprep.subr.mxu0 0.0
        %969 = vmatpush2.msra.mxu0 0.0
        %970 = vmatprep.subr.mxu0 0.0
        %971 = vmatpush2.msra.mxu0 0.0
        %972 = vmatprep.subr.mxu0 0.0
        %973 = vmatpush2.msra.mxu0 0.0
        %974 = vmatprep.subr.mxu0 0.0
        %975 = vmatpush2.msra.mxu0 0.0
        %976 = vmatprep.subr.mxu0 0.0
        %977 = vmatpush2.msra.mxu0 0.0
        %978 = vmatprep.subr.mxu0 0.0
        %979 = vmatpush2.msra.mxu0 0.0
        %980 = vmatprep.subr.mxu0 0.0
        %981 = vmatpush2.msra.mxu0 0.0
        %982 = vmatprep.subr.mxu0 0.0
        %983 = vmatpush2.msra.mxu0 0.0
        %984 = vmatprep.subr.mxu0 0.0
        %985 = vmatpush2.msra.mxu0 0.0
        %986 = vmatprep.subr.mxu0 0.0
        %987 = vmatpush2.msra.mxu0 0.0
        %988 = vmatprep.subr.mxu0 0.0
        %989 = vmatpush2.msra.mxu0 0.0
        %990 = vmatprep.mubr.f32.mxu0 0.0
        %v991 = vand.u32 %v256, 4294901760
        %992 = vmatmul.mubr.f32.gmra.mxu0 %v991
        %v993 = vpop.f32.mrf.mxu0
        %v994 = vadd.f32 %v879, %v993
        %v995 = vpop.f32.mrf.mxu0
        %996 = vmatprep.mubr.f32.mxu0 0.0
        %v997 = vand.u32 %v259, 4294901760
        %998 = vmatmul.mubr.f32.gmra.mxu0 %v997
        %v999 = vpop.f32.mrf.mxu0
        %v1000 = vadd.f32 %v885, %v999
        %v1001 = vpop.f32.mrf.mxu0
        %1002 = vmatprep.mubr.f32.mxu0 0.0
        %v1003 = vand.u32 %v262, 4294901760
        %1004 = vmatmul.mubr.f32.gmra.mxu0 %v1003
        %v1005 = vpop.f32.mrf.mxu0
        %v1006 = vadd.f32 %v891, %v1005
        %v1007 = vpop.f32.mrf.mxu0
        %1008 = vmatprep.mubr.f32.mxu0 0.0
        %v1009 = vand.u32 %v265, 4294901760
        %1010 = vmatmul.mubr.f32.gmra.mxu0 %v1009
        %v1011 = vpop.f32.mrf.mxu0
        %v1012 = vadd.f32 %v897, %v1011
        %v1013 = vpop.f32.mrf.mxu0
        %1014 = vmatprep.mubr.f32.mxu0 0.0
        %v1015 = vand.u32 %v268, 4294901760
        %1016 = vmatmul.mubr.f32.gmra.mxu0 %v1015
        %v1017 = vpop.f32.mrf.mxu0
        %v1018 = vadd.f32 %v903, %v1017
        %v1019 = vpop.f32.mrf.mxu0
        %1020 = vmatprep.mubr.f32.mxu0 0.0
        %v1021 = vand.u32 %v271, 4294901760
        %1022 = vmatmul.mubr.f32.gmra.mxu0 %v1021
        %v1023 = vpop.f32.mrf.mxu0
        %v1024 = vadd.f32 %v909, %v1023
        %v1025 = vpop.f32.mrf.mxu0
        %1026 = vmatprep.mubr.f32.mxu0 0.0
        %v1027 = vand.u32 %v274, 4294901760
        %1028 = vmatmul.mubr.f32.gmra.mxu0 %v1027
        %v1029 = vpop.f32.mrf.mxu0
        %v1030 = vadd.f32 %v915, %v1029
        %v1031 = vpop.f32.mrf.mxu0
        %1032 = vmatprep.mubr.f32.mxu0 0.0
        %v1033 = vand.u32 %v277, 4294901760
        %1034 = vmatmul.mubr.f32.gmra.mxu0 %v1033
        %v1035 = vpop.f32.mrf.mxu0
        %v1036 = vadd.f32 %v921, %v1035
        %v1037 = vpop.f32.mrf.mxu0
        %1038 = vdwg.mxu0
        %v1039 = vld [vmem:[%s239] sm:$0xff]
        %v1040 = vld [vmem:[%s239 + $0x8] sm:$0xff]
        %v1041 = vld [vmem:[%s239 + $0x10] sm:$0xff]
        %v1042 = vld [vmem:[%s239 + $0x18] sm:$0xff]
        %v1044 = vsel %vm254, %v1039, 0
        %v1047 = vsel %vm254, %v1040, 0
        %v1050 = vsel %vm254, %v1041, 0
        %v1053 = vsel %vm254, %v1042, 0
        %1055 = vmatprep.subr.mxu0 0.0
        %1056 = vmatpush1.msra.mxu0 0.0
        %1057 = vmatprep.subr.mxu0 0.0
        %1058 = vmatpush1.msra.mxu0 0.0
        %1059 = vmatprep.subr.mxu0 0.0
        %1060 = vmatpush1.msra.mxu0 0.0
        %1061 = vmatprep.subr.mxu0 0.0
        %1062 = vmatpush1.msra.mxu0 0.0
        %1063 = vmatprep.subr.mxu0 0.0
        %1064 = vmatpush1.msra.mxu0 0.0
        %1065 = vmatprep.subr.mxu0 0.0
        %1066 = vmatpush1.msra.mxu0 0.0
        %1067 = vmatprep.subr.mxu0 0.0
        %1068 = vmatpush1.msra.mxu0 0.0
        %1069 = vmatprep.subr.mxu0 0.0
        %1070 = vmatpush1.msra.mxu0 0.0
        %1071 = vmatprep.subr.mxu0 0.0
        %1072 = vmatpush1.msra.mxu0 0.0
        %1073 = vmatprep.subr.mxu0 0.0
        %1074 = vmatpush1.msra.mxu0 0.0
        %1075 = vmatprep.subr.mxu0 0.0
        %1076 = vmatpush1.msra.mxu0 0.0
        %1077 = vmatprep.subr.mxu0 0.0
        %1078 = vmatpush1.msra.mxu0 0.0
        %1079 = vmatprep.subr.mxu0 0.0
        %1080 = vmatpush1.msra.mxu0 0.0
        %1081 = vmatprep.subr.mxu0 0.0
        %1082 = vmatpush1.msra.mxu0 0.0
        %1083 = vmatprep.subr.mxu0 0.0
        %v1084 = vand.u32 %v1000, 4294901760
        %1085 = vmatpush1.msra.mxu0 %v1084
        %1086 = vmatprep.subr.mxu0 0.0
        %v1087 = vand.u32 %v994, 4294901760
        %1088 = vmatpush1.msra.mxu0 %v1087
        %1089 = vmatprep.subr.mxu0 0.0
        %1090 = vmatpush2.msra.mxu0 0.0
        %1091 = vmatprep.subr.mxu0 0.0
        %1092 = vmatpush2.msra.mxu0 0.0
        %1093 = vmatprep.subr.mxu0 0.0
        %1094 = vmatpush2.msra.mxu0 0.0
        %1095 = vmatprep.subr.mxu0 0.0
        %1096 = vmatpush2.msra.mxu0 0.0
        %1097 = vmatprep.subr.mxu0 0.0
        %1098 = vmatpush2.msra.mxu0 0.0
        %1099 = vmatprep.subr.mxu0 0.0
        %1100 = vmatpush2.msra.mxu0 0.0
        %1101 = vmatprep.subr.mxu0 0.0
        %1102 = vmatpush2.msra.mxu0 0.0
        %1103 = vmatprep.subr.mxu0 0.0
        %1104 = vmatpush2.msra.mxu0 0.0
        %1105 = vmatprep.subr.mxu0 0.0
        %1106 = vmatpush2.msra.mxu0 0.0
        %1107 = vmatprep.subr.mxu0 0.0
        %1108 = vmatpush2.msra.mxu0 0.0
        %1109 = vmatprep.subr.mxu0 0.0
        %1110 = vmatpush2.msra.mxu0 0.0
        %1111 = vmatprep.subr.mxu0 0.0
        %1112 = vmatpush2.msra.mxu0 0.0
        %1113 = vmatprep.subr.mxu0 0.0
        %1114 = vmatpush2.msra.mxu0 0.0
        %1115 = vmatprep.subr.mxu0 0.0
        %1116 = vmatpush2.msra.mxu0 0.0
        %1117 = vmatprep.subr.mxu0 0.0
        %1118 = vmatpush2.msra.mxu0 0.0
        %1119 = vmatprep.subr.mxu0 0.0
        %1120 = vmatpush2.msra.mxu0 0.0
        %1121 = vmatprep.mubr.f32.mxu0 0.0
        %v1122 = vand.u32 %v1044, 4294901760
        %v1123 = vsub.f32 %v1044, %v1122
        %v1124 = vand.u32 %v1123, 4294901760
        %v1125 = vsub.f32 %v1123, %v1124
        %v1126 = vand.u32 %v1125, 4294901760
        %1127 = vmatmul.mubr.f32.gmra.mxu0 %v1126
        %v1128 = vpop.f32.mrf.mxu0
        %v1129 = vadd.f32 0.0, %v1128
        %v1130 = vpop.f32.mrf.mxu0
        %1131 = vmatprep.mubr.f32.mxu0 0.0
        %v1132 = vand.u32 %v1047, 4294901760
        %v1133 = vsub.f32 %v1047, %v1132
        %v1134 = vand.u32 %v1133, 4294901760
        %v1135 = vsub.f32 %v1133, %v1134
        %v1136 = vand.u32 %v1135, 4294901760
        %1137 = vmatmul.mubr.f32.gmra.mxu0 %v1136
        %v1138 = vpop.f32.mrf.mxu0
        %v1139 = vadd.f32 0.0, %v1138
        %v1140 = vpop.f32.mrf.mxu0
        %1141 = vmatprep.mubr.f32.mxu0 0.0
        %v1142 = vand.u32 %v1050, 4294901760
        %v1143 = vsub.f32 %v1050, %v1142
        %v1144 = vand.u32 %v1143, 4294901760
        %v1145 = vsub.f32 %v1143, %v1144
        %v1146 = vand.u32 %v1145, 4294901760
        %1147 = vmatmul.mubr.f32.gmra.mxu0 %v1146
        %v1148 = vpop.f32.mrf.mxu0
        %v1149 = vadd.f32 0.0, %v1148
        %v1150 = vpop.f32.mrf.mxu0
        %1151 = vmatprep.mubr.f32.mxu0 0.0
        %v1152 = vand.u32 %v1053, 4294901760
        %v1153 = vsub.f32 %v1053, %v1152
        %v1154 = vand.u32 %v1153, 4294901760
        %v1155 = vsub.f32 %v1153, %v1154
        %v1156 = vand.u32 %v1155, 4294901760
        %1157 = vmatmul.mubr.f32.gmra.mxu0 %v1156
        %v1158 = vpop.f32.mrf.mxu0
        %v1159 = vadd.f32 0.0, %v1158
        %v1160 = vpop.f32.mrf.mxu0
        %1161 = vdwg.mxu0
        %1162 = vmatprep.subr.mxu0 0.0
        %1163 = vmatpush1.msra.mxu0 0.0
        %1164 = vmatprep.subr.mxu0 0.0
        %1165 = vmatpush1.msra.mxu0 0.0
        %1166 = vmatprep.subr.mxu0 0.0
        %1167 = vmatpush1.msra.mxu0 0.0
        %1168 = vmatprep.subr.mxu0 0.0
        %1169 = vmatpush1.msra.mxu0 0.0
        %1170 = vmatprep.subr.mxu0 0.0
        %1171 = vmatpush1.msra.mxu0 0.0
        %1172 = vmatprep.subr.mxu0 0.0
        %1173 = vmatpush1.msra.mxu0 0.0
        %1174 = vmatprep.subr.mxu0 0.0
        %1175 = vmatpush1.msra.mxu0 0.0
        %1176 = vmatprep.subr.mxu0 0.0
        %1177 = vmatpush1.msra.mxu0 0.0
        %1178 = vmatprep.subr.mxu0 0.0
        %1179 = vmatpush1.msra.mxu0 0.0
        %1180 = vmatprep.subr.mxu0 0.0
        %1181 = vmatpush1.msra.mxu0 0.0
        %1182 = vmatprep.subr.mxu0 0.0
        %1183 = vmatpush1.msra.mxu0 0.0
        %1184 = vmatprep.subr.mxu0 0.0
        %1185 = vmatpush1.msra.mxu0 0.0
        %1186 = vmatprep.subr.mxu0 0.0
        %1187 = vmatpush1.msra.mxu0 0.0
        %1188 = vmatprep.subr.mxu0 0.0
        %1189 = vmatpush1.msra.mxu0 0.0
        %1190 = vmatprep.subr.mxu0 0.0
        %v1191 = vand.u32 %v1000, 4294901760
        %v1192 = vsub.f32 %v1000, %v1191
        %v1193 = vand.u32 %v1192, 4294901760
        %v1194 = vsub.f32 %v1192, %v1193
        %v1195 = vand.u32 %v1194, 4294901760
        %1196 = vmatpush1.msra.mxu0 %v1195
        %1197 = vmatprep.subr.mxu0 0.0
        %v1198 = vand.u32 %v994, 4294901760
        %v1199 = vsub.f32 %v994, %v1198
        %v1200 = vand.u32 %v1199, 4294901760
        %v1201 = vsub.f32 %v1199, %v1200
        %v1202 = vand.u32 %v1201, 4294901760
        %1203 = vmatpush1.msra.mxu0 %v1202
        %1204 = vmatprep.subr.mxu0 0.0
        %1205 = vmatpush2.msra.mxu0 0.0
        %1206 = vmatprep.subr.mxu0 0.0
        %1207 = vmatpush2.msra.mxu0 0.0
        %1208 = vmatprep.subr.mxu0 0.0
        %1209 = vmatpush2.msra.mxu0 0.0
        %1210 = vmatprep.subr.mxu0 0.0
        %1211 = vmatpush2.msra.mxu0 0.0
        %1212 = vmatprep.subr.mxu0 0.0
        %1213 = vmatpush2.msra.mxu0 0.0
        %1214 = vmatprep.subr.mxu0 0.0
        %1215 = vmatpush2.msra.mxu0 0.0
        %1216 = vmatprep.subr.mxu0 0.0
        %1217 = vmatpush2.msra.mxu0 0.0
        %1218 = vmatprep.subr.mxu0 0.0
        %1219 = vmatpush2.msra.mxu0 0.0
        %1220 = vmatprep.subr.mxu0 0.0
        %1221 = vmatpush2.msra.mxu0 0.0
        %1222 = vmatprep.subr.mxu0 0.0
        %1223 = vmatpush2.msra.mxu0 0.0
        %1224 = vmatprep.subr.mxu0 0.0
        %1225 = vmatpush2.msra.mxu0 0.0
        %1226 = vmatprep.subr.mxu0 0.0
        %1227 = vmatpush2.msra.mxu0 0.0
        %1228 = vmatprep.subr.mxu0 0.0
        %1229 = vmatpush2.msra.mxu0 0.0
        %1230 = vmatprep.subr.mxu0 0.0
        %1231 = vmatpush2.msra.mxu0 0.0
        %1232 = vmatprep.subr.mxu0 0.0
        %1233 = vmatpush2.msra.mxu0 0.0
        %1234 = vmatprep.subr.mxu0 0.0
        %1235 = vmatpush2.msra.mxu0 0.0
        %1236 = vmatprep.mubr.f32.mxu0 0.0
        %v1237 = vand.u32 %v1044, 4294901760
        %1238 = vmatmul.mubr.f32.gmra.mxu0 %v1237
        %v1239 = vpop.f32.mrf.mxu0
        %v1240 = vadd.f32 %v1129, %v1239
        %v1241 = vpop.f32.mrf.mxu0
        %1242 = vmatprep.mubr.f32.mxu0 0.0
        %v1243 = vand.u32 %v1047, 4294901760
        %1244 = vmatmul.mubr.f32.gmra.mxu0 %v1243
        %v1245 = vpop.f32.mrf.mxu0
        %v1246 = vadd.f32 %v1139, %v1245
        %v1247 = vpop.f32.mrf.mxu0
        %1248 = vmatprep.mubr.f32.mxu0 0.0
        %v1249 = vand.u32 %v1050, 4294901760
        %1250 = vmatmul.mubr.f32.gmra.mxu0 %v1249
        %v1251 = vpop.f32.mrf.mxu0
        %v1252 = vadd.f32 %v1149, %v1251
        %v1253 = vpop.f32.mrf.mxu0
        %1254 = vmatprep.mubr.f32.mxu0 0.0
        %v1255 = vand.u32 %v1053, 4294901760
        %1256 = vmatmul.mubr.f32.gmra.mxu0 %v1255
        %v1257 = vpop.f32.mrf.mxu0
        %v1258 = vadd.f32 %v1159, %v1257
        %v1259 = vpop.f32.mrf.mxu0
        %1260 = vdwg.mxu0
        %1261 = vmatprep.subr.mxu0 0.0
        %1262 = vmatpush1.msra.mxu0 0.0
        %1263 = vmatprep.subr.mxu0 0.0
        %1264 = vmatpush1.msra.mxu0 0.0
        %1265 = vmatprep.subr.mxu0 0.0
        %1266 = vmatpush1.msra.mxu0 0.0
        %1267 = vmatprep.subr.mxu0 0.0
        %1268 = vmatpush1.msra.mxu0 0.0
        %1269 = vmatprep.subr.mxu0 0.0
        %1270 = vmatpush1.msra.mxu0 0.0
        %1271 = vmatprep.subr.mxu0 0.0
        %1272 = vmatpush1.msra.mxu0 0.0
        %1273 = vmatprep.subr.mxu0 0.0
        %1274 = vmatpush1.msra.mxu0 0.0
        %1275 = vmatprep.subr.mxu0 0.0
        %1276 = vmatpush1.msra.mxu0 0.0
        %1277 = vmatprep.subr.mxu0 0.0
        %1278 = vmatpush1.msra.mxu0 0.0
        %1279 = vmatprep.subr.mxu0 0.0
        %1280 = vmatpush1.msra.mxu0 0.0
        %1281 = vmatprep.subr.mxu0 0.0
        %1282 = vmatpush1.msra.mxu0 0.0
        %1283 = vmatprep.subr.mxu0 0.0
        %1284 = vmatpush1.msra.mxu0 0.0
        %1285 = vmatprep.subr.mxu0 0.0
        %1286 = vmatpush1.msra.mxu0 0.0
        %1287 = vmatprep.subr.mxu0 0.0
        %1288 = vmatpush1.msra.mxu0 0.0
        %1289 = vmatprep.subr.mxu0 0.0
        %v1290 = vand.u32 %v1000, 4294901760
        %v1291 = vsub.f32 %v1000, %v1290
        %1292 = vmatpush1.msra.mxu0 %v1291
        %1293 = vmatprep.subr.mxu0 0.0
        %v1294 = vand.u32 %v994, 4294901760
        %v1295 = vsub.f32 %v994, %v1294
        %1296 = vmatpush1.msra.mxu0 %v1295
        %1297 = vmatprep.subr.mxu0 0.0
        %1298 = vmatpush2.msra.mxu0 0.0
        %1299 = vmatprep.subr.mxu0 0.0
        %1300 = vmatpush2.msra.mxu0 0.0
        %1301 = vmatprep.subr.mxu0 0.0
        %1302 = vmatpush2.msra.mxu0 0.0
        %1303 = vmatprep.subr.mxu0 0.0
        %1304 = vmatpush2.msra.mxu0 0.0
        %1305 = vmatprep.subr.mxu0 0.0
        %1306 = vmatpush2.msra.mxu0 0.0
        %1307 = vmatprep.subr.mxu0 0.0
        %1308 = vmatpush2.msra.mxu0 0.0
        %1309 = vmatprep.subr.mxu0 0.0
        %1310 = vmatpush2.msra.mxu0 0.0
        %1311 = vmatprep.subr.mxu0 0.0
        %1312 = vmatpush2.msra.mxu0 0.0
        %1313 = vmatprep.subr.mxu0 0.0
        %1314 = vmatpush2.msra.mxu0 0.0
        %1315 = vmatprep.subr.mxu0 0.0
        %1316 = vmatpush2.msra.mxu0 0.0
        %1317 = vmatprep.subr.mxu0 0.0
        %1318 = vmatpush2.msra.mxu0 0.0
        %1319 = vmatprep.subr.mxu0 0.0
        %1320 = vmatpush2.msra.mxu0 0.0
        %1321 = vmatprep.subr.mxu0 0.0
        %1322 = vmatpush2.msra.mxu0 0.0
        %1323 = vmatprep.subr.mxu0 0.0
        %1324 = vmatpush2.msra.mxu0 0.0
        %1325 = vmatprep.subr.mxu0 0.0
        %1326 = vmatpush2.msra.mxu0 0.0
        %1327 = vmatprep.subr.mxu0 0.0
        %1328 = vmatpush2.msra.mxu0 0.0
        %1329 = vmatprep.mubr.f32.mxu0 0.0
        %v1330 = vand.u32 %v1044, 4294901760
        %v1331 = vsub.f32 %v1044, %v1330
        %1332 = vmatmul.mubr.f32.gmra.mxu0 %v1331
        %v1333 = vpop.f32.mrf.mxu0
        %v1334 = vadd.f32 %v1240, %v1333
        %v1335 = vpop.f32.mrf.mxu0
        %1336 = vmatprep.mubr.f32.mxu0 0.0
        %v1337 = vand.u32 %v1047, 4294901760
        %v1338 = vsub.f32 %v1047, %v1337
        %1339 = vmatmul.mubr.f32.gmra.mxu0 %v1338
        %v1340 = vpop.f32.mrf.mxu0
        %v1341 = vadd.f32 %v1246, %v1340
        %v1342 = vpop.f32.mrf.mxu0
        %1343 = vmatprep.mubr.f32.mxu0 0.0
        %v1344 = vand.u32 %v1050, 4294901760
        %v1345 = vsub.f32 %v1050, %v1344
        %1346 = vmatmul.mubr.f32.gmra.mxu0 %v1345
        %v1347 = vpop.f32.mrf.mxu0
        %v1348 = vadd.f32 %v1252, %v1347
        %v1349 = vpop.f32.mrf.mxu0
        %1350 = vmatprep.mubr.f32.mxu0 0.0
        %v1351 = vand.u32 %v1053, 4294901760
        %v1352 = vsub.f32 %v1053, %v1351
        %1353 = vmatmul.mubr.f32.gmra.mxu0 %v1352
        %v1354 = vpop.f32.mrf.mxu0
        %v1355 = vadd.f32 %v1258, %v1354
        %v1356 = vpop.f32.mrf.mxu0
        %1357 = vdwg.mxu0
        %1358 = vmatprep.subr.mxu0 0.0
        %1359 = vmatpush1.msra.mxu0 0.0
        %1360 = vmatprep.subr.mxu0 0.0
        %1361 = vmatpush1.msra.mxu0 0.0
        %1362 = vmatprep.subr.mxu0 0.0
        %1363 = vmatpush1.msra.mxu0 0.0
        %1364 = vmatprep.subr.mxu0 0.0
        %1365 = vmatpush1.msra.mxu0 0.0
        %1366 = vmatprep.subr.mxu0 0.0
        %1367 = vmatpush1.msra.mxu0 0.0
        %1368 = vmatprep.subr.mxu0 0.0
        %1369 = vmatpush1.msra.mxu0 0.0
        %1370 = vmatprep.subr.mxu0 0.0
        %1371 = vmatpush1.msra.mxu0 0.0
        %1372 = vmatprep.subr.mxu0 0.0
        %1373 = vmatpush1.msra.mxu0 0.0
        %1374 = vmatprep.subr.mxu0 0.0
        %1375 = vmatpush1.msra.mxu0 0.0
        %1376 = vmatprep.subr.mxu0 0.0
        %1377 = vmatpush1.msra.mxu0 0.0
        %1378 = vmatprep.subr.mxu0 0.0
        %1379 = vmatpush1.msra.mxu0 0.0
        %1380 = vmatprep.subr.mxu0 0.0
        %1381 = vmatpush1.msra.mxu0 0.0
        %1382 = vmatprep.subr.mxu0 0.0
        %1383 = vmatpush1.msra.mxu0 0.0
        %1384 = vmatprep.subr.mxu0 0.0
        %1385 = vmatpush1.msra.mxu0 0.0
        %1386 = vmatprep.subr.mxu0 0.0
        %v1387 = vand.u32 %v1000, 4294901760
        %1388 = vmatpush1.msra.mxu0 %v1387
        %1389 = vmatprep.subr.mxu0 0.0
        %v1390 = vand.u32 %v994, 4294901760
        %1391 = vmatpush1.msra.mxu0 %v1390
        %1392 = vmatprep.subr.mxu0 0.0
        %1393 = vmatpush2.msra.mxu0 0.0
        %1394 = vmatprep.subr.mxu0 0.0
        %1395 = vmatpush2.msra.mxu0 0.0
        %1396 = vmatprep.subr.mxu0 0.0
        %1397 = vmatpush2.msra.mxu0 0.0
        %1398 = vmatprep.subr.mxu0 0.0
        %1399 = vmatpush2.msra.mxu0 0.0
        %1400 = vmatprep.subr.mxu0 0.0
        %1401 = vmatpush2.msra.mxu0 0.0
        %1402 = vmatprep.subr.mxu0 0.0
        %1403 = vmatpush2.msra.mxu0 0.0
        %1404 = vmatprep.subr.mxu0 0.0
        %1405 = vmatpush2.msra.mxu0 0.0
        %1406 = vmatprep.subr.mxu0 0.0
        %1407 = vmatpush2.msra.mxu0 0.0
        %1408 = vmatprep.subr.mxu0 0.0
        %1409 = vmatpush2.msra.mxu0 0.0
        %1410 = vmatprep.subr.mxu0 0.0
        %1411 = vmatpush2.msra.mxu0 0.0
        %1412 = vmatprep.subr.mxu0 0.0
        %1413 = vmatpush2.msra.mxu0 0.0
        %1414 = vmatprep.subr.mxu0 0.0
        %1415 = vmatpush2.msra.mxu0 0.0
        %1416 = vmatprep.subr.mxu0 0.0
        %1417 = vmatpush2.msra.mxu0 0.0
        %1418 = vmatprep.subr.mxu0 0.0
        %1419 = vmatpush2.msra.mxu0 0.0
        %1420 = vmatprep.subr.mxu0 0.0
        %1421 = vmatpush2.msra.mxu0 0.0
        %1422 = vmatprep.subr.mxu0 0.0
        %1423 = vmatpush2.msra.mxu0 0.0
        %1424 = vmatprep.mubr.f32.mxu0 0.0
        %v1425 = vand.u32 %v1044, 4294901760
        %v1426 = vsub.f32 %v1044, %v1425
        %v1427 = vand.u32 %v1426, 4294901760
        %1428 = vmatmul.mubr.f32.gmra.mxu0 %v1427
        %v1429 = vpop.f32.mrf.mxu0
        %v1430 = vadd.f32 %v1334, %v1429
        %v1431 = vpop.f32.mrf.mxu0
        %1432 = vmatprep.mubr.f32.mxu0 0.0
        %v1433 = vand.u32 %v1047, 4294901760
        %v1434 = vsub.f32 %v1047, %v1433
        %v1435 = vand.u32 %v1434, 4294901760
        %1436 = vmatmul.mubr.f32.gmra.mxu0 %v1435
        %v1437 = vpop.f32.mrf.mxu0
        %v1438 = vadd.f32 %v1341, %v1437
        %v1439 = vpop.f32.mrf.mxu0
        %1440 = vmatprep.mubr.f32.mxu0 0.0
        %v1441 = vand.u32 %v1050, 4294901760
        %v1442 = vsub.f32 %v1050, %v1441
        %v1443 = vand.u32 %v1442, 4294901760
        %1444 = vmatmul.mubr.f32.gmra.mxu0 %v1443
        %v1445 = vpop.f32.mrf.mxu0
        %v1446 = vadd.f32 %v1348, %v1445
        %v1447 = vpop.f32.mrf.mxu0
        %1448 = vmatprep.mubr.f32.mxu0 0.0
        %v1449 = vand.u32 %v1053, 4294901760
        %v1450 = vsub.f32 %v1053, %v1449
        %v1451 = vand.u32 %v1450, 4294901760
        %1452 = vmatmul.mubr.f32.gmra.mxu0 %v1451
        %v1453 = vpop.f32.mrf.mxu0
        %v1454 = vadd.f32 %v1355, %v1453
        %v1455 = vpop.f32.mrf.mxu0
        %1456 = vdwg.mxu0
        %1457 = vmatprep.subr.mxu0 0.0
        %1458 = vmatpush1.msra.mxu0 0.0
        %1459 = vmatprep.subr.mxu0 0.0
        %1460 = vmatpush1.msra.mxu0 0.0
        %1461 = vmatprep.subr.mxu0 0.0
        %1462 = vmatpush1.msra.mxu0 0.0
        %1463 = vmatprep.subr.mxu0 0.0
        %1464 = vmatpush1.msra.mxu0 0.0
        %1465 = vmatprep.subr.mxu0 0.0
        %1466 = vmatpush1.msra.mxu0 0.0
        %1467 = vmatprep.subr.mxu0 0.0
        %1468 = vmatpush1.msra.mxu0 0.0
        %1469 = vmatprep.subr.mxu0 0.0
        %1470 = vmatpush1.msra.mxu0 0.0
        %1471 = vmatprep.subr.mxu0 0.0
        %1472 = vmatpush1.msra.mxu0 0.0
        %1473 = vmatprep.subr.mxu0 0.0
        %1474 = vmatpush1.msra.mxu0 0.0
        %1475 = vmatprep.subr.mxu0 0.0
        %1476 = vmatpush1.msra.mxu0 0.0
        %1477 = vmatprep.subr.mxu0 0.0
        %1478 = vmatpush1.msra.mxu0 0.0
        %1479 = vmatprep.subr.mxu0 0.0
        %1480 = vmatpush1.msra.mxu0 0.0
        %1481 = vmatprep.subr.mxu0 0.0
        %1482 = vmatpush1.msra.mxu0 0.0
        %1483 = vmatprep.subr.mxu0 0.0
        %1484 = vmatpush1.msra.mxu0 0.0
        %1485 = vmatprep.subr.mxu0 0.0
        %v1486 = vand.u32 %v1000, 4294901760
        %v1487 = vsub.f32 %v1000, %v1486
        %v1488 = vand.u32 %v1487, 4294901760
        %1489 = vmatpush1.msra.mxu0 %v1488
        %1490 = vmatprep.subr.mxu0 0.0
        %v1491 = vand.u32 %v994, 4294901760
        %v1492 = vsub.f32 %v994, %v1491
        %v1493 = vand.u32 %v1492, 4294901760
        %1494 = vmatpush1.msra.mxu0 %v1493
        %1495 = vmatprep.subr.mxu0 0.0
        %1496 = vmatpush2.msra.mxu0 0.0
        %1497 = vmatprep.subr.mxu0 0.0
        %1498 = vmatpush2.msra.mxu0 0.0
        %1499 = vmatprep.subr.mxu0 0.0
        %1500 = vmatpush2.msra.mxu0 0.0
        %1501 = vmatprep.subr.mxu0 0.0
        %1502 = vmatpush2.msra.mxu0 0.0
        %1503 = vmatprep.subr.mxu0 0.0
        %1504 = vmatpush2.msra.mxu0 0.0
        %1505 = vmatprep.subr.mxu0 0.0
        %1506 = vmatpush2.msra.mxu0 0.0
        %1507 = vmatprep.subr.mxu0 0.0
        %1508 = vmatpush2.msra.mxu0 0.0
        %1509 = vmatprep.subr.mxu0 0.0
        %1510 = vmatpush2.msra.mxu0 0.0
        %1511 = vmatprep.subr.mxu0 0.0
        %1512 = vmatpush2.msra.mxu0 0.0
        %1513 = vmatprep.subr.mxu0 0.0
        %1514 = vmatpush2.msra.mxu0 0.0
        %1515 = vmatprep.subr.mxu0 0.0
        %1516 = vmatpush2.msra.mxu0 0.0
        %1517 = vmatprep.subr.mxu0 0.0
        %1518 = vmatpush2.msra.mxu0 0.0
        %1519 = vmatprep.subr.mxu0 0.0
        %1520 = vmatpush2.msra.mxu0 0.0
        %1521 = vmatprep.subr.mxu0 0.0
        %1522 = vmatpush2.msra.mxu0 0.0
        %1523 = vmatprep.subr.mxu0 0.0
        %1524 = vmatpush2.msra.mxu0 0.0
        %1525 = vmatprep.subr.mxu0 0.0
        %1526 = vmatpush2.msra.mxu0 0.0
        %1527 = vmatprep.mubr.f32.mxu0 0.0
        %v1528 = vand.u32 %v1044, 4294901760
        %1529 = vmatmul.mubr.f32.gmra.mxu0 %v1528
        %v1530 = vpop.f32.mrf.mxu0
        %v1531 = vadd.f32 %v1430, %v1530
        %v1532 = vpop.f32.mrf.mxu0
        %1533 = vmatprep.mubr.f32.mxu0 0.0
        %v1534 = vand.u32 %v1047, 4294901760
        %1535 = vmatmul.mubr.f32.gmra.mxu0 %v1534
        %v1536 = vpop.f32.mrf.mxu0
        %v1537 = vadd.f32 %v1438, %v1536
        %v1538 = vpop.f32.mrf.mxu0
        %1539 = vmatprep.mubr.f32.mxu0 0.0
        %v1540 = vand.u32 %v1050, 4294901760
        %1541 = vmatmul.mubr.f32.gmra.mxu0 %v1540
        %v1542 = vpop.f32.mrf.mxu0
        %v1543 = vadd.f32 %v1446, %v1542
        %v1544 = vpop.f32.mrf.mxu0
        %1545 = vmatprep.mubr.f32.mxu0 0.0
        %v1546 = vand.u32 %v1053, 4294901760
        %1547 = vmatmul.mubr.f32.gmra.mxu0 %v1546
        %v1548 = vpop.f32.mrf.mxu0
        %v1549 = vadd.f32 %v1454, %v1548
        %v1550 = vpop.f32.mrf.mxu0
        %1551 = vdwg.mxu0
        %1552 = vmatprep.subr.mxu0 0.0
        %1553 = vmatpush1.msra.mxu0 0.0
        %1554 = vmatprep.subr.mxu0 0.0
        %1555 = vmatpush1.msra.mxu0 0.0
        %1556 = vmatprep.subr.mxu0 0.0
        %1557 = vmatpush1.msra.mxu0 0.0
        %1558 = vmatprep.subr.mxu0 0.0
        %1559 = vmatpush1.msra.mxu0 0.0
        %1560 = vmatprep.subr.mxu0 0.0
        %1561 = vmatpush1.msra.mxu0 0.0
        %1562 = vmatprep.subr.mxu0 0.0
        %1563 = vmatpush1.msra.mxu0 0.0
        %1564 = vmatprep.subr.mxu0 0.0
        %1565 = vmatpush1.msra.mxu0 0.0
        %1566 = vmatprep.subr.mxu0 0.0
        %1567 = vmatpush1.msra.mxu0 0.0
        %1568 = vmatprep.subr.mxu0 0.0
        %1569 = vmatpush1.msra.mxu0 0.0
        %1570 = vmatprep.subr.mxu0 0.0
        %1571 = vmatpush1.msra.mxu0 0.0
        %1572 = vmatprep.subr.mxu0 0.0
        %1573 = vmatpush1.msra.mxu0 0.0
        %1574 = vmatprep.subr.mxu0 0.0
        %1575 = vmatpush1.msra.mxu0 0.0
        %1576 = vmatprep.subr.mxu0 0.0
        %1577 = vmatpush1.msra.mxu0 0.0
        %1578 = vmatprep.subr.mxu0 0.0
        %1579 = vmatpush1.msra.mxu0 0.0
        %1580 = vmatprep.subr.mxu0 0.0
        %v1581 = vand.u32 %v1000, 4294901760
        %1582 = vmatpush1.msra.mxu0 %v1581
        %1583 = vmatprep.subr.mxu0 0.0
        %v1584 = vand.u32 %v994, 4294901760
        %1585 = vmatpush1.msra.mxu0 %v1584
        %1586 = vmatprep.subr.mxu0 0.0
        %1587 = vmatpush2.msra.mxu0 0.0
        %1588 = vmatprep.subr.mxu0 0.0
        %1589 = vmatpush2.msra.mxu0 0.0
        %1590 = vmatprep.subr.mxu0 0.0
        %1591 = vmatpush2.msra.mxu0 0.0
        %1592 = vmatprep.subr.mxu0 0.0
        %1593 = vmatpush2.msra.mxu0 0.0
        %1594 = vmatprep.subr.mxu0 0.0
        %1595 = vmatpush2.msra.mxu0 0.0
        %1596 = vmatprep.subr.mxu0 0.0
        %1597 = vmatpush2.msra.mxu0 0.0
        %1598 = vmatprep.subr.mxu0 0.0
        %1599 = vmatpush2.msra.mxu0 0.0
        %1600 = vmatprep.subr.mxu0 0.0
        %1601 = vmatpush2.msra.mxu0 0.0
        %1602 = vmatprep.subr.mxu0 0.0
        %1603 = vmatpush2.msra.mxu0 0.0
        %1604 = vmatprep.subr.mxu0 0.0
        %1605 = vmatpush2.msra.mxu0 0.0
        %1606 = vmatprep.subr.mxu0 0.0
        %1607 = vmatpush2.msra.mxu0 0.0
        %1608 = vmatprep.subr.mxu0 0.0
        %1609 = vmatpush2.msra.mxu0 0.0
        %1610 = vmatprep.subr.mxu0 0.0
        %1611 = vmatpush2.msra.mxu0 0.0
        %1612 = vmatprep.subr.mxu0 0.0
        %1613 = vmatpush2.msra.mxu0 0.0
        %1614 = vmatprep.subr.mxu0 0.0
        %1615 = vmatpush2.msra.mxu0 0.0
        %1616 = vmatprep.subr.mxu0 0.0
        %1617 = vmatpush2.msra.mxu0 0.0
        %1618 = vmatprep.mubr.f32.mxu0 0.0
        %v1619 = vand.u32 %v1044, 4294901760
        %1620 = vmatmul.mubr.f32.gmra.mxu0 %v1619
        %v1621 = vpop.f32.mrf.mxu0
        %v1622 = vadd.f32 %v1531, %v1621
        %v1623 = vpop.f32.mrf.mxu0
        %1624 = vmatprep.mubr.f32.mxu0 0.0
        %v1625 = vand.u32 %v1047, 4294901760
        %1626 = vmatmul.mubr.f32.gmra.mxu0 %v1625
        %v1627 = vpop.f32.mrf.mxu0
        %v1628 = vadd.f32 %v1537, %v1627
        %v1629 = vpop.f32.mrf.mxu0
        %1630 = vmatprep.mubr.f32.mxu0 0.0
        %v1631 = vand.u32 %v1050, 4294901760
        %1632 = vmatmul.mubr.f32.gmra.mxu0 %v1631
        %v1633 = vpop.f32.mrf.mxu0
        %v1634 = vadd.f32 %v1543, %v1633
        %v1635 = vpop.f32.mrf.mxu0
        %1636 = vmatprep.mubr.f32.mxu0 0.0
        %v1637 = vand.u32 %v1053, 4294901760
        %1638 = vmatmul.mubr.f32.gmra.mxu0 %v1637
        %v1639 = vpop.f32.mrf.mxu0
        %v1640 = vadd.f32 %v1549, %v1639
        %v1641 = vpop.f32.mrf.mxu0
        %1642 = vdwg.mxu0
        %vm1643 = vcmask 261120
        %1644 = vst.msk [vmem:[%s233] sm:$0xff] %vm1643, %v1622
        %1645 = vst.msk [vmem:[%s233 + $0x8] sm:$0xff] %vm1643, %v1628
        %1646 = vst.msk [vmem:[%s233 + $0x10] sm:$0xff] %vm1643, %v1634
        %1647 = vst.msk [vmem:[%s233 + $0x18] sm:$0xff] %vm1643, %v1640
        %1648 = vmatprep.subr.mxu0 0.0
        %1649 = vmatpush1.msra.mxu0 0.0
        %1650 = vmatprep.subr.mxu0 0.0
        %1651 = vmatpush1.msra.mxu0 0.0
        %1652 = vmatprep.subr.mxu0 0.0
        %1653 = vmatpush1.msra.mxu0 0.0
        %1654 = vmatprep.subr.mxu0 0.0
        %1655 = vmatpush1.msra.mxu0 0.0
        %1656 = vmatprep.subr.mxu0 0.0
        %1657 = vmatpush1.msra.mxu0 0.0
        %1658 = vmatprep.subr.mxu0 0.0
        %1659 = vmatpush1.msra.mxu0 0.0
        %1660 = vmatprep.subr.mxu0 0.0
        %1661 = vmatpush1.msra.mxu0 0.0
        %1662 = vmatprep.subr.mxu0 0.0
        %1663 = vmatpush1.msra.mxu0 0.0
        %1664 = vmatprep.subr.mxu0 0.0
        %1665 = vmatpush1.msra.mxu0 0.0
        %1666 = vmatprep.subr.mxu0 0.0
        %1667 = vmatpush1.msra.mxu0 0.0
        %1668 = vmatprep.subr.mxu0 0.0
        %1669 = vmatpush1.msra.mxu0 0.0
        %1670 = vmatprep.subr.mxu0 0.0
        %1671 = vmatpush1.msra.mxu0 0.0
        %1672 = vmatprep.subr.mxu0 0.0
        %1673 = vmatpush1.msra.mxu0 0.0
        %1674 = vmatprep.subr.mxu0 0.0
        %1675 = vmatpush1.msra.mxu0 0.0
        %1676 = vmatprep.subr.mxu0 0.0
        %v1677 = vand.u32 %v1012, 4294901760
        %1678 = vmatpush1.msra.mxu0 %v1677
        %1679 = vmatprep.subr.mxu0 0.0
        %v1680 = vand.u32 %v1006, 4294901760
        %1681 = vmatpush1.msra.mxu0 %v1680
        %1682 = vmatprep.subr.mxu0 0.0
        %1683 = vmatpush2.msra.mxu0 0.0
        %1684 = vmatprep.subr.mxu0 0.0
        %1685 = vmatpush2.msra.mxu0 0.0
        %1686 = vmatprep.subr.mxu0 0.0
        %1687 = vmatpush2.msra.mxu0 0.0
        %1688 = vmatprep.subr.mxu0 0.0
        %1689 = vmatpush2.msra.mxu0 0.0
        %1690 = vmatprep.subr.mxu0 0.0
        %1691 = vmatpush2.msra.mxu0 0.0
        %1692 = vmatprep.subr.mxu0 0.0
        %1693 = vmatpush2.msra.mxu0 0.0
        %1694 = vmatprep.subr.mxu0 0.0
        %1695 = vmatpush2.msra.mxu0 0.0
        %1696 = vmatprep.subr.mxu0 0.0
        %1697 = vmatpush2.msra.mxu0 0.0
        %1698 = vmatprep.subr.mxu0 0.0
        %1699 = vmatpush2.msra.mxu0 0.0
        %1700 = vmatprep.subr.mxu0 0.0
        %1701 = vmatpush2.msra.mxu0 0.0
        %1702 = vmatprep.subr.mxu0 0.0
        %1703 = vmatpush2.msra.mxu0 0.0
        %1704 = vmatprep.subr.mxu0 0.0
        %1705 = vmatpush2.msra.mxu0 0.0
        %1706 = vmatprep.subr.mxu0 0.0
        %1707 = vmatpush2.msra.mxu0 0.0
        %1708 = vmatprep.subr.mxu0 0.0
        %1709 = vmatpush2.msra.mxu0 0.0
        %1710 = vmatprep.subr.mxu0 0.0
        %1711 = vmatpush2.msra.mxu0 0.0
        %1712 = vmatprep.subr.mxu0 0.0
        %1713 = vmatpush2.msra.mxu0 0.0
        %1714 = vmatprep.mubr.f32.mxu0 0.0
        %v1715 = vand.u32 %v1044, 4294901760
        %v1716 = vsub.f32 %v1044, %v1715
        %v1717 = vand.u32 %v1716, 4294901760
        %v1718 = vsub.f32 %v1716, %v1717
        %v1719 = vand.u32 %v1718, 4294901760
        %1720 = vmatmul.mubr.f32.gmra.mxu0 %v1719
        %v1721 = vpop.f32.mrf.mxu0
        %v1722 = vadd.f32 0.0, %v1721
        %v1723 = vpop.f32.mrf.mxu0
        %1724 = vmatprep.mubr.f32.mxu0 0.0
        %v1725 = vand.u32 %v1047, 4294901760
        %v1726 = vsub.f32 %v1047, %v1725
        %v1727 = vand.u32 %v1726, 4294901760
        %v1728 = vsub.f32 %v1726, %v1727
        %v1729 = vand.u32 %v1728, 4294901760
        %1730 = vmatmul.mubr.f32.gmra.mxu0 %v1729
        %v1731 = vpop.f32.mrf.mxu0
        %v1732 = vadd.f32 0.0, %v1731
        %v1733 = vpop.f32.mrf.mxu0
        %1734 = vmatprep.mubr.f32.mxu0 0.0
        %v1735 = vand.u32 %v1050, 4294901760
        %v1736 = vsub.f32 %v1050, %v1735
        %v1737 = vand.u32 %v1736, 4294901760
        %v1738 = vsub.f32 %v1736, %v1737
        %v1739 = vand.u32 %v1738, 4294901760
        %1740 = vmatmul.mubr.f32.gmra.mxu0 %v1739
        %v1741 = vpop.f32.mrf.mxu0
        %v1742 = vadd.f32 0.0, %v1741
        %v1743 = vpop.f32.mrf.mxu0
        %1744 = vmatprep.mubr.f32.mxu0 0.0
        %v1745 = vand.u32 %v1053, 4294901760
        %v1746 = vsub.f32 %v1053, %v1745
        %v1747 = vand.u32 %v1746, 4294901760
        %v1748 = vsub.f32 %v1746, %v1747
        %v1749 = vand.u32 %v1748, 4294901760
        %1750 = vmatmul.mubr.f32.gmra.mxu0 %v1749
        %v1751 = vpop.f32.mrf.mxu0
        %v1752 = vadd.f32 0.0, %v1751
        %v1753 = vpop.f32.mrf.mxu0
        %1754 = vdwg.mxu0
        %1755 = vmatprep.subr.mxu0 0.0
        %1756 = vmatpush1.msra.mxu0 0.0
        %1757 = vmatprep.subr.mxu0 0.0
        %1758 = vmatpush1.msra.mxu0 0.0
        %1759 = vmatprep.subr.mxu0 0.0
        %1760 = vmatpush1.msra.mxu0 0.0
        %1761 = vmatprep.subr.mxu0 0.0
        %1762 = vmatpush1.msra.mxu0 0.0
        %1763 = vmatprep.subr.mxu0 0.0
        %1764 = vmatpush1.msra.mxu0 0.0
        %1765 = vmatprep.subr.mxu0 0.0
        %1766 = vmatpush1.msra.mxu0 0.0
        %1767 = vmatprep.subr.mxu0 0.0
        %1768 = vmatpush1.msra.mxu0 0.0
        %1769 = vmatprep.subr.mxu0 0.0
        %1770 = vmatpush1.msra.mxu0 0.0
        %1771 = vmatprep.subr.mxu0 0.0
        %1772 = vmatpush1.msra.mxu0 0.0
        %1773 = vmatprep.subr.mxu0 0.0
        %1774 = vmatpush1.msra.mxu0 0.0
        %1775 = vmatprep.subr.mxu0 0.0
        %1776 = vmatpush1.msra.mxu0 0.0
        %1777 = vmatprep.subr.mxu0 0.0
        %1778 = vmatpush1.msra.mxu0 0.0
        %1779 = vmatprep.subr.mxu0 0.0
        %1780 = vmatpush1.msra.mxu0 0.0
        %1781 = vmatprep.subr.mxu0 0.0
        %1782 = vmatpush1.msra.mxu0 0.0
        %1783 = vmatprep.subr.mxu0 0.0
        %v1784 = vand.u32 %v1012, 4294901760
        %v1785 = vsub.f32 %v1012, %v1784
        %v1786 = vand.u32 %v1785, 4294901760
        %v1787 = vsub.f32 %v1785, %v1786
        %v1788 = vand.u32 %v1787, 4294901760
        %1789 = vmatpush1.msra.mxu0 %v1788
        %1790 = vmatprep.subr.mxu0 0.0
        %v1791 = vand.u32 %v1006, 4294901760
        %v1792 = vsub.f32 %v1006, %v1791
        %v1793 = vand.u32 %v1792, 4294901760
        %v1794 = vsub.f32 %v1792, %v1793
        %v1795 = vand.u32 %v1794, 4294901760
        %1796 = vmatpush1.msra.mxu0 %v1795
        %1797 = vmatprep.subr.mxu0 0.0
        %1798 = vmatpush2.msra.mxu0 0.0
        %1799 = vmatprep.subr.mxu0 0.0
        %1800 = vmatpush2.msra.mxu0 0.0
        %1801 = vmatprep.subr.mxu0 0.0
        %1802 = vmatpush2.msra.mxu0 0.0
        %1803 = vmatprep.subr.mxu0 0.0
        %1804 = vmatpush2.msra.mxu0 0.0
        %1805 = vmatprep.subr.mxu0 0.0
        %1806 = vmatpush2.msra.mxu0 0.0
        %1807 = vmatprep.subr.mxu0 0.0
        %1808 = vmatpush2.msra.mxu0 0.0
        %1809 = vmatprep.subr.mxu0 0.0
        %1810 = vmatpush2.msra.mxu0 0.0
        %1811 = vmatprep.subr.mxu0 0.0
        %1812 = vmatpush2.msra.mxu0 0.0
        %1813 = vmatprep.subr.mxu0 0.0
        %1814 = vmatpush2.msra.mxu0 0.0
        %1815 = vmatprep.subr.mxu0 0.0
        %1816 = vmatpush2.msra.mxu0 0.0
        %1817 = vmatprep.subr.mxu0 0.0
        %1818 = vmatpush2.msra.mxu0 0.0
        %1819 = vmatprep.subr.mxu0 0.0
        %1820 = vmatpush2.msra.mxu0 0.0
        %1821 = vmatprep.subr.mxu0 0.0
        %1822 = vmatpush2.msra.mxu0 0.0
        %1823 = vmatprep.subr.mxu0 0.0
        %1824 = vmatpush2.msra.mxu0 0.0
        %1825 = vmatprep.subr.mxu0 0.0
        %1826 = vmatpush2.msra.mxu0 0.0
        %1827 = vmatprep.subr.mxu0 0.0
        %1828 = vmatpush2.msra.mxu0 0.0
        %1829 = vmatprep.mubr.f32.mxu0 0.0
        %v1830 = vand.u32 %v1044, 4294901760
        %1831 = vmatmul.mubr.f32.gmra.mxu0 %v1830
        %v1832 = vpop.f32.mrf.mxu0
        %v1833 = vadd.f32 %v1722, %v1832
        %v1834 = vpop.f32.mrf.mxu0
        %1835 = vmatprep.mubr.f32.mxu0 0.0
        %v1836 = vand.u32 %v1047, 4294901760
        %1837 = vmatmul.mubr.f32.gmra.mxu0 %v1836
        %v1838 = vpop.f32.mrf.mxu0
        %v1839 = vadd.f32 %v1732, %v1838
        %v1840 = vpop.f32.mrf.mxu0
        %1841 = vmatprep.mubr.f32.mxu0 0.0
        %v1842 = vand.u32 %v1050, 4294901760
        %1843 = vmatmul.mubr.f32.gmra.mxu0 %v1842
        %v1844 = vpop.f32.mrf.mxu0
        %v1845 = vadd.f32 %v1742, %v1844
        %v1846 = vpop.f32.mrf.mxu0
        %1847 = vmatprep.mubr.f32.mxu0 0.0
        %v1848 = vand.u32 %v1053, 4294901760
        %1849 = vmatmul.mubr.f32.gmra.mxu0 %v1848
        %v1850 = vpop.f32.mrf.mxu0
        %v1851 = vadd.f32 %v1752, %v1850
        %v1852 = vpop.f32.mrf.mxu0
        %1853 = vdwg.mxu0
        %1854 = vmatprep.subr.mxu0 0.0
        %1855 = vmatpush1.msra.mxu0 0.0
        %1856 = vmatprep.subr.mxu0 0.0
        %1857 = vmatpush1.msra.mxu0 0.0
        %1858 = vmatprep.subr.mxu0 0.0
        %1859 = vmatpush1.msra.mxu0 0.0
        %1860 = vmatprep.subr.mxu0 0.0
        %1861 = vmatpush1.msra.mxu0 0.0
        %1862 = vmatprep.subr.mxu0 0.0
        %1863 = vmatpush1.msra.mxu0 0.0
        %1864 = vmatprep.subr.mxu0 0.0
        %1865 = vmatpush1.msra.mxu0 0.0
        %1866 = vmatprep.subr.mxu0 0.0
        %1867 = vmatpush1.msra.mxu0 0.0
        %1868 = vmatprep.subr.mxu0 0.0
        %1869 = vmatpush1.msra.mxu0 0.0
        %1870 = vmatprep.subr.mxu0 0.0
        %1871 = vmatpush1.msra.mxu0 0.0
        %1872 = vmatprep.subr.mxu0 0.0
        %1873 = vmatpush1.msra.mxu0 0.0
        %1874 = vmatprep.subr.mxu0 0.0
        %1875 = vmatpush1.msra.mxu0 0.0
        %1876 = vmatprep.subr.mxu0 0.0
        %1877 = vmatpush1.msra.mxu0 0.0
        %1878 = vmatprep.subr.mxu0 0.0
        %1879 = vmatpush1.msra.mxu0 0.0
        %1880 = vmatprep.subr.mxu0 0.0
        %1881 = vmatpush1.msra.mxu0 0.0
        %1882 = vmatprep.subr.mxu0 0.0
        %v1883 = vand.u32 %v1012, 4294901760
        %v1884 = vsub.f32 %v1012, %v1883
        %1885 = vmatpush1.msra.mxu0 %v1884
        %1886 = vmatprep.subr.mxu0 0.0
        %v1887 = vand.u32 %v1006, 4294901760
        %v1888 = vsub.f32 %v1006, %v1887
        %1889 = vmatpush1.msra.mxu0 %v1888
        %1890 = vmatprep.subr.mxu0 0.0
        %1891 = vmatpush2.msra.mxu0 0.0
        %1892 = vmatprep.subr.mxu0 0.0
        %1893 = vmatpush2.msra.mxu0 0.0
        %1894 = vmatprep.subr.mxu0 0.0
        %1895 = vmatpush2.msra.mxu0 0.0
        %1896 = vmatprep.subr.mxu0 0.0
        %1897 = vmatpush2.msra.mxu0 0.0
        %1898 = vmatprep.subr.mxu0 0.0
        %1899 = vmatpush2.msra.mxu0 0.0
        %1900 = vmatprep.subr.mxu0 0.0
        %1901 = vmatpush2.msra.mxu0 0.0
        %1902 = vmatprep.subr.mxu0 0.0
        %1903 = vmatpush2.msra.mxu0 0.0
        %1904 = vmatprep.subr.mxu0 0.0
        %1905 = vmatpush2.msra.mxu0 0.0
        %1906 = vmatprep.subr.mxu0 0.0
        %1907 = vmatpush2.msra.mxu0 0.0
        %1908 = vmatprep.subr.mxu0 0.0
        %1909 = vmatpush2.msra.mxu0 0.0
        %1910 = vmatprep.subr.mxu0 0.0
        %1911 = vmatpush2.msra.mxu0 0.0
        %1912 = vmatprep.subr.mxu0 0.0
        %1913 = vmatpush2.msra.mxu0 0.0
        %1914 = vmatprep.subr.mxu0 0.0
        %1915 = vmatpush2.msra.mxu0 0.0
        %1916 = vmatprep.subr.mxu0 0.0
        %1917 = vmatpush2.msra.mxu0 0.0
        %1918 = vmatprep.subr.mxu0 0.0
        %1919 = vmatpush2.msra.mxu0 0.0
        %1920 = vmatprep.subr.mxu0 0.0
        %1921 = vmatpush2.msra.mxu0 0.0
        %1922 = vmatprep.mubr.f32.mxu0 0.0
        %v1923 = vand.u32 %v1044, 4294901760
        %v1924 = vsub.f32 %v1044, %v1923
        %1925 = vmatmul.mubr.f32.gmra.mxu0 %v1924
        %v1926 = vpop.f32.mrf.mxu0
        %v1927 = vadd.f32 %v1833, %v1926
        %v1928 = vpop.f32.mrf.mxu0
        %1929 = vmatprep.mubr.f32.mxu0 0.0
        %v1930 = vand.u32 %v1047, 4294901760
        %v1931 = vsub.f32 %v1047, %v1930
        %1932 = vmatmul.mubr.f32.gmra.mxu0 %v1931
        %v1933 = vpop.f32.mrf.mxu0
        %v1934 = vadd.f32 %v1839, %v1933
        %v1935 = vpop.f32.mrf.mxu0
        %1936 = vmatprep.mubr.f32.mxu0 0.0
        %v1937 = vand.u32 %v1050, 4294901760
        %v1938 = vsub.f32 %v1050, %v1937
        %1939 = vmatmul.mubr.f32.gmra.mxu0 %v1938
        %v1940 = vpop.f32.mrf.mxu0
        %v1941 = vadd.f32 %v1845, %v1940
        %v1942 = vpop.f32.mrf.mxu0
        %1943 = vmatprep.mubr.f32.mxu0 0.0
        %v1944 = vand.u32 %v1053, 4294901760
        %v1945 = vsub.f32 %v1053, %v1944
        %1946 = vmatmul.mubr.f32.gmra.mxu0 %v1945
        %v1947 = vpop.f32.mrf.mxu0
        %v1948 = vadd.f32 %v1851, %v1947
        %v1949 = vpop.f32.mrf.mxu0
        %1950 = vdwg.mxu0
        %1951 = vmatprep.subr.mxu0 0.0
        %1952 = vmatpush1.msra.mxu0 0.0
        %1953 = vmatprep.subr.mxu0 0.0
        %1954 = vmatpush1.msra.mxu0 0.0
        %1955 = vmatprep.subr.mxu0 0.0
        %1956 = vmatpush1.msra.mxu0 0.0
        %1957 = vmatprep.subr.mxu0 0.0
        %1958 = vmatpush1.msra.mxu0 0.0
        %1959 = vmatprep.subr.mxu0 0.0
        %1960 = vmatpush1.msra.mxu0 0.0
        %1961 = vmatprep.subr.mxu0 0.0
        %1962 = vmatpush1.msra.mxu0 0.0
        %1963 = vmatprep.subr.mxu0 0.0
        %1964 = vmatpush1.msra.mxu0 0.0
        %1965 = vmatprep.subr.mxu0 0.0
        %1966 = vmatpush1.msra.mxu0 0.0
        %1967 = vmatprep.subr.mxu0 0.0
        %1968 = vmatpush1.msra.mxu0 0.0
        %1969 = vmatprep.subr.mxu0 0.0
        %1970 = vmatpush1.msra.mxu0 0.0
        %1971 = vmatprep.subr.mxu0 0.0
        %1972 = vmatpush1.msra.mxu0 0.0
        %1973 = vmatprep.subr.mxu0 0.0
        %1974 = vmatpush1.msra.mxu0 0.0
        %1975 = vmatprep.subr.mxu0 0.0
        %1976 = vmatpush1.msra.mxu0 0.0
        %1977 = vmatprep.subr.mxu0 0.0
        %1978 = vmatpush1.msra.mxu0 0.0
        %1979 = vmatprep.subr.mxu0 0.0
        %v1980 = vand.u32 %v1012, 4294901760
        %1981 = vmatpush1.msra.mxu0 %v1980
        %1982 = vmatprep.subr.mxu0 0.0
        %v1983 = vand.u32 %v1006, 4294901760
        %1984 = vmatpush1.msra.mxu0 %v1983
        %1985 = vmatprep.subr.mxu0 0.0
        %1986 = vmatpush2.msra.mxu0 0.0
        %1987 = vmatprep.subr.mxu0 0.0
        %1988 = vmatpush2.msra.mxu0 0.0
        %1989 = vmatprep.subr.mxu0 0.0
        %1990 = vmatpush2.msra.mxu0 0.0
        %1991 = vmatprep.subr.mxu0 0.0
        %1992 = vmatpush2.msra.mxu0 0.0
        %1993 = vmatprep.subr.mxu0 0.0
        %1994 = vmatpush2.msra.mxu0 0.0
        %1995 = vmatprep.subr.mxu0 0.0
        %1996 = vmatpush2.msra.mxu0 0.0
        %1997 = vmatprep.subr.mxu0 0.0
        %1998 = vmatpush2.msra.mxu0 0.0
        %1999 = vmatprep.subr.mxu0 0.0
        %2000 = vmatpush2.msra.mxu0 0.0
        %2001 = vmatprep.subr.mxu0 0.0
        %2002 = vmatpush2.msra.mxu0 0.0
        %2003 = vmatprep.subr.mxu0 0.0
        %2004 = vmatpush2.msra.mxu0 0.0
        %2005 = vmatprep.subr.mxu0 0.0
        %2006 = vmatpush2.msra.mxu0 0.0
        %2007 = vmatprep.subr.mxu0 0.0
        %2008 = vmatpush2.msra.mxu0 0.0
        %2009 = vmatprep.subr.mxu0 0.0
        %2010 = vmatpush2.msra.mxu0 0.0
        %2011 = vmatprep.subr.mxu0 0.0
        %2012 = vmatpush2.msra.mxu0 0.0
        %2013 = vmatprep.subr.mxu0 0.0
        %2014 = vmatpush2.msra.mxu0 0.0
        %2015 = vmatprep.subr.mxu0 0.0
        %2016 = vmatpush2.msra.mxu0 0.0
        %2017 = vmatprep.mubr.f32.mxu0 0.0
        %v2018 = vand.u32 %v1044, 4294901760
        %v2019 = vsub.f32 %v1044, %v2018
        %v2020 = vand.u32 %v2019, 4294901760
        %2021 = vmatmul.mubr.f32.gmra.mxu0 %v2020
        %v2022 = vpop.f32.mrf.mxu0
        %v2023 = vadd.f32 %v1927, %v2022
        %v2024 = vpop.f32.mrf.mxu0
        %2025 = vmatprep.mubr.f32.mxu0 0.0
        %v2026 = vand.u32 %v1047, 4294901760
        %v2027 = vsub.f32 %v1047, %v2026
        %v2028 = vand.u32 %v2027, 4294901760
        %2029 = vmatmul.mubr.f32.gmra.mxu0 %v2028
        %v2030 = vpop.f32.mrf.mxu0
        %v2031 = vadd.f32 %v1934, %v2030
        %v2032 = vpop.f32.mrf.mxu0
        %2033 = vmatprep.mubr.f32.mxu0 0.0
        %v2034 = vand.u32 %v1050, 4294901760
        %v2035 = vsub.f32 %v1050, %v2034
        %v2036 = vand.u32 %v2035, 4294901760
        %2037 = vmatmul.mubr.f32.gmra.mxu0 %v2036
        %v2038 = vpop.f32.mrf.mxu0
        %v2039 = vadd.f32 %v1941, %v2038
        %v2040 = vpop.f32.mrf.mxu0
        %2041 = vmatprep.mubr.f32.mxu0 0.0
        %v2042 = vand.u32 %v1053, 4294901760
        %v2043 = vsub.f32 %v1053, %v2042
        %v2044 = vand.u32 %v2043, 4294901760
        %2045 = vmatmul.mubr.f32.gmra.mxu0 %v2044
        %v2046 = vpop.f32.mrf.mxu0
        %v2047 = vadd.f32 %v1948, %v2046
        %v2048 = vpop.f32.mrf.mxu0
        %2049 = vdwg.mxu0
        %2050 = vmatprep.subr.mxu0 0.0
        %2051 = vmatpush1.msra.mxu0 0.0
        %2052 = vmatprep.subr.mxu0 0.0
        %2053 = vmatpush1.msra.mxu0 0.0
        %2054 = vmatprep.subr.mxu0 0.0
        %2055 = vmatpush1.msra.mxu0 0.0
        %2056 = vmatprep.subr.mxu0 0.0
        %2057 = vmatpush1.msra.mxu0 0.0
        %2058 = vmatprep.subr.mxu0 0.0
        %2059 = vmatpush1.msra.mxu0 0.0
        %2060 = vmatprep.subr.mxu0 0.0
        %2061 = vmatpush1.msra.mxu0 0.0
        %2062 = vmatprep.subr.mxu0 0.0
        %2063 = vmatpush1.msra.mxu0 0.0
        %2064 = vmatprep.subr.mxu0 0.0
        %2065 = vmatpush1.msra.mxu0 0.0
        %2066 = vmatprep.subr.mxu0 0.0
        %2067 = vmatpush1.msra.mxu0 0.0
        %2068 = vmatprep.subr.mxu0 0.0
        %2069 = vmatpush1.msra.mxu0 0.0
        %2070 = vmatprep.subr.mxu0 0.0
        %2071 = vmatpush1.msra.mxu0 0.0
        %2072 = vmatprep.subr.mxu0 0.0
        %2073 = vmatpush1.msra.mxu0 0.0
        %2074 = vmatprep.subr.mxu0 0.0
        %2075 = vmatpush1.msra.mxu0 0.0
        %2076 = vmatprep.subr.mxu0 0.0
        %2077 = vmatpush1.msra.mxu0 0.0
        %2078 = vmatprep.subr.mxu0 0.0
        %v2079 = vand.u32 %v1012, 4294901760
        %v2080 = vsub.f32 %v1012, %v2079
        %v2081 = vand.u32 %v2080, 4294901760
        %2082 = vmatpush1.msra.mxu0 %v2081
        %2083 = vmatprep.subr.mxu0 0.0
        %v2084 = vand.u32 %v1006, 4294901760
        %v2085 = vsub.f32 %v1006, %v2084
        %v2086 = vand.u32 %v2085, 4294901760
        %2087 = vmatpush1.msra.mxu0 %v2086
        %2088 = vmatprep.subr.mxu0 0.0
        %2089 = vmatpush2.msra.mxu0 0.0
        %2090 = vmatprep.subr.mxu0 0.0
        %2091 = vmatpush2.msra.mxu0 0.0
        %2092 = vmatprep.subr.mxu0 0.0
        %2093 = vmatpush2.msra.mxu0 0.0
        %2094 = vmatprep.subr.mxu0 0.0
        %2095 = vmatpush2.msra.mxu0 0.0
        %2096 = vmatprep.subr.mxu0 0.0
        %2097 = vmatpush2.msra.mxu0 0.0
        %2098 = vmatprep.subr.mxu0 0.0
        %2099 = vmatpush2.msra.mxu0 0.0
        %2100 = vmatprep.subr.mxu0 0.0
        %2101 = vmatpush2.msra.mxu0 0.0
        %2102 = vmatprep.subr.mxu0 0.0
        %2103 = vmatpush2.msra.mxu0 0.0
        %2104 = vmatprep.subr.mxu0 0.0
        %2105 = vmatpush2.msra.mxu0 0.0
        %2106 = vmatprep.subr.mxu0 0.0
        %2107 = vmatpush2.msra.mxu0 0.0
        %2108 = vmatprep.subr.mxu0 0.0
        %2109 = vmatpush2.msra.mxu0 0.0
        %2110 = vmatprep.subr.mxu0 0.0
        %2111 = vmatpush2.msra.mxu0 0.0
        %2112 = vmatprep.subr.mxu0 0.0
        %2113 = vmatpush2.msra.mxu0 0.0
        %2114 = vmatprep.subr.mxu0 0.0
        %2115 = vmatpush2.msra.mxu0 0.0
        %2116 = vmatprep.subr.mxu0 0.0
        %2117 = vmatpush2.msra.mxu0 0.0
        %2118 = vmatprep.subr.mxu0 0.0
        %2119 = vmatpush2.msra.mxu0 0.0
        %2120 = vmatprep.mubr.f32.mxu0 0.0
        %v2121 = vand.u32 %v1044, 4294901760
        %2122 = vmatmul.mubr.f32.gmra.mxu0 %v2121
        %v2123 = vpop.f32.mrf.mxu0
        %v2124 = vadd.f32 %v2023, %v2123
        %v2125 = vpop.f32.mrf.mxu0
        %2126 = vmatprep.mubr.f32.mxu0 0.0
        %v2127 = vand.u32 %v1047, 4294901760
        %2128 = vmatmul.mubr.f32.gmra.mxu0 %v2127
        %v2129 = vpop.f32.mrf.mxu0
        %v2130 = vadd.f32 %v2031, %v2129
        %v2131 = vpop.f32.mrf.mxu0
        %2132 = vmatprep.mubr.f32.mxu0 0.0
        %v2133 = vand.u32 %v1050, 4294901760
        %2134 = vmatmul.mubr.f32.gmra.mxu0 %v2133
        %v2135 = vpop.f32.mrf.mxu0
        %v2136 = vadd.f32 %v2039, %v2135
        %v2137 = vpop.f32.mrf.mxu0
        %2138 = vmatprep.mubr.f32.mxu0 0.0
        %v2139 = vand.u32 %v1053, 4294901760
        %2140 = vmatmul.mubr.f32.gmra.mxu0 %v2139
        %v2141 = vpop.f32.mrf.mxu0
        %v2142 = vadd.f32 %v2047, %v2141
        %v2143 = vpop.f32.mrf.mxu0
        %2144 = vdwg.mxu0
        %2145 = vmatprep.subr.mxu0 0.0
        %2146 = vmatpush1.msra.mxu0 0.0
        %2147 = vmatprep.subr.mxu0 0.0
        %2148 = vmatpush1.msra.mxu0 0.0
        %2149 = vmatprep.subr.mxu0 0.0
        %2150 = vmatpush1.msra.mxu0 0.0
        %2151 = vmatprep.subr.mxu0 0.0
        %2152 = vmatpush1.msra.mxu0 0.0
        %2153 = vmatprep.subr.mxu0 0.0
        %2154 = vmatpush1.msra.mxu0 0.0
        %2155 = vmatprep.subr.mxu0 0.0
        %2156 = vmatpush1.msra.mxu0 0.0
        %2157 = vmatprep.subr.mxu0 0.0
        %2158 = vmatpush1.msra.mxu0 0.0
        %2159 = vmatprep.subr.mxu0 0.0
        %2160 = vmatpush1.msra.mxu0 0.0
        %2161 = vmatprep.subr.mxu0 0.0
        %2162 = vmatpush1.msra.mxu0 0.0
        %2163 = vmatprep.subr.mxu0 0.0
        %2164 = vmatpush1.msra.mxu0 0.0
        %2165 = vmatprep.subr.mxu0 0.0
        %2166 = vmatpush1.msra.mxu0 0.0
        %2167 = vmatprep.subr.mxu0 0.0
        %2168 = vmatpush1.msra.mxu0 0.0
        %2169 = vmatprep.subr.mxu0 0.0
        %2170 = vmatpush1.msra.mxu0 0.0
        %2171 = vmatprep.subr.mxu0 0.0
        %2172 = vmatpush1.msra.mxu0 0.0
        %2173 = vmatprep.subr.mxu0 0.0
        %v2174 = vand.u32 %v1012, 4294901760
        %2175 = vmatpush1.msra.mxu0 %v2174
        %2176 = vmatprep.subr.mxu0 0.0
        %v2177 = vand.u32 %v1006, 4294901760
        %2178 = vmatpush1.msra.mxu0 %v2177
        %2179 = vmatprep.subr.mxu0 0.0
        %2180 = vmatpush2.msra.mxu0 0.0
        %2181 = vmatprep.subr.mxu0 0.0
        %2182 = vmatpush2.msra.mxu0 0.0
        %2183 = vmatprep.subr.mxu0 0.0
        %2184 = vmatpush2.msra.mxu0 0.0
        %2185 = vmatprep.subr.mxu0 0.0
        %2186 = vmatpush2.msra.mxu0 0.0
        %2187 = vmatprep.subr.mxu0 0.0
        %2188 = vmatpush2.msra.mxu0 0.0
        %2189 = vmatprep.subr.mxu0 0.0
        %2190 = vmatpush2.msra.mxu0 0.0
        %2191 = vmatprep.subr.mxu0 0.0
        %2192 = vmatpush2.msra.mxu0 0.0
        %2193 = vmatprep.subr.mxu0 0.0
        %2194 = vmatpush2.msra.mxu0 0.0
        %2195 = vmatprep.subr.mxu0 0.0
        %2196 = vmatpush2.msra.mxu0 0.0
        %2197 = vmatprep.subr.mxu0 0.0
        %2198 = vmatpush2.msra.mxu0 0.0
        %2199 = vmatprep.subr.mxu0 0.0
        %2200 = vmatpush2.msra.mxu0 0.0
        %2201 = vmatprep.subr.mxu0 0.0
        %2202 = vmatpush2.msra.mxu0 0.0
        %2203 = vmatprep.subr.mxu0 0.0
        %2204 = vmatpush2.msra.mxu0 0.0
        %2205 = vmatprep.subr.mxu0 0.0
        %2206 = vmatpush2.msra.mxu0 0.0
        %2207 = vmatprep.subr.mxu0 0.0
        %2208 = vmatpush2.msra.mxu0 0.0
        %2209 = vmatprep.subr.mxu0 0.0
        %2210 = vmatpush2.msra.mxu0 0.0
        %2211 = vmatprep.mubr.f32.mxu0 0.0
        %v2212 = vand.u32 %v1044, 4294901760
        %2213 = vmatmul.mubr.f32.gmra.mxu0 %v2212
        %v2214 = vpop.f32.mrf.mxu0
        %v2215 = vadd.f32 %v2124, %v2214
        %v2216 = vpop.f32.mrf.mxu0
        %2217 = vmatprep.mubr.f32.mxu0 0.0
        %v2218 = vand.u32 %v1047, 4294901760
        %2219 = vmatmul.mubr.f32.gmra.mxu0 %v2218
        %v2220 = vpop.f32.mrf.mxu0
        %v2221 = vadd.f32 %v2130, %v2220
        %v2222 = vpop.f32.mrf.mxu0
        %2223 = vmatprep.mubr.f32.mxu0 0.0
        %v2224 = vand.u32 %v1050, 4294901760
        %2225 = vmatmul.mubr.f32.gmra.mxu0 %v2224
        %v2226 = vpop.f32.mrf.mxu0
        %v2227 = vadd.f32 %v2136, %v2226
        %v2228 = vpop.f32.mrf.mxu0
        %2229 = vmatprep.mubr.f32.mxu0 0.0
        %v2230 = vand.u32 %v1053, 4294901760
        %2231 = vmatmul.mubr.f32.gmra.mxu0 %v2230
        %v2232 = vpop.f32.mrf.mxu0
        %v2233 = vadd.f32 %v2142, %v2232
        %v2234 = vpop.f32.mrf.mxu0
        %2235 = vdwg.mxu0
        %s2236 = scalar_lea.vmem %s233, 32 [#allocation7]
        %2237 = vst.msk [vmem:[%s2236] sm:$0xff] %vm1643, %v2215
        %2238 = vst.msk [vmem:[%s2236 + $0x8] sm:$0xff] %vm1643, %v2221
        %2239 = vst.msk [vmem:[%s2236 + $0x10] sm:$0xff] %vm1643, %v2227
        %2240 = vst.msk [vmem:[%s2236 + $0x18] sm:$0xff] %vm1643, %v2233
        %2241 = vmatprep.subr.mxu0 0.0
        %2242 = vmatpush1.msra.mxu0 0.0
        %2243 = vmatprep.subr.mxu0 0.0
        %2244 = vmatpush1.msra.mxu0 0.0
        %2245 = vmatprep.subr.mxu0 0.0
        %2246 = vmatpush1.msra.mxu0 0.0
        %2247 = vmatprep.subr.mxu0 0.0
        %2248 = vmatpush1.msra.mxu0 0.0
        %2249 = vmatprep.subr.mxu0 0.0
        %2250 = vmatpush1.msra.mxu0 0.0
        %2251 = vmatprep.subr.mxu0 0.0
        %2252 = vmatpush1.msra.mxu0 0.0
        %2253 = vmatprep.subr.mxu0 0.0
        %2254 = vmatpush1.msra.mxu0 0.0
        %2255 = vmatprep.subr.mxu0 0.0
        %2256 = vmatpush1.msra.mxu0 0.0
        %2257 = vmatprep.subr.mxu0 0.0
        %2258 = vmatpush1.msra.mxu0 0.0
        %2259 = vmatprep.subr.mxu0 0.0
        %2260 = vmatpush1.msra.mxu0 0.0
        %2261 = vmatprep.subr.mxu0 0.0
        %2262 = vmatpush1.msra.mxu0 0.0
        %2263 = vmatprep.subr.mxu0 0.0
        %2264 = vmatpush1.msra.mxu0 0.0
        %2265 = vmatprep.subr.mxu0 0.0
        %2266 = vmatpush1.msra.mxu0 0.0
        %2267 = vmatprep.subr.mxu0 0.0
        %2268 = vmatpush1.msra.mxu0 0.0
        %2269 = vmatprep.subr.mxu0 0.0
        %v2270 = vand.u32 %v1024, 4294901760
        %2271 = vmatpush1.msra.mxu0 %v2270
        %2272 = vmatprep.subr.mxu0 0.0
        %v2273 = vand.u32 %v1018, 4294901760
        %2274 = vmatpush1.msra.mxu0 %v2273
        %2275 = vmatprep.subr.mxu0 0.0
        %2276 = vmatpush2.msra.mxu0 0.0
        %2277 = vmatprep.subr.mxu0 0.0
        %2278 = vmatpush2.msra.mxu0 0.0
        %2279 = vmatprep.subr.mxu0 0.0
        %2280 = vmatpush2.msra.mxu0 0.0
        %2281 = vmatprep.subr.mxu0 0.0
        %2282 = vmatpush2.msra.mxu0 0.0
        %2283 = vmatprep.subr.mxu0 0.0
        %2284 = vmatpush2.msra.mxu0 0.0
        %2285 = vmatprep.subr.mxu0 0.0
        %2286 = vmatpush2.msra.mxu0 0.0
        %2287 = vmatprep.subr.mxu0 0.0
        %2288 = vmatpush2.msra.mxu0 0.0
        %2289 = vmatprep.subr.mxu0 0.0
        %2290 = vmatpush2.msra.mxu0 0.0
        %2291 = vmatprep.subr.mxu0 0.0
        %2292 = vmatpush2.msra.mxu0 0.0
        %2293 = vmatprep.subr.mxu0 0.0
        %2294 = vmatpush2.msra.mxu0 0.0
        %2295 = vmatprep.subr.mxu0 0.0
        %2296 = vmatpush2.msra.mxu0 0.0
        %2297 = vmatprep.subr.mxu0 0.0
        %2298 = vmatpush2.msra.mxu0 0.0
        %2299 = vmatprep.subr.mxu0 0.0
        %2300 = vmatpush2.msra.mxu0 0.0
        %2301 = vmatprep.subr.mxu0 0.0
        %2302 = vmatpush2.msra.mxu0 0.0
        %2303 = vmatprep.subr.mxu0 0.0
        %2304 = vmatpush2.msra.mxu0 0.0
        %2305 = vmatprep.subr.mxu0 0.0
        %2306 = vmatpush2.msra.mxu0 0.0
        %2307 = vmatprep.mubr.f32.mxu0 0.0
        %v2308 = vand.u32 %v1044, 4294901760
        %v2309 = vsub.f32 %v1044, %v2308
        %v2310 = vand.u32 %v2309, 4294901760
        %v2311 = vsub.f32 %v2309, %v2310
        %v2312 = vand.u32 %v2311, 4294901760
        %2313 = vmatmul.mubr.f32.gmra.mxu0 %v2312
        %v2314 = vpop.f32.mrf.mxu0
        %v2315 = vadd.f32 0.0, %v2314
        %v2316 = vpop.f32.mrf.mxu0
        %2317 = vmatprep.mubr.f32.mxu0 0.0
        %v2318 = vand.u32 %v1047, 4294901760
        %v2319 = vsub.f32 %v1047, %v2318
        %v2320 = vand.u32 %v2319, 4294901760
        %v2321 = vsub.f32 %v2319, %v2320
        %v2322 = vand.u32 %v2321, 4294901760
        %2323 = vmatmul.mubr.f32.gmra.mxu0 %v2322
        %v2324 = vpop.f32.mrf.mxu0
        %v2325 = vadd.f32 0.0, %v2324
        %v2326 = vpop.f32.mrf.mxu0
        %2327 = vmatprep.mubr.f32.mxu0 0.0
        %v2328 = vand.u32 %v1050, 4294901760
        %v2329 = vsub.f32 %v1050, %v2328
        %v2330 = vand.u32 %v2329, 4294901760
        %v2331 = vsub.f32 %v2329, %v2330
        %v2332 = vand.u32 %v2331, 4294901760
        %2333 = vmatmul.mubr.f32.gmra.mxu0 %v2332
        %v2334 = vpop.f32.mrf.mxu0
        %v2335 = vadd.f32 0.0, %v2334
        %v2336 = vpop.f32.mrf.mxu0
        %2337 = vmatprep.mubr.f32.mxu0 0.0
        %v2338 = vand.u32 %v1053, 4294901760
        %v2339 = vsub.f32 %v1053, %v2338
        %v2340 = vand.u32 %v2339, 4294901760
        %v2341 = vsub.f32 %v2339, %v2340
        %v2342 = vand.u32 %v2341, 4294901760
        %2343 = vmatmul.mubr.f32.gmra.mxu0 %v2342
        %v2344 = vpop.f32.mrf.mxu0
        %v2345 = vadd.f32 0.0, %v2344
        %v2346 = vpop.f32.mrf.mxu0
        %2347 = vdwg.mxu0
        %2348 = vmatprep.subr.mxu0 0.0
        %2349 = vmatpush1.msra.mxu0 0.0
        %2350 = vmatprep.subr.mxu0 0.0
        %2351 = vmatpush1.msra.mxu0 0.0
        %2352 = vmatprep.subr.mxu0 0.0
        %2353 = vmatpush1.msra.mxu0 0.0
        %2354 = vmatprep.subr.mxu0 0.0
        %2355 = vmatpush1.msra.mxu0 0.0
        %2356 = vmatprep.subr.mxu0 0.0
        %2357 = vmatpush1.msra.mxu0 0.0
        %2358 = vmatprep.subr.mxu0 0.0
        %2359 = vmatpush1.msra.mxu0 0.0
        %2360 = vmatprep.subr.mxu0 0.0
        %2361 = vmatpush1.msra.mxu0 0.0
        %2362 = vmatprep.subr.mxu0 0.0
        %2363 = vmatpush1.msra.mxu0 0.0
        %2364 = vmatprep.subr.mxu0 0.0
        %2365 = vmatpush1.msra.mxu0 0.0
        %2366 = vmatprep.subr.mxu0 0.0
        %2367 = vmatpush1.msra.mxu0 0.0
        %2368 = vmatprep.subr.mxu0 0.0
        %2369 = vmatpush1.msra.mxu0 0.0
        %2370 = vmatprep.subr.mxu0 0.0
        %2371 = vmatpush1.msra.mxu0 0.0
        %2372 = vmatprep.subr.mxu0 0.0
        %2373 = vmatpush1.msra.mxu0 0.0
        %2374 = vmatprep.subr.mxu0 0.0
        %2375 = vmatpush1.msra.mxu0 0.0
        %2376 = vmatprep.subr.mxu0 0.0
        %v2377 = vand.u32 %v1024, 4294901760
        %v2378 = vsub.f32 %v1024, %v2377
        %v2379 = vand.u32 %v2378, 4294901760
        %v2380 = vsub.f32 %v2378, %v2379
        %v2381 = vand.u32 %v2380, 4294901760
        %2382 = vmatpush1.msra.mxu0 %v2381
        %2383 = vmatprep.subr.mxu0 0.0
        %v2384 = vand.u32 %v1018, 4294901760
        %v2385 = vsub.f32 %v1018, %v2384
        %v2386 = vand.u32 %v2385, 4294901760
        %v2387 = vsub.f32 %v2385, %v2386
        %v2388 = vand.u32 %v2387, 4294901760
        %2389 = vmatpush1.msra.mxu0 %v2388
        %2390 = vmatprep.subr.mxu0 0.0
        %2391 = vmatpush2.msra.mxu0 0.0
        %2392 = vmatprep.subr.mxu0 0.0
        %2393 = vmatpush2.msra.mxu0 0.0
        %2394 = vmatprep.subr.mxu0 0.0
        %2395 = vmatpush2.msra.mxu0 0.0
        %2396 = vmatprep.subr.mxu0 0.0
        %2397 = vmatpush2.msra.mxu0 0.0
        %2398 = vmatprep.subr.mxu0 0.0
        %2399 = vmatpush2.msra.mxu0 0.0
        %2400 = vmatprep.subr.mxu0 0.0
        %2401 = vmatpush2.msra.mxu0 0.0
        %2402 = vmatprep.subr.mxu0 0.0
        %2403 = vmatpush2.msra.mxu0 0.0
        %2404 = vmatprep.subr.mxu0 0.0
        %2405 = vmatpush2.msra.mxu0 0.0
        %2406 = vmatprep.subr.mxu0 0.0
        %2407 = vmatpush2.msra.mxu0 0.0
        %2408 = vmatprep.subr.mxu0 0.0
        %2409 = vmatpush2.msra.mxu0 0.0
        %2410 = vmatprep.subr.mxu0 0.0
        %2411 = vmatpush2.msra.mxu0 0.0
        %2412 = vmatprep.subr.mxu0 0.0
        %2413 = vmatpush2.msra.mxu0 0.0
        %2414 = vmatprep.subr.mxu0 0.0
        %2415 = vmatpush2.msra.mxu0 0.0
        %2416 = vmatprep.subr.mxu0 0.0
        %2417 = vmatpush2.msra.mxu0 0.0
        %2418 = vmatprep.subr.mxu0 0.0
        %2419 = vmatpush2.msra.mxu0 0.0
        %2420 = vmatprep.subr.mxu0 0.0
        %2421 = vmatpush2.msra.mxu0 0.0
        %2422 = vmatprep.mubr.f32.mxu0 0.0
        %v2423 = vand.u32 %v1044, 4294901760
        %2424 = vmatmul.mubr.f32.gmra.mxu0 %v2423
        %v2425 = vpop.f32.mrf.mxu0
        %v2426 = vadd.f32 %v2315, %v2425
        %v2427 = vpop.f32.mrf.mxu0
        %2428 = vmatprep.mubr.f32.mxu0 0.0
        %v2429 = vand.u32 %v1047, 4294901760
        %2430 = vmatmul.mubr.f32.gmra.mxu0 %v2429
        %v2431 = vpop.f32.mrf.mxu0
        %v2432 = vadd.f32 %v2325, %v2431
        %v2433 = vpop.f32.mrf.mxu0
        %2434 = vmatprep.mubr.f32.mxu0 0.0
        %v2435 = vand.u32 %v1050, 4294901760
        %2436 = vmatmul.mubr.f32.gmra.mxu0 %v2435
        %v2437 = vpop.f32.mrf.mxu0
        %v2438 = vadd.f32 %v2335, %v2437
        %v2439 = vpop.f32.mrf.mxu0
        %2440 = vmatprep.mubr.f32.mxu0 0.0
        %v2441 = vand.u32 %v1053, 4294901760
        %2442 = vmatmul.mubr.f32.gmra.mxu0 %v2441
        %v2443 = vpop.f32.mrf.mxu0
        %v2444 = vadd.f32 %v2345, %v2443
        %v2445 = vpop.f32.mrf.mxu0
        %2446 = vdwg.mxu0
        %2447 = vmatprep.subr.mxu0 0.0
        %2448 = vmatpush1.msra.mxu0 0.0
        %2449 = vmatprep.subr.mxu0 0.0
        %2450 = vmatpush1.msra.mxu0 0.0
        %2451 = vmatprep.subr.mxu0 0.0
        %2452 = vmatpush1.msra.mxu0 0.0
        %2453 = vmatprep.subr.mxu0 0.0
        %2454 = vmatpush1.msra.mxu0 0.0
        %2455 = vmatprep.subr.mxu0 0.0
        %2456 = vmatpush1.msra.mxu0 0.0
        %2457 = vmatprep.subr.mxu0 0.0
        %2458 = vmatpush1.msra.mxu0 0.0
        %2459 = vmatprep.subr.mxu0 0.0
        %2460 = vmatpush1.msra.mxu0 0.0
        %2461 = vmatprep.subr.mxu0 0.0
        %2462 = vmatpush1.msra.mxu0 0.0
        %2463 = vmatprep.subr.mxu0 0.0
        %2464 = vmatpush1.msra.mxu0 0.0
        %2465 = vmatprep.subr.mxu0 0.0
        %2466 = vmatpush1.msra.mxu0 0.0
        %2467 = vmatprep.subr.mxu0 0.0
        %2468 = vmatpush1.msra.mxu0 0.0
        %2469 = vmatprep.subr.mxu0 0.0
        %2470 = vmatpush1.msra.mxu0 0.0
        %2471 = vmatprep.subr.mxu0 0.0
        %2472 = vmatpush1.msra.mxu0 0.0
        %2473 = vmatprep.subr.mxu0 0.0
        %2474 = vmatpush1.msra.mxu0 0.0
        %2475 = vmatprep.subr.mxu0 0.0
        %v2476 = vand.u32 %v1024, 4294901760
        %v2477 = vsub.f32 %v1024, %v2476
        %2478 = vmatpush1.msra.mxu0 %v2477
        %2479 = vmatprep.subr.mxu0 0.0
        %v2480 = vand.u32 %v1018, 4294901760
        %v2481 = vsub.f32 %v1018, %v2480
        %2482 = vmatpush1.msra.mxu0 %v2481
        %2483 = vmatprep.subr.mxu0 0.0
        %2484 = vmatpush2.msra.mxu0 0.0
        %2485 = vmatprep.subr.mxu0 0.0
        %2486 = vmatpush2.msra.mxu0 0.0
        %2487 = vmatprep.subr.mxu0 0.0
        %2488 = vmatpush2.msra.mxu0 0.0
        %2489 = vmatprep.subr.mxu0 0.0
        %2490 = vmatpush2.msra.mxu0 0.0
        %2491 = vmatprep.subr.mxu0 0.0
        %2492 = vmatpush2.msra.mxu0 0.0
        %2493 = vmatprep.subr.mxu0 0.0
        %2494 = vmatpush2.msra.mxu0 0.0
        %2495 = vmatprep.subr.mxu0 0.0
        %2496 = vmatpush2.msra.mxu0 0.0
        %2497 = vmatprep.subr.mxu0 0.0
        %2498 = vmatpush2.msra.mxu0 0.0
        %2499 = vmatprep.subr.mxu0 0.0
        %2500 = vmatpush2.msra.mxu0 0.0
        %2501 = vmatprep.subr.mxu0 0.0
        %2502 = vmatpush2.msra.mxu0 0.0
        %2503 = vmatprep.subr.mxu0 0.0
        %2504 = vmatpush2.msra.mxu0 0.0
        %2505 = vmatprep.subr.mxu0 0.0
        %2506 = vmatpush2.msra.mxu0 0.0
        %2507 = vmatprep.subr.mxu0 0.0
        %2508 = vmatpush2.msra.mxu0 0.0
        %2509 = vmatprep.subr.mxu0 0.0
        %2510 = vmatpush2.msra.mxu0 0.0
        %2511 = vmatprep.subr.mxu0 0.0
        %2512 = vmatpush2.msra.mxu0 0.0
        %2513 = vmatprep.subr.mxu0 0.0
        %2514 = vmatpush2.msra.mxu0 0.0
        %2515 = vmatprep.mubr.f32.mxu0 0.0
        %v2516 = vand.u32 %v1044, 4294901760
        %v2517 = vsub.f32 %v1044, %v2516
        %2518 = vmatmul.mubr.f32.gmra.mxu0 %v2517
        %v2519 = vpop.f32.mrf.mxu0
        %v2520 = vadd.f32 %v2426, %v2519
        %v2521 = vpop.f32.mrf.mxu0
        %2522 = vmatprep.mubr.f32.mxu0 0.0
        %v2523 = vand.u32 %v1047, 4294901760
        %v2524 = vsub.f32 %v1047, %v2523
        %2525 = vmatmul.mubr.f32.gmra.mxu0 %v2524
        %v2526 = vpop.f32.mrf.mxu0
        %v2527 = vadd.f32 %v2432, %v2526
        %v2528 = vpop.f32.mrf.mxu0
        %2529 = vmatprep.mubr.f32.mxu0 0.0
        %v2530 = vand.u32 %v1050, 4294901760
        %v2531 = vsub.f32 %v1050, %v2530
        %2532 = vmatmul.mubr.f32.gmra.mxu0 %v2531
        %v2533 = vpop.f32.mrf.mxu0
        %v2534 = vadd.f32 %v2438, %v2533
        %v2535 = vpop.f32.mrf.mxu0
        %2536 = vmatprep.mubr.f32.mxu0 0.0
        %v2537 = vand.u32 %v1053, 4294901760
        %v2538 = vsub.f32 %v1053, %v2537
        %2539 = vmatmul.mubr.f32.gmra.mxu0 %v2538
        %v2540 = vpop.f32.mrf.mxu0
        %v2541 = vadd.f32 %v2444, %v2540
        %v2542 = vpop.f32.mrf.mxu0
        %2543 = vdwg.mxu0
        %2544 = vmatprep.subr.mxu0 0.0
        %2545 = vmatpush1.msra.mxu0 0.0
        %2546 = vmatprep.subr.mxu0 0.0
        %2547 = vmatpush1.msra.mxu0 0.0
        %2548 = vmatprep.subr.mxu0 0.0
        %2549 = vmatpush1.msra.mxu0 0.0
        %2550 = vmatprep.subr.mxu0 0.0
        %2551 = vmatpush1.msra.mxu0 0.0
        %2552 = vmatprep.subr.mxu0 0.0
        %2553 = vmatpush1.msra.mxu0 0.0
        %2554 = vmatprep.subr.mxu0 0.0
        %2555 = vmatpush1.msra.mxu0 0.0
        %2556 = vmatprep.subr.mxu0 0.0
        %2557 = vmatpush1.msra.mxu0 0.0
        %2558 = vmatprep.subr.mxu0 0.0
        %2559 = vmatpush1.msra.mxu0 0.0
        %2560 = vmatprep.subr.mxu0 0.0
        %2561 = vmatpush1.msra.mxu0 0.0
        %2562 = vmatprep.subr.mxu0 0.0
        %2563 = vmatpush1.msra.mxu0 0.0
        %2564 = vmatprep.subr.mxu0 0.0
        %2565 = vmatpush1.msra.mxu0 0.0
        %2566 = vmatprep.subr.mxu0 0.0
        %2567 = vmatpush1.msra.mxu0 0.0
        %2568 = vmatprep.subr.mxu0 0.0
        %2569 = vmatpush1.msra.mxu0 0.0
        %2570 = vmatprep.subr.mxu0 0.0
        %2571 = vmatpush1.msra.mxu0 0.0
        %2572 = vmatprep.subr.mxu0 0.0
        %v2573 = vand.u32 %v1024, 4294901760
        %2574 = vmatpush1.msra.mxu0 %v2573
        %2575 = vmatprep.subr.mxu0 0.0
        %v2576 = vand.u32 %v1018, 4294901760
        %2577 = vmatpush1.msra.mxu0 %v2576
        %2578 = vmatprep.subr.mxu0 0.0
        %2579 = vmatpush2.msra.mxu0 0.0
        %2580 = vmatprep.subr.mxu0 0.0
        %2581 = vmatpush2.msra.mxu0 0.0
        %2582 = vmatprep.subr.mxu0 0.0
        %2583 = vmatpush2.msra.mxu0 0.0
        %2584 = vmatprep.subr.mxu0 0.0
        %2585 = vmatpush2.msra.mxu0 0.0
        %2586 = vmatprep.subr.mxu0 0.0
        %2587 = vmatpush2.msra.mxu0 0.0
        %2588 = vmatprep.subr.mxu0 0.0
        %2589 = vmatpush2.msra.mxu0 0.0
        %2590 = vmatprep.subr.mxu0 0.0
        %2591 = vmatpush2.msra.mxu0 0.0
        %2592 = vmatprep.subr.mxu0 0.0
        %2593 = vmatpush2.msra.mxu0 0.0
        %2594 = vmatprep.subr.mxu0 0.0
        %2595 = vmatpush2.msra.mxu0 0.0
        %2596 = vmatprep.subr.mxu0 0.0
        %2597 = vmatpush2.msra.mxu0 0.0
        %2598 = vmatprep.subr.mxu0 0.0
        %2599 = vmatpush2.msra.mxu0 0.0
        %2600 = vmatprep.subr.mxu0 0.0
        %2601 = vmatpush2.msra.mxu0 0.0
        %2602 = vmatprep.subr.mxu0 0.0
        %2603 = vmatpush2.msra.mxu0 0.0
        %2604 = vmatprep.subr.mxu0 0.0
        %2605 = vmatpush2.msra.mxu0 0.0
        %2606 = vmatprep.subr.mxu0 0.0
        %2607 = vmatpush2.msra.mxu0 0.0
        %2608 = vmatprep.subr.mxu0 0.0
        %2609 = vmatpush2.msra.mxu0 0.0
        %2610 = vmatprep.mubr.f32.mxu0 0.0
        %v2611 = vand.u32 %v1044, 4294901760
        %v2612 = vsub.f32 %v1044, %v2611
        %v2613 = vand.u32 %v2612, 4294901760
        %2614 = vmatmul.mubr.f32.gmra.mxu0 %v2613
        %v2615 = vpop.f32.mrf.mxu0
        %v2616 = vadd.f32 %v2520, %v2615
        %v2617 = vpop.f32.mrf.mxu0
        %2618 = vmatprep.mubr.f32.mxu0 0.0
        %v2619 = vand.u32 %v1047, 4294901760
        %v2620 = vsub.f32 %v1047, %v2619
        %v2621 = vand.u32 %v2620, 4294901760
        %2622 = vmatmul.mubr.f32.gmra.mxu0 %v2621
        %v2623 = vpop.f32.mrf.mxu0
        %v2624 = vadd.f32 %v2527, %v2623
        %v2625 = vpop.f32.mrf.mxu0
        %2626 = vmatprep.mubr.f32.mxu0 0.0
        %v2627 = vand.u32 %v1050, 4294901760
        %v2628 = vsub.f32 %v1050, %v2627
        %v2629 = vand.u32 %v2628, 4294901760
        %2630 = vmatmul.mubr.f32.gmra.mxu0 %v2629
        %v2631 = vpop.f32.mrf.mxu0
        %v2632 = vadd.f32 %v2534, %v2631
        %v2633 = vpop.f32.mrf.mxu0
        %2634 = vmatprep.mubr.f32.mxu0 0.0
        %v2635 = vand.u32 %v1053, 4294901760
        %v2636 = vsub.f32 %v1053, %v2635
        %v2637 = vand.u32 %v2636, 4294901760
        %2638 = vmatmul.mubr.f32.gmra.mxu0 %v2637
        %v2639 = vpop.f32.mrf.mxu0
        %v2640 = vadd.f32 %v2541, %v2639
        %v2641 = vpop.f32.mrf.mxu0
        %2642 = vdwg.mxu0
        %2643 = vmatprep.subr.mxu0 0.0
        %2644 = vmatpush1.msra.mxu0 0.0
        %2645 = vmatprep.subr.mxu0 0.0
        %2646 = vmatpush1.msra.mxu0 0.0
        %2647 = vmatprep.subr.mxu0 0.0
        %2648 = vmatpush1.msra.mxu0 0.0
        %2649 = vmatprep.subr.mxu0 0.0
        %2650 = vmatpush1.msra.mxu0 0.0
        %2651 = vmatprep.subr.mxu0 0.0
        %2652 = vmatpush1.msra.mxu0 0.0
        %2653 = vmatprep.subr.mxu0 0.0
        %2654 = vmatpush1.msra.mxu0 0.0
        %2655 = vmatprep.subr.mxu0 0.0
        %2656 = vmatpush1.msra.mxu0 0.0
        %2657 = vmatprep.subr.mxu0 0.0
        %2658 = vmatpush1.msra.mxu0 0.0
        %2659 = vmatprep.subr.mxu0 0.0
        %2660 = vmatpush1.msra.mxu0 0.0
        %2661 = vmatprep.subr.mxu0 0.0
        %2662 = vmatpush1.msra.mxu0 0.0
        %2663 = vmatprep.subr.mxu0 0.0
        %2664 = vmatpush1.msra.mxu0 0.0
        %2665 = vmatprep.subr.mxu0 0.0
        %2666 = vmatpush1.msra.mxu0 0.0
        %2667 = vmatprep.subr.mxu0 0.0
        %2668 = vmatpush1.msra.mxu0 0.0
        %2669 = vmatprep.subr.mxu0 0.0
        %2670 = vmatpush1.msra.mxu0 0.0
        %2671 = vmatprep.subr.mxu0 0.0
        %v2672 = vand.u32 %v1024, 4294901760
        %v2673 = vsub.f32 %v1024, %v2672
        %v2674 = vand.u32 %v2673, 4294901760
        %2675 = vmatpush1.msra.mxu0 %v2674
        %2676 = vmatprep.subr.mxu0 0.0
        %v2677 = vand.u32 %v1018, 4294901760
        %v2678 = vsub.f32 %v1018, %v2677
        %v2679 = vand.u32 %v2678, 4294901760
        %2680 = vmatpush1.msra.mxu0 %v2679
        %2681 = vmatprep.subr.mxu0 0.0
        %2682 = vmatpush2.msra.mxu0 0.0
        %2683 = vmatprep.subr.mxu0 0.0
        %2684 = vmatpush2.msra.mxu0 0.0
        %2685 = vmatprep.subr.mxu0 0.0
        %2686 = vmatpush2.msra.mxu0 0.0
        %2687 = vmatprep.subr.mxu0 0.0
        %2688 = vmatpush2.msra.mxu0 0.0
        %2689 = vmatprep.subr.mxu0 0.0
        %2690 = vmatpush2.msra.mxu0 0.0
        %2691 = vmatprep.subr.mxu0 0.0
        %2692 = vmatpush2.msra.mxu0 0.0
        %2693 = vmatprep.subr.mxu0 0.0
        %2694 = vmatpush2.msra.mxu0 0.0
        %2695 = vmatprep.subr.mxu0 0.0
        %2696 = vmatpush2.msra.mxu0 0.0
        %2697 = vmatprep.subr.mxu0 0.0
        %2698 = vmatpush2.msra.mxu0 0.0
        %2699 = vmatprep.subr.mxu0 0.0
        %2700 = vmatpush2.msra.mxu0 0.0
        %2701 = vmatprep.subr.mxu0 0.0
        %2702 = vmatpush2.msra.mxu0 0.0
        %2703 = vmatprep.subr.mxu0 0.0
        %2704 = vmatpush2.msra.mxu0 0.0
        %2705 = vmatprep.subr.mxu0 0.0
        %2706 = vmatpush2.msra.mxu0 0.0
        %2707 = vmatprep.subr.mxu0 0.0
        %2708 = vmatpush2.msra.mxu0 0.0
        %2709 = vmatprep.subr.mxu0 0.0
        %2710 = vmatpush2.msra.mxu0 0.0
        %2711 = vmatprep.subr.mxu0 0.0
        %2712 = vmatpush2.msra.mxu0 0.0
        %2713 = vmatprep.mubr.f32.mxu0 0.0
        %v2714 = vand.u32 %v1044, 4294901760
        %2715 = vmatmul.mubr.f32.gmra.mxu0 %v2714
        %v2716 = vpop.f32.mrf.mxu0
        %v2717 = vadd.f32 %v2616, %v2716
        %v2718 = vpop.f32.mrf.mxu0
        %2719 = vmatprep.mubr.f32.mxu0 0.0
        %v2720 = vand.u32 %v1047, 4294901760
        %2721 = vmatmul.mubr.f32.gmra.mxu0 %v2720
        %v2722 = vpop.f32.mrf.mxu0
        %v2723 = vadd.f32 %v2624, %v2722
        %v2724 = vpop.f32.mrf.mxu0
        %2725 = vmatprep.mubr.f32.mxu0 0.0
        %v2726 = vand.u32 %v1050, 4294901760
        %2727 = vmatmul.mubr.f32.gmra.mxu0 %v2726
        %v2728 = vpop.f32.mrf.mxu0
        %v2729 = vadd.f32 %v2632, %v2728
        %v2730 = vpop.f32.mrf.mxu0
        %2731 = vmatprep.mubr.f32.mxu0 0.0
        %v2732 = vand.u32 %v1053, 4294901760
        %2733 = vmatmul.mubr.f32.gmra.mxu0 %v2732
        %v2734 = vpop.f32.mrf.mxu0
        %v2735 = vadd.f32 %v2640, %v2734
        %v2736 = vpop.f32.mrf.mxu0
        %2737 = vdwg.mxu0
        %2738 = vmatprep.subr.mxu0 0.0
        %2739 = vmatpush1.msra.mxu0 0.0
        %2740 = vmatprep.subr.mxu0 0.0
        %2741 = vmatpush1.msra.mxu0 0.0
        %2742 = vmatprep.subr.mxu0 0.0
        %2743 = vmatpush1.msra.mxu0 0.0
        %2744 = vmatprep.subr.mxu0 0.0
        %2745 = vmatpush1.msra.mxu0 0.0
        %2746 = vmatprep.subr.mxu0 0.0
        %2747 = vmatpush1.msra.mxu0 0.0
        %2748 = vmatprep.subr.mxu0 0.0
        %2749 = vmatpush1.msra.mxu0 0.0
        %2750 = vmatprep.subr.mxu0 0.0
        %2751 = vmatpush1.msra.mxu0 0.0
        %2752 = vmatprep.subr.mxu0 0.0
        %2753 = vmatpush1.msra.mxu0 0.0
        %2754 = vmatprep.subr.mxu0 0.0
        %2755 = vmatpush1.msra.mxu0 0.0
        %2756 = vmatprep.subr.mxu0 0.0
        %2757 = vmatpush1.msra.mxu0 0.0
        %2758 = vmatprep.subr.mxu0 0.0
        %2759 = vmatpush1.msra.mxu0 0.0
        %2760 = vmatprep.subr.mxu0 0.0
        %2761 = vmatpush1.msra.mxu0 0.0
        %2762 = vmatprep.subr.mxu0 0.0
        %2763 = vmatpush1.msra.mxu0 0.0
        %2764 = vmatprep.subr.mxu0 0.0
        %2765 = vmatpush1.msra.mxu0 0.0
        %2766 = vmatprep.subr.mxu0 0.0
        %v2767 = vand.u32 %v1024, 4294901760
        %2768 = vmatpush1.msra.mxu0 %v2767
        %2769 = vmatprep.subr.mxu0 0.0
        %v2770 = vand.u32 %v1018, 4294901760
        %2771 = vmatpush1.msra.mxu0 %v2770
        %2772 = vmatprep.subr.mxu0 0.0
        %2773 = vmatpush2.msra.mxu0 0.0
        %2774 = vmatprep.subr.mxu0 0.0
        %2775 = vmatpush2.msra.mxu0 0.0
        %2776 = vmatprep.subr.mxu0 0.0
        %2777 = vmatpush2.msra.mxu0 0.0
        %2778 = vmatprep.subr.mxu0 0.0
        %2779 = vmatpush2.msra.mxu0 0.0
        %2780 = vmatprep.subr.mxu0 0.0
        %2781 = vmatpush2.msra.mxu0 0.0
        %2782 = vmatprep.subr.mxu0 0.0
        %2783 = vmatpush2.msra.mxu0 0.0
        %2784 = vmatprep.subr.mxu0 0.0
        %2785 = vmatpush2.msra.mxu0 0.0
        %2786 = vmatprep.subr.mxu0 0.0
        %2787 = vmatpush2.msra.mxu0 0.0
        %2788 = vmatprep.subr.mxu0 0.0
        %2789 = vmatpush2.msra.mxu0 0.0
        %2790 = vmatprep.subr.mxu0 0.0
        %2791 = vmatpush2.msra.mxu0 0.0
        %2792 = vmatprep.subr.mxu0 0.0
        %2793 = vmatpush2.msra.mxu0 0.0
        %2794 = vmatprep.subr.mxu0 0.0
        %2795 = vmatpush2.msra.mxu0 0.0
        %2796 = vmatprep.subr.mxu0 0.0
        %2797 = vmatpush2.msra.mxu0 0.0
        %2798 = vmatprep.subr.mxu0 0.0
        %2799 = vmatpush2.msra.mxu0 0.0
        %2800 = vmatprep.subr.mxu0 0.0
        %2801 = vmatpush2.msra.mxu0 0.0
        %2802 = vmatprep.subr.mxu0 0.0
        %2803 = vmatpush2.msra.mxu0 0.0
        %2804 = vmatprep.mubr.f32.mxu0 0.0
        %v2805 = vand.u32 %v1044, 4294901760
        %2806 = vmatmul.mubr.f32.gmra.mxu0 %v2805
        %v2807 = vpop.f32.mrf.mxu0
        %v2808 = vadd.f32 %v2717, %v2807
        %v2809 = vpop.f32.mrf.mxu0
        %2810 = vmatprep.mubr.f32.mxu0 0.0
        %v2811 = vand.u32 %v1047, 4294901760
        %2812 = vmatmul.mubr.f32.gmra.mxu0 %v2811
        %v2813 = vpop.f32.mrf.mxu0
        %v2814 = vadd.f32 %v2723, %v2813
        %v2815 = vpop.f32.mrf.mxu0
        %2816 = vmatprep.mubr.f32.mxu0 0.0
        %v2817 = vand.u32 %v1050, 4294901760
        %2818 = vmatmul.mubr.f32.gmra.mxu0 %v2817
        %v2819 = vpop.f32.mrf.mxu0
        %v2820 = vadd.f32 %v2729, %v2819
        %v2821 = vpop.f32.mrf.mxu0
        %2822 = vmatprep.mubr.f32.mxu0 0.0
        %v2823 = vand.u32 %v1053, 4294901760
        %2824 = vmatmul.mubr.f32.gmra.mxu0 %v2823
        %v2825 = vpop.f32.mrf.mxu0
        %v2826 = vadd.f32 %v2735, %v2825
        %v2827 = vpop.f32.mrf.mxu0
        %2828 = vdwg.mxu0
        %s2829 = scalar_lea.vmem %s233, 64 [#allocation7]
        %2830 = vst.msk [vmem:[%s2829] sm:$0xff] %vm1643, %v2808
        %2831 = vst.msk [vmem:[%s2829 + $0x8] sm:$0xff] %vm1643, %v2814
        %2832 = vst.msk [vmem:[%s2829 + $0x10] sm:$0xff] %vm1643, %v2820
        %2833 = vst.msk [vmem:[%s2829 + $0x18] sm:$0xff] %vm1643, %v2826
        %2834 = vmatprep.subr.mxu0 0.0
        %2835 = vmatpush1.msra.mxu0 0.0
        %2836 = vmatprep.subr.mxu0 0.0
        %2837 = vmatpush1.msra.mxu0 0.0
        %2838 = vmatprep.subr.mxu0 0.0
        %2839 = vmatpush1.msra.mxu0 0.0
        %2840 = vmatprep.subr.mxu0 0.0
        %2841 = vmatpush1.msra.mxu0 0.0
        %2842 = vmatprep.subr.mxu0 0.0
        %2843 = vmatpush1.msra.mxu0 0.0
        %2844 = vmatprep.subr.mxu0 0.0
        %2845 = vmatpush1.msra.mxu0 0.0
        %2846 = vmatprep.subr.mxu0 0.0
        %2847 = vmatpush1.msra.mxu0 0.0
        %2848 = vmatprep.subr.mxu0 0.0
        %2849 = vmatpush1.msra.mxu0 0.0
        %2850 = vmatprep.subr.mxu0 0.0
        %2851 = vmatpush1.msra.mxu0 0.0
        %2852 = vmatprep.subr.mxu0 0.0
        %2853 = vmatpush1.msra.mxu0 0.0
        %2854 = vmatprep.subr.mxu0 0.0
        %2855 = vmatpush1.msra.mxu0 0.0
        %2856 = vmatprep.subr.mxu0 0.0
        %2857 = vmatpush1.msra.mxu0 0.0
        %2858 = vmatprep.subr.mxu0 0.0
        %2859 = vmatpush1.msra.mxu0 0.0
        %2860 = vmatprep.subr.mxu0 0.0
        %2861 = vmatpush1.msra.mxu0 0.0
        %2862 = vmatprep.subr.mxu0 0.0
        %v2863 = vand.u32 %v1036, 4294901760
        %2864 = vmatpush1.msra.mxu0 %v2863
        %2865 = vmatprep.subr.mxu0 0.0
        %v2866 = vand.u32 %v1030, 4294901760
        %2867 = vmatpush1.msra.mxu0 %v2866
        %2868 = vmatprep.subr.mxu0 0.0
        %2869 = vmatpush2.msra.mxu0 0.0
        %2870 = vmatprep.subr.mxu0 0.0
        %2871 = vmatpush2.msra.mxu0 0.0
        %2872 = vmatprep.subr.mxu0 0.0
        %2873 = vmatpush2.msra.mxu0 0.0
        %2874 = vmatprep.subr.mxu0 0.0
        %2875 = vmatpush2.msra.mxu0 0.0
        %2876 = vmatprep.subr.mxu0 0.0
        %2877 = vmatpush2.msra.mxu0 0.0
        %2878 = vmatprep.subr.mxu0 0.0
        %2879 = vmatpush2.msra.mxu0 0.0
        %2880 = vmatprep.subr.mxu0 0.0
        %2881 = vmatpush2.msra.mxu0 0.0
        %2882 = vmatprep.subr.mxu0 0.0
        %2883 = vmatpush2.msra.mxu0 0.0
        %2884 = vmatprep.subr.mxu0 0.0
        %2885 = vmatpush2.msra.mxu0 0.0
        %2886 = vmatprep.subr.mxu0 0.0
        %2887 = vmatpush2.msra.mxu0 0.0
        %2888 = vmatprep.subr.mxu0 0.0
        %2889 = vmatpush2.msra.mxu0 0.0
        %2890 = vmatprep.subr.mxu0 0.0
        %2891 = vmatpush2.msra.mxu0 0.0
        %2892 = vmatprep.subr.mxu0 0.0
        %2893 = vmatpush2.msra.mxu0 0.0
        %2894 = vmatprep.subr.mxu0 0.0
        %2895 = vmatpush2.msra.mxu0 0.0
        %2896 = vmatprep.subr.mxu0 0.0
        %2897 = vmatpush2.msra.mxu0 0.0
        %2898 = vmatprep.subr.mxu0 0.0
        %2899 = vmatpush2.msra.mxu0 0.0
        %2900 = vmatprep.mubr.f32.mxu0 0.0
        %v2901 = vand.u32 %v1044, 4294901760
        %v2902 = vsub.f32 %v1044, %v2901
        %v2903 = vand.u32 %v2902, 4294901760
        %v2904 = vsub.f32 %v2902, %v2903
        %v2905 = vand.u32 %v2904, 4294901760
        %2906 = vmatmul.mubr.f32.gmra.mxu0 %v2905
        %v2907 = vpop.f32.mrf.mxu0
        %v2908 = vadd.f32 0.0, %v2907
        %v2909 = vpop.f32.mrf.mxu0
        %2910 = vmatprep.mubr.f32.mxu0 0.0
        %v2911 = vand.u32 %v1047, 4294901760
        %v2912 = vsub.f32 %v1047, %v2911
        %v2913 = vand.u32 %v2912, 4294901760
        %v2914 = vsub.f32 %v2912, %v2913
        %v2915 = vand.u32 %v2914, 4294901760
        %2916 = vmatmul.mubr.f32.gmra.mxu0 %v2915
        %v2917 = vpop.f32.mrf.mxu0
        %v2918 = vadd.f32 0.0, %v2917
        %v2919 = vpop.f32.mrf.mxu0
        %2920 = vmatprep.mubr.f32.mxu0 0.0
        %v2921 = vand.u32 %v1050, 4294901760
        %v2922 = vsub.f32 %v1050, %v2921
        %v2923 = vand.u32 %v2922, 4294901760
        %v2924 = vsub.f32 %v2922, %v2923
        %v2925 = vand.u32 %v2924, 4294901760
        %2926 = vmatmul.mubr.f32.gmra.mxu0 %v2925
        %v2927 = vpop.f32.mrf.mxu0
        %v2928 = vadd.f32 0.0, %v2927
        %v2929 = vpop.f32.mrf.mxu0
        %2930 = vmatprep.mubr.f32.mxu0 0.0
        %v2931 = vand.u32 %v1053, 4294901760
        %v2932 = vsub.f32 %v1053, %v2931
        %v2933 = vand.u32 %v2932, 4294901760
        %v2934 = vsub.f32 %v2932, %v2933
        %v2935 = vand.u32 %v2934, 4294901760
        %2936 = vmatmul.mubr.f32.gmra.mxu0 %v2935
        %v2937 = vpop.f32.mrf.mxu0
        %v2938 = vadd.f32 0.0, %v2937
        %v2939 = vpop.f32.mrf.mxu0
        %2940 = vdwg.mxu0
        %2941 = vmatprep.subr.mxu0 0.0
        %2942 = vmatpush1.msra.mxu0 0.0
        %2943 = vmatprep.subr.mxu0 0.0
        %2944 = vmatpush1.msra.mxu0 0.0
        %2945 = vmatprep.subr.mxu0 0.0
        %2946 = vmatpush1.msra.mxu0 0.0
        %2947 = vmatprep.subr.mxu0 0.0
        %2948 = vmatpush1.msra.mxu0 0.0
        %2949 = vmatprep.subr.mxu0 0.0
        %2950 = vmatpush1.msra.mxu0 0.0
        %2951 = vmatprep.subr.mxu0 0.0
        %2952 = vmatpush1.msra.mxu0 0.0
        %2953 = vmatprep.subr.mxu0 0.0
        %2954 = vmatpush1.msra.mxu0 0.0
        %2955 = vmatprep.subr.mxu0 0.0
        %2956 = vmatpush1.msra.mxu0 0.0
        %2957 = vmatprep.subr.mxu0 0.0
        %2958 = vmatpush1.msra.mxu0 0.0
        %2959 = vmatprep.subr.mxu0 0.0
        %2960 = vmatpush1.msra.mxu0 0.0
        %2961 = vmatprep.subr.mxu0 0.0
        %2962 = vmatpush1.msra.mxu0 0.0
        %2963 = vmatprep.subr.mxu0 0.0
        %2964 = vmatpush1.msra.mxu0 0.0
        %2965 = vmatprep.subr.mxu0 0.0
        %2966 = vmatpush1.msra.mxu0 0.0
        %2967 = vmatprep.subr.mxu0 0.0
        %2968 = vmatpush1.msra.mxu0 0.0
        %2969 = vmatprep.subr.mxu0 0.0
        %v2970 = vand.u32 %v1036, 4294901760
        %v2971 = vsub.f32 %v1036, %v2970
        %v2972 = vand.u32 %v2971, 4294901760
        %v2973 = vsub.f32 %v2971, %v2972
        %v2974 = vand.u32 %v2973, 4294901760
        %2975 = vmatpush1.msra.mxu0 %v2974
        %2976 = vmatprep.subr.mxu0 0.0
        %v2977 = vand.u32 %v1030, 4294901760
        %v2978 = vsub.f32 %v1030, %v2977
        %v2979 = vand.u32 %v2978, 4294901760
        %v2980 = vsub.f32 %v2978, %v2979
        %v2981 = vand.u32 %v2980, 4294901760
        %2982 = vmatpush1.msra.mxu0 %v2981
        %2983 = vmatprep.subr.mxu0 0.0
        %2984 = vmatpush2.msra.mxu0 0.0
        %2985 = vmatprep.subr.mxu0 0.0
        %2986 = vmatpush2.msra.mxu0 0.0
        %2987 = vmatprep.subr.mxu0 0.0
        %2988 = vmatpush2.msra.mxu0 0.0
        %2989 = vmatprep.subr.mxu0 0.0
        %2990 = vmatpush2.msra.mxu0 0.0
        %2991 = vmatprep.subr.mxu0 0.0
        %2992 = vmatpush2.msra.mxu0 0.0
        %2993 = vmatprep.subr.mxu0 0.0
        %2994 = vmatpush2.msra.mxu0 0.0
        %2995 = vmatprep.subr.mxu0 0.0
        %2996 = vmatpush2.msra.mxu0 0.0
        %2997 = vmatprep.subr.mxu0 0.0
        %2998 = vmatpush2.msra.mxu0 0.0
        %2999 = vmatprep.subr.mxu0 0.0
        %3000 = vmatpush2.msra.mxu0 0.0
        %3001 = vmatprep.subr.mxu0 0.0
        %3002 = vmatpush2.msra.mxu0 0.0
        %3003 = vmatprep.subr.mxu0 0.0
        %3004 = vmatpush2.msra.mxu0 0.0
        %3005 = vmatprep.subr.mxu0 0.0
        %3006 = vmatpush2.msra.mxu0 0.0
        %3007 = vmatprep.subr.mxu0 0.0
        %3008 = vmatpush2.msra.mxu0 0.0
        %3009 = vmatprep.subr.mxu0 0.0
        %3010 = vmatpush2.msra.mxu0 0.0
        %3011 = vmatprep.subr.mxu0 0.0
        %3012 = vmatpush2.msra.mxu0 0.0
        %3013 = vmatprep.subr.mxu0 0.0
        %3014 = vmatpush2.msra.mxu0 0.0
        %3015 = vmatprep.mubr.f32.mxu0 0.0
        %v3016 = vand.u32 %v1044, 4294901760
        %3017 = vmatmul.mubr.f32.gmra.mxu0 %v3016
        %v3018 = vpop.f32.mrf.mxu0
        %v3019 = vadd.f32 %v2908, %v3018
        %v3020 = vpop.f32.mrf.mxu0
        %3021 = vmatprep.mubr.f32.mxu0 0.0
        %v3022 = vand.u32 %v1047, 4294901760
        %3023 = vmatmul.mubr.f32.gmra.mxu0 %v3022
        %v3024 = vpop.f32.mrf.mxu0
        %v3025 = vadd.f32 %v2918, %v3024
        %v3026 = vpop.f32.mrf.mxu0
        %3027 = vmatprep.mubr.f32.mxu0 0.0
        %v3028 = vand.u32 %v1050, 4294901760
        %3029 = vmatmul.mubr.f32.gmra.mxu0 %v3028
        %v3030 = vpop.f32.mrf.mxu0
        %v3031 = vadd.f32 %v2928, %v3030
        %v3032 = vpop.f32.mrf.mxu0
        %3033 = vmatprep.mubr.f32.mxu0 0.0
        %v3034 = vand.u32 %v1053, 4294901760
        %3035 = vmatmul.mubr.f32.gmra.mxu0 %v3034
        %v3036 = vpop.f32.mrf.mxu0
        %v3037 = vadd.f32 %v2938, %v3036
        %v3038 = vpop.f32.mrf.mxu0
        %3039 = vdwg.mxu0
        %3040 = vmatprep.subr.mxu0 0.0
        %3041 = vmatpush1.msra.mxu0 0.0
        %3042 = vmatprep.subr.mxu0 0.0
        %3043 = vmatpush1.msra.mxu0 0.0
        %3044 = vmatprep.subr.mxu0 0.0
        %3045 = vmatpush1.msra.mxu0 0.0
        %3046 = vmatprep.subr.mxu0 0.0
        %3047 = vmatpush1.msra.mxu0 0.0
        %3048 = vmatprep.subr.mxu0 0.0
        %3049 = vmatpush1.msra.mxu0 0.0
        %3050 = vmatprep.subr.mxu0 0.0
        %3051 = vmatpush1.msra.mxu0 0.0
        %3052 = vmatprep.subr.mxu0 0.0
        %3053 = vmatpush1.msra.mxu0 0.0
        %3054 = vmatprep.subr.mxu0 0.0
        %3055 = vmatpush1.msra.mxu0 0.0
        %3056 = vmatprep.subr.mxu0 0.0
        %3057 = vmatpush1.msra.mxu0 0.0
        %3058 = vmatprep.subr.mxu0 0.0
        %3059 = vmatpush1.msra.mxu0 0.0
        %3060 = vmatprep.subr.mxu0 0.0
        %3061 = vmatpush1.msra.mxu0 0.0
        %3062 = vmatprep.subr.mxu0 0.0
        %3063 = vmatpush1.msra.mxu0 0.0
        %3064 = vmatprep.subr.mxu0 0.0
        %3065 = vmatpush1.msra.mxu0 0.0
        %3066 = vmatprep.subr.mxu0 0.0
        %3067 = vmatpush1.msra.mxu0 0.0
        %3068 = vmatprep.subr.mxu0 0.0
        %v3069 = vand.u32 %v1036, 4294901760
        %v3070 = vsub.f32 %v1036, %v3069
        %3071 = vmatpush1.msra.mxu0 %v3070
        %3072 = vmatprep.subr.mxu0 0.0
        %v3073 = vand.u32 %v1030, 4294901760
        %v3074 = vsub.f32 %v1030, %v3073
        %3075 = vmatpush1.msra.mxu0 %v3074
        %3076 = vmatprep.subr.mxu0 0.0
        %3077 = vmatpush2.msra.mxu0 0.0
        %3078 = vmatprep.subr.mxu0 0.0
        %3079 = vmatpush2.msra.mxu0 0.0
        %3080 = vmatprep.subr.mxu0 0.0
        %3081 = vmatpush2.msra.mxu0 0.0
        %3082 = vmatprep.subr.mxu0 0.0
        %3083 = vmatpush2.msra.mxu0 0.0
        %3084 = vmatprep.subr.mxu0 0.0
        %3085 = vmatpush2.msra.mxu0 0.0
        %3086 = vmatprep.subr.mxu0 0.0
        %3087 = vmatpush2.msra.mxu0 0.0
        %3088 = vmatprep.subr.mxu0 0.0
        %3089 = vmatpush2.msra.mxu0 0.0
        %3090 = vmatprep.subr.mxu0 0.0
        %3091 = vmatpush2.msra.mxu0 0.0
        %3092 = vmatprep.subr.mxu0 0.0
        %3093 = vmatpush2.msra.mxu0 0.0
        %3094 = vmatprep.subr.mxu0 0.0
        %3095 = vmatpush2.msra.mxu0 0.0
        %3096 = vmatprep.subr.mxu0 0.0
        %3097 = vmatpush2.msra.mxu0 0.0
        %3098 = vmatprep.subr.mxu0 0.0
        %3099 = vmatpush2.msra.mxu0 0.0
        %3100 = vmatprep.subr.mxu0 0.0
        %3101 = vmatpush2.msra.mxu0 0.0
        %3102 = vmatprep.subr.mxu0 0.0
        %3103 = vmatpush2.msra.mxu0 0.0
        %3104 = vmatprep.subr.mxu0 0.0
        %3105 = vmatpush2.msra.mxu0 0.0
        %3106 = vmatprep.subr.mxu0 0.0
        %3107 = vmatpush2.msra.mxu0 0.0
        %3108 = vmatprep.mubr.f32.mxu0 0.0
        %v3109 = vand.u32 %v1044, 4294901760
        %v3110 = vsub.f32 %v1044, %v3109
        %3111 = vmatmul.mubr.f32.gmra.mxu0 %v3110
        %v3112 = vpop.f32.mrf.mxu0
        %v3113 = vadd.f32 %v3019, %v3112
        %v3114 = vpop.f32.mrf.mxu0
        %3115 = vmatprep.mubr.f32.mxu0 0.0
        %v3116 = vand.u32 %v1047, 4294901760
        %v3117 = vsub.f32 %v1047, %v3116
        %3118 = vmatmul.mubr.f32.gmra.mxu0 %v3117
        %v3119 = vpop.f32.mrf.mxu0
        %v3120 = vadd.f32 %v3025, %v3119
        %v3121 = vpop.f32.mrf.mxu0
        %3122 = vmatprep.mubr.f32.mxu0 0.0
        %v3123 = vand.u32 %v1050, 4294901760
        %v3124 = vsub.f32 %v1050, %v3123
        %3125 = vmatmul.mubr.f32.gmra.mxu0 %v3124
        %v3126 = vpop.f32.mrf.mxu0
        %v3127 = vadd.f32 %v3031, %v3126
        %v3128 = vpop.f32.mrf.mxu0
        %3129 = vmatprep.mubr.f32.mxu0 0.0
        %v3130 = vand.u32 %v1053, 4294901760
        %v3131 = vsub.f32 %v1053, %v3130
        %3132 = vmatmul.mubr.f32.gmra.mxu0 %v3131
        %v3133 = vpop.f32.mrf.mxu0
        %v3134 = vadd.f32 %v3037, %v3133
        %v3135 = vpop.f32.mrf.mxu0
        %3136 = vdwg.mxu0
        %3137 = vmatprep.subr.mxu0 0.0
        %3138 = vmatpush1.msra.mxu0 0.0
        %3139 = vmatprep.subr.mxu0 0.0
        %3140 = vmatpush1.msra.mxu0 0.0
        %3141 = vmatprep.subr.mxu0 0.0
        %3142 = vmatpush1.msra.mxu0 0.0
        %3143 = vmatprep.subr.mxu0 0.0
        %3144 = vmatpush1.msra.mxu0 0.0
        %3145 = vmatprep.subr.mxu0 0.0
        %3146 = vmatpush1.msra.mxu0 0.0
        %3147 = vmatprep.subr.mxu0 0.0
        %3148 = vmatpush1.msra.mxu0 0.0
        %3149 = vmatprep.subr.mxu0 0.0
        %3150 = vmatpush1.msra.mxu0 0.0
        %3151 = vmatprep.subr.mxu0 0.0
        %3152 = vmatpush1.msra.mxu0 0.0
        %3153 = vmatprep.subr.mxu0 0.0
        %3154 = vmatpush1.msra.mxu0 0.0
        %3155 = vmatprep.subr.mxu0 0.0
        %3156 = vmatpush1.msra.mxu0 0.0
        %3157 = vmatprep.subr.mxu0 0.0
        %3158 = vmatpush1.msra.mxu0 0.0
        %3159 = vmatprep.subr.mxu0 0.0
        %3160 = vmatpush1.msra.mxu0 0.0
        %3161 = vmatprep.subr.mxu0 0.0
        %3162 = vmatpush1.msra.mxu0 0.0
        %3163 = vmatprep.subr.mxu0 0.0
        %3164 = vmatpush1.msra.mxu0 0.0
        %3165 = vmatprep.subr.mxu0 0.0
        %v3166 = vand.u32 %v1036, 4294901760
        %3167 = vmatpush1.msra.mxu0 %v3166
        %3168 = vmatprep.subr.mxu0 0.0
        %v3169 = vand.u32 %v1030, 4294901760
        %3170 = vmatpush1.msra.mxu0 %v3169
        %3171 = vmatprep.subr.mxu0 0.0
        %3172 = vmatpush2.msra.mxu0 0.0
        %3173 = vmatprep.subr.mxu0 0.0
        %3174 = vmatpush2.msra.mxu0 0.0
        %3175 = vmatprep.subr.mxu0 0.0
        %3176 = vmatpush2.msra.mxu0 0.0
        %3177 = vmatprep.subr.mxu0 0.0
        %3178 = vmatpush2.msra.mxu0 0.0
        %3179 = vmatprep.subr.mxu0 0.0
        %3180 = vmatpush2.msra.mxu0 0.0
        %3181 = vmatprep.subr.mxu0 0.0
        %3182 = vmatpush2.msra.mxu0 0.0
        %3183 = vmatprep.subr.mxu0 0.0
        %3184 = vmatpush2.msra.mxu0 0.0
        %3185 = vmatprep.subr.mxu0 0.0
        %3186 = vmatpush2.msra.mxu0 0.0
        %3187 = vmatprep.subr.mxu0 0.0
        %3188 = vmatpush2.msra.mxu0 0.0
        %3189 = vmatprep.subr.mxu0 0.0
        %3190 = vmatpush2.msra.mxu0 0.0
        %3191 = vmatprep.subr.mxu0 0.0
        %3192 = vmatpush2.msra.mxu0 0.0
        %3193 = vmatprep.subr.mxu0 0.0
        %3194 = vmatpush2.msra.mxu0 0.0
        %3195 = vmatprep.subr.mxu0 0.0
        %3196 = vmatpush2.msra.mxu0 0.0
        %3197 = vmatprep.subr.mxu0 0.0
        %3198 = vmatpush2.msra.mxu0 0.0
        %3199 = vmatprep.subr.mxu0 0.0
        %3200 = vmatpush2.msra.mxu0 0.0
        %3201 = vmatprep.subr.mxu0 0.0
        %3202 = vmatpush2.msra.mxu0 0.0
        %3203 = vmatprep.mubr.f32.mxu0 0.0
        %v3204 = vand.u32 %v1044, 4294901760
        %v3205 = vsub.f32 %v1044, %v3204
        %v3206 = vand.u32 %v3205, 4294901760
        %3207 = vmatmul.mubr.f32.gmra.mxu0 %v3206
        %v3208 = vpop.f32.mrf.mxu0
        %v3209 = vadd.f32 %v3113, %v3208
        %v3210 = vpop.f32.mrf.mxu0
        %3211 = vmatprep.mubr.f32.mxu0 0.0
        %v3212 = vand.u32 %v1047, 4294901760
        %v3213 = vsub.f32 %v1047, %v3212
        %v3214 = vand.u32 %v3213, 4294901760
        %3215 = vmatmul.mubr.f32.gmra.mxu0 %v3214
        %v3216 = vpop.f32.mrf.mxu0
        %v3217 = vadd.f32 %v3120, %v3216
        %v3218 = vpop.f32.mrf.mxu0
        %3219 = vmatprep.mubr.f32.mxu0 0.0
        %v3220 = vand.u32 %v1050, 4294901760
        %v3221 = vsub.f32 %v1050, %v3220
        %v3222 = vand.u32 %v3221, 4294901760
        %3223 = vmatmul.mubr.f32.gmra.mxu0 %v3222
        %v3224 = vpop.f32.mrf.mxu0
        %v3225 = vadd.f32 %v3127, %v3224
        %v3226 = vpop.f32.mrf.mxu0
        %3227 = vmatprep.mubr.f32.mxu0 0.0
        %v3228 = vand.u32 %v1053, 4294901760
        %v3229 = vsub.f32 %v1053, %v3228
        %v3230 = vand.u32 %v3229, 4294901760
        %3231 = vmatmul.mubr.f32.gmra.mxu0 %v3230
        %v3232 = vpop.f32.mrf.mxu0
        %v3233 = vadd.f32 %v3134, %v3232
        %v3234 = vpop.f32.mrf.mxu0
        %3235 = vdwg.mxu0
        %3236 = vmatprep.subr.mxu0 0.0
        %3237 = vmatpush1.msra.mxu0 0.0
        %3238 = vmatprep.subr.mxu0 0.0
        %3239 = vmatpush1.msra.mxu0 0.0
        %3240 = vmatprep.subr.mxu0 0.0
        %3241 = vmatpush1.msra.mxu0 0.0
        %3242 = vmatprep.subr.mxu0 0.0
        %3243 = vmatpush1.msra.mxu0 0.0
        %3244 = vmatprep.subr.mxu0 0.0
        %3245 = vmatpush1.msra.mxu0 0.0
        %3246 = vmatprep.subr.mxu0 0.0
        %3247 = vmatpush1.msra.mxu0 0.0
        %3248 = vmatprep.subr.mxu0 0.0
        %3249 = vmatpush1.msra.mxu0 0.0
        %3250 = vmatprep.subr.mxu0 0.0
        %3251 = vmatpush1.msra.mxu0 0.0
        %3252 = vmatprep.subr.mxu0 0.0
        %3253 = vmatpush1.msra.mxu0 0.0
        %3254 = vmatprep.subr.mxu0 0.0
        %3255 = vmatpush1.msra.mxu0 0.0
        %3256 = vmatprep.subr.mxu0 0.0
        %3257 = vmatpush1.msra.mxu0 0.0
        %3258 = vmatprep.subr.mxu0 0.0
        %3259 = vmatpush1.msra.mxu0 0.0
        %3260 = vmatprep.subr.mxu0 0.0
        %3261 = vmatpush1.msra.mxu0 0.0
        %3262 = vmatprep.subr.mxu0 0.0
        %3263 = vmatpush1.msra.mxu0 0.0
        %3264 = vmatprep.subr.mxu0 0.0
        %v3265 = vand.u32 %v1036, 4294901760
        %v3266 = vsub.f32 %v1036, %v3265
        %v3267 = vand.u32 %v3266, 4294901760
        %3268 = vmatpush1.msra.mxu0 %v3267
        %3269 = vmatprep.subr.mxu0 0.0
        %v3270 = vand.u32 %v1030, 4294901760
        %v3271 = vsub.f32 %v1030, %v3270
        %v3272 = vand.u32 %v3271, 4294901760
        %3273 = vmatpush1.msra.mxu0 %v3272
        %3274 = vmatprep.subr.mxu0 0.0
        %3275 = vmatpush2.msra.mxu0 0.0
        %3276 = vmatprep.subr.mxu0 0.0
        %3277 = vmatpush2.msra.mxu0 0.0
        %3278 = vmatprep.subr.mxu0 0.0
        %3279 = vmatpush2.msra.mxu0 0.0
        %3280 = vmatprep.subr.mxu0 0.0
        %3281 = vmatpush2.msra.mxu0 0.0
        %3282 = vmatprep.subr.mxu0 0.0
        %3283 = vmatpush2.msra.mxu0 0.0
        %3284 = vmatprep.subr.mxu0 0.0
        %3285 = vmatpush2.msra.mxu0 0.0
        %3286 = vmatprep.subr.mxu0 0.0
        %3287 = vmatpush2.msra.mxu0 0.0
        %3288 = vmatprep.subr.mxu0 0.0
        %3289 = vmatpush2.msra.mxu0 0.0
        %3290 = vmatprep.subr.mxu0 0.0
        %3291 = vmatpush2.msra.mxu0 0.0
        %3292 = vmatprep.subr.mxu0 0.0
        %3293 = vmatpush2.msra.mxu0 0.0
        %3294 = vmatprep.subr.mxu0 0.0
        %3295 = vmatpush2.msra.mxu0 0.0
        %3296 = vmatprep.subr.mxu0 0.0
        %3297 = vmatpush2.msra.mxu0 0.0
        %3298 = vmatprep.subr.mxu0 0.0
        %3299 = vmatpush2.msra.mxu0 0.0
        %3300 = vmatprep.subr.mxu0 0.0
        %3301 = vmatpush2.msra.mxu0 0.0
        %3302 = vmatprep.subr.mxu0 0.0
        %3303 = vmatpush2.msra.mxu0 0.0
        %3304 = vmatprep.subr.mxu0 0.0
        %3305 = vmatpush2.msra.mxu0 0.0
        %3306 = vmatprep.mubr.f32.mxu0 0.0
        %v3307 = vand.u32 %v1044, 4294901760
        %3308 = vmatmul.mubr.f32.gmra.mxu0 %v3307
        %v3309 = vpop.f32.mrf.mxu0
        %v3310 = vadd.f32 %v3209, %v3309
        %v3311 = vpop.f32.mrf.mxu0
        %3312 = vmatprep.mubr.f32.mxu0 0.0
        %v3313 = vand.u32 %v1047, 4294901760
        %3314 = vmatmul.mubr.f32.gmra.mxu0 %v3313
        %v3315 = vpop.f32.mrf.mxu0
        %v3316 = vadd.f32 %v3217, %v3315
        %v3317 = vpop.f32.mrf.mxu0
        %3318 = vmatprep.mubr.f32.mxu0 0.0
        %v3319 = vand.u32 %v1050, 4294901760
        %3320 = vmatmul.mubr.f32.gmra.mxu0 %v3319
        %v3321 = vpop.f32.mrf.mxu0
        %v3322 = vadd.f32 %v3225, %v3321
        %v3323 = vpop.f32.mrf.mxu0
        %3324 = vmatprep.mubr.f32.mxu0 0.0
        %v3325 = vand.u32 %v1053, 4294901760
        %3326 = vmatmul.mubr.f32.gmra.mxu0 %v3325
        %v3327 = vpop.f32.mrf.mxu0
        %v3328 = vadd.f32 %v3233, %v3327
        %v3329 = vpop.f32.mrf.mxu0
        %3330 = vdwg.mxu0
        %3331 = vmatprep.subr.mxu0 0.0
        %3332 = vmatpush1.msra.mxu0 0.0
        %3333 = vmatprep.subr.mxu0 0.0
        %3334 = vmatpush1.msra.mxu0 0.0
        %3335 = vmatprep.subr.mxu0 0.0
        %3336 = vmatpush1.msra.mxu0 0.0
        %3337 = vmatprep.subr.mxu0 0.0
        %3338 = vmatpush1.msra.mxu0 0.0
        %3339 = vmatprep.subr.mxu0 0.0
        %3340 = vmatpush1.msra.mxu0 0.0
        %3341 = vmatprep.subr.mxu0 0.0
        %3342 = vmatpush1.msra.mxu0 0.0
        %3343 = vmatprep.subr.mxu0 0.0
        %3344 = vmatpush1.msra.mxu0 0.0
        %3345 = vmatprep.subr.mxu0 0.0
        %3346 = vmatpush1.msra.mxu0 0.0
        %3347 = vmatprep.subr.mxu0 0.0
        %3348 = vmatpush1.msra.mxu0 0.0
        %3349 = vmatprep.subr.mxu0 0.0
        %3350 = vmatpush1.msra.mxu0 0.0
        %3351 = vmatprep.subr.mxu0 0.0
        %3352 = vmatpush1.msra.mxu0 0.0
        %3353 = vmatprep.subr.mxu0 0.0
        %3354 = vmatpush1.msra.mxu0 0.0
        %3355 = vmatprep.subr.mxu0 0.0
        %3356 = vmatpush1.msra.mxu0 0.0
        %3357 = vmatprep.subr.mxu0 0.0
        %3358 = vmatpush1.msra.mxu0 0.0
        %3359 = vmatprep.subr.mxu0 0.0
        %v3360 = vand.u32 %v1036, 4294901760
        %3361 = vmatpush1.msra.mxu0 %v3360
        %3362 = vmatprep.subr.mxu0 0.0
        %v3363 = vand.u32 %v1030, 4294901760
        %3364 = vmatpush1.msra.mxu0 %v3363
        %3365 = vmatprep.subr.mxu0 0.0
        %3366 = vmatpush2.msra.mxu0 0.0
        %3367 = vmatprep.subr.mxu0 0.0
        %3368 = vmatpush2.msra.mxu0 0.0
        %3369 = vmatprep.subr.mxu0 0.0
        %3370 = vmatpush2.msra.mxu0 0.0
        %3371 = vmatprep.subr.mxu0 0.0
        %3372 = vmatpush2.msra.mxu0 0.0
        %3373 = vmatprep.subr.mxu0 0.0
        %3374 = vmatpush2.msra.mxu0 0.0
        %3375 = vmatprep.subr.mxu0 0.0
        %3376 = vmatpush2.msra.mxu0 0.0
        %3377 = vmatprep.subr.mxu0 0.0
        %3378 = vmatpush2.msra.mxu0 0.0
        %3379 = vmatprep.subr.mxu0 0.0
        %3380 = vmatpush2.msra.mxu0 0.0
        %3381 = vmatprep.subr.mxu0 0.0
        %3382 = vmatpush2.msra.mxu0 0.0
        %3383 = vmatprep.subr.mxu0 0.0
        %3384 = vmatpush2.msra.mxu0 0.0
        %3385 = vmatprep.subr.mxu0 0.0
        %3386 = vmatpush2.msra.mxu0 0.0
        %3387 = vmatprep.subr.mxu0 0.0
        %3388 = vmatpush2.msra.mxu0 0.0
        %3389 = vmatprep.subr.mxu0 0.0
        %3390 = vmatpush2.msra.mxu0 0.0
        %3391 = vmatprep.subr.mxu0 0.0
        %3392 = vmatpush2.msra.mxu0 0.0
        %3393 = vmatprep.subr.mxu0 0.0
        %3394 = vmatpush2.msra.mxu0 0.0
        %3395 = vmatprep.subr.mxu0 0.0
        %3396 = vmatpush2.msra.mxu0 0.0
        %3397 = vmatprep.mubr.f32.mxu0 0.0
        %v3398 = vand.u32 %v1044, 4294901760
        %3399 = vmatmul.mubr.f32.gmra.mxu0 %v3398
        %v3400 = vpop.f32.mrf.mxu0
        %v3401 = vadd.f32 %v3310, %v3400
        %v3402 = vpop.f32.mrf.mxu0
        %3403 = vmatprep.mubr.f32.mxu0 0.0
        %v3404 = vand.u32 %v1047, 4294901760
        %3405 = vmatmul.mubr.f32.gmra.mxu0 %v3404
        %v3406 = vpop.f32.mrf.mxu0
        %v3407 = vadd.f32 %v3316, %v3406
        %v3408 = vpop.f32.mrf.mxu0
        %3409 = vmatprep.mubr.f32.mxu0 0.0
        %v3410 = vand.u32 %v1050, 4294901760
        %3411 = vmatmul.mubr.f32.gmra.mxu0 %v3410
        %v3412 = vpop.f32.mrf.mxu0
        %v3413 = vadd.f32 %v3322, %v3412
        %v3414 = vpop.f32.mrf.mxu0
        %3415 = vmatprep.mubr.f32.mxu0 0.0
        %v3416 = vand.u32 %v1053, 4294901760
        %3417 = vmatmul.mubr.f32.gmra.mxu0 %v3416
        %v3418 = vpop.f32.mrf.mxu0
        %v3419 = vadd.f32 %v3328, %v3418
        %v3420 = vpop.f32.mrf.mxu0
        %3421 = vdwg.mxu0
        %s3422 = scalar_lea.vmem %s233, 96 [#allocation7]
        %3423 = vst.msk [vmem:[%s3422] sm:$0xff] %vm1643, %v3401
        %3424 = vst.msk [vmem:[%s3422 + $0x8] sm:$0xff] %vm1643, %v3407
        %3425 = vst.msk [vmem:[%s3422 + $0x10] sm:$0xff] %vm1643, %v3413
        %3426 = vst.msk [vmem:[%s3422 + $0x18] sm:$0xff] %vm1643, %v3419
        %s3427 = sand.u32 %s128, 1
        %s3428 = scalar_lea.sflag [#allocation6], %s3427
        %s3429 = sand.u32 %s128, 1
        %s3430 = smul.addr %s3429, 128
        %s3431 = scalar_lea.vmem [#allocation7], %s3430
        // Predicated region
        $region37: #{tpu_custom_call.1} parent=31 // pred_check
          %p3432 = pneg %p138
        $region38: #{tpu_custom_call.1} parent=31 // pred_check_branch
          %3434 = sbr.rel (%p3432) target = $region40
        $region39: #{tpu_custom_call.1} parent=31 // pred_region
          %s3435 = smul.u32 4, %s28
          %s3436 = smul.u32 4, %s29
          %s3438 = ssub.s32 2048, 2048
          %3439 = vsyncadd %s3428, %s3438
          %s3440 = smul.addr %s3435, 4
          %s3441 = sadd.s32 %s3436, %s3440
          %s3442 = smul.addr %s27, 16
          %s3443 = sadd.s32 %s3441, %s3442
          %s3444 = smul.addr %s3443, 128
          %s3445 = scalar_lea.hbm %s4, %s3444
          %s3446 = sshll.u32 %s3431, 4
          %s3447 = int_to_ptr.vmem [resolvable:$true] %s3446
          %3452 = dma.vmem_to_hbm [thread:$0]  %s3447, 2048, %s3445, %s3428, 128, 128, 8
        $region40: #{tpu_custom_call.1} parent=31 // pred_fallthru
          _
      $region32: #{tpu_custom_call.1} parent=5 // pred_fallthru
        _
      %p3453 = scmp.le.s32.totalorder 2, %s17
      // Predicated region
      $region41: #{tpu_custom_call.1} parent=5 // pred_check
        %p3454 = pneg %p3453
      $region42: #{tpu_custom_call.1} parent=5 // pred_check_branch
        %3456 = sbr.rel (%p3454) target = $region44
      $region43: #{tpu_custom_call.1} parent=5 // pred_region
        %s3457 = ssub.s32 %s17, 2
        // Predicated region
        $region45: #{tpu_custom_call.1} parent=43 // pred_check
          %p3458 = pneg %p144
        $region46: #{tpu_custom_call.1} parent=43 // pred_check_branch
          %3460 = sbr.rel (%p3458) target = $region48
        $region47: #{tpu_custom_call.1} parent=43 // pred_region
          %s3461 = sand.u32 %s129, 1
          %s3462 = scalar_lea.sflag [#allocation6], %s3461
          %s3463 = sand.u32 %s129, 1
          %s3464 = smul.addr %s3463, 128
          %s3465 = scalar_lea.vmem [#allocation7], %s3464
          %3466 = dma.done %s3462, 2048
        $region48: #{tpu_custom_call.1} parent=43 // pred_fallthru
          _
      $region44: #{tpu_custom_call.1} parent=5 // pred_fallthru
        _
    $region6: #{tpu_custom_call.1} parent=1 // loop_footer
      %s21 = sadd.s32 1, %s17
    $region7: #{tpu_custom_call.1} parent=1 // loop_footer_branch
      %16 = sbr.rel target = $region3
    $region8: #{tpu_custom_call.1} parent=1 // loop_exit
      _
    %3467 = vsyncpa [#allocation5], 1
    %s3468 = scalar_lea.sflag [#allocation5], 1
    %3469 = vsyncpa %s3468, 1
    %3470 = vsyncpa [#allocation6], 1
    %s3471 = scalar_lea.sflag [#allocation6], 1
    %3472 = vsyncpa %s3471, 1

</llo_original>
